<compile_context>
chip_gen: v7x
topology: tpu7x:2x2x1
jax: 0.10.0
libtpu: 0.0.40
codegen_flags: <defaults>
</compile_context>

<pallas_src>
import functools

import jax
import jax.numpy as jnp
import numpy as np
from jax.experimental import pallas as pl
from jax.experimental.pallas import tpu as pltpu


def _round_up(x, m):
    return (x + m - 1) // m * m


# -----------------------------------------------------------------------------
# Fused kernel: conv1 + bias + relu  ->  conv2 + bias  ->  + x   (one row tile)
# -----------------------------------------------------------------------------
def drb_kernel(xpad_hbm, w1_ref, b1_ref, w2_ref, b2_ref, mask_ref, out_ref,
               xwin_ref, xrhs_ref, y1_ref, p_ref, sem, *, Wp):
    # xpad_hbm : (B, C, (H+8)*Wp) f32 in HBM (4 zero rows top/bottom, image
    #            columns live at lanes [2, W+2) of every Wp-wide row).
    # w*_ref   : (C, 9*C)  weights, columns ordered (ky, kx, cin).
    # b*_ref   : (C, 1)    biases (f32).
    # mask_ref : (1, (Th+4)*Wp) f32, 1.0 at valid image columns else 0.0.
    # out_ref  : (C, Th*Wp) lane-dense output slab for this row tile.
    # xwin_ref : (2, C, (Th+8)*Wp) f32  manual DMA double buffer.
    # xrhs_ref : (C, (Th+8)*Wp)  matmul-dtype copy of the current window.
    # y1_ref   : (C, (Th+4)*Wp)  relu(conv1) slab incl. 2-row halo each side.
    # p_ref    : (9*C, (Th+4)*Wp) shared im2col buffer for both convs.
    C = w1_ref.shape[0]
    n_win = xrhs_ref.shape[-1]          # (Th + 8) * Wp
    n1 = y1_ref.shape[-1]               # (Th + 4) * Wp
    n2 = out_ref.shape[-1]              # Th * Wp

    b = pl.program_id(0)
    r = pl.program_id(1)
    R = pl.num_programs(1)
    slot = jax.lax.rem(r, 2)

    # ---- manual double-buffered row-window DMA (x stays in HBM) -------------
    def window_copy(row_tile, buf):
        start = pl.multiple_of(row_tile * n2, 128)
        return pltpu.make_async_copy(
            xpad_hbm.at[b, :, pl.ds(start, n_win)],
            xwin_ref.at[buf],
            sem.at[buf])

    @pl.when(r == 0)                    # prime the pipeline once per batch
    def _():
        window_copy(0, 0).start()

    window_copy(r, slot).wait()         # window for this tile is now in VMEM

    @pl.when(r + 1 < R)                 # prefetch the next tile's window
    def _():
        window_copy(r + 1, 1 - slot).start()

    # Matmul-dtype (bf16) copy of the window; residual stays on the f32 copy.
    xrhs_ref[...] = xwin_ref[slot].astype(xrhs_ref.dtype)

    def im2col(src_ref, n_out):
        # tap (ky, kx) of a dilation-2 3x3 conv needs src[t + 2*ky*Wp + 2*kx-2]
        # for t in [0, n_out): the 2*ky*Wp part is a free 128-aligned lane
        # slice, the +/-2 part a cheap XLU lane roll.  Roll wrap-around only
        # touches lanes whose targets are padding columns (masked / discarded).
        for ky in range(3):
            base = 2 * ky * Wp
            for kx in range(3):
                v = src_ref[:, base:base + n_out]
                if kx != 1:
                    v = pltpu.roll(v, shift=(2 - 2 * kx) % n_out, axis=1)
                tap = ky * 3 + kx
                p_ref[tap * C:(tap + 1) * C, 0:n_out] = v

    # ---- conv1 + bias + relu  (over the Th+4-row intermediate halo slab) ----
    im2col(xrhs_ref, n1)
    y1 = jnp.dot(w1_ref[...], p_ref[...], preferred_element_type=jnp.float32)
    y1 = jnp.maximum(y1 + b1_ref[...], 0.0) * mask_ref[...]   # column zero-pad
    y1_ref[...] = y1.astype(y1_ref.dtype)

    # Intermediate halo rows outside the image must be exact zeros (conv2's
    # zero padding) -- only the first / last row tiles have such rows.
    @pl.when(r == 0)
    def _():
        y1_ref[:, 0:2 * Wp] = jnp.zeros((C, 2 * Wp), y1_ref.dtype)

    @pl.when(r == R - 1)
    def _():
        y1_ref[:, n1 - 2 * Wp:n1] = jnp.zeros((C, 2 * Wp), y1_ref.dtype)

    # ---- conv2 + bias + residual --------------------------------------------
    im2col(y1_ref, n2)
    y2 = jnp.dot(w2_ref[...], p_ref[:, 0:n2],
                 preferred_element_type=jnp.float32)
    xres = xwin_ref[slot, :, 4 * Wp:4 * Wp + n2]        # lane-dense f32 slice
    out_ref[...] = (y2 + b2_ref[...] + xres).astype(out_ref.dtype)


# -----------------------------------------------------------------------------
# Wrapper
# -----------------------------------------------------------------------------
def _vmem_caps():
    """(scratch budget for picking Th, vmem_limit_bytes) from HW capacity."""
    try:
        cap = int(pltpu.get_tpu_info().vmem_capacity_bytes)
    except Exception:
        cap = 64 * 1024 * 1024          # safe fallback (v7x-sized)
    return int(cap * 0.60), int(cap * 0.75)


def _vmem_estimate(C, Th, Wp, rhs_bytes):
    n_win = (Th + 8) * Wp
    n1 = (Th + 4) * Wp
    n2 = Th * Wp
    scr = (2 * C * n_win * 4            # xwin manual double buffer (f32)
           + C * n_win * rhs_bytes      # matmul-dtype window copy
           + C * n1 * rhs_bytes         # relu(conv1) slab
           + 9 * C * n1 * rhs_bytes)    # shared im2col buffer
    io = 2 * C * n2 * 4                 # pipelined output block
    const = 2 * (2 * 9 * C * C * rhs_bytes + 2 * C * 4 + n1 * 4)
    return scr + io + const


def _pick_row_tile(H, C, Wp, budget, rhs_bytes):
    """LARGEST divisor of H whose VMEM estimate fits the budget."""
    divisors = [d for d in range(1, H + 1) if H % d == 0]
    # Th == 1 only allowed when H <= 2 (interior tiles need Th >= 2 for the
    # boundary-row zeroing logic).
    allowed = [d for d in divisors if d >= 2 or H <= 2]
    for th in sorted(allowed, reverse=True):
        if _vmem_estimate(C, th, Wp, rhs_bytes) <= budget:
            return th
    return min(allowed)


def drb_forward(x, w1, b1, w2, b2, *, matmul_dtype=jnp.bfloat16):
    """x: (B, C, H, W) f32; w_i: (C, C, 3, 3) OIHW; b_i: (C,). -> (B, C, H, W)."""
    B, C, H, W = x.shape
    Wp = max(_round_up(W + 4, 128), 128)
    rhs_bytes = jnp.dtype(matmul_dtype).itemsize
    budget, vmem_limit = _vmem_caps()
    Th = _pick_row_tile(H, C, Wp, budget, rhs_bytes)
    R = H // Th
    n1 = (Th + 4) * Wp
    n2 = Th * Wp

    # Layout plumbing (done once, outside the hot loop).
    xpad = jnp.pad(x.astype(jnp.float32),
                   ((0, 0), (0, 0), (4, 4), (2, Wp - W - 2)))
    xpad = xpad.reshape(B, C, (H + 8) * Wp)
    w1f = jnp.transpose(w1, (0, 2, 3, 1)).reshape(C, 9 * C).astype(matmul_dtype)
    w2f = jnp.transpose(w2, (0, 2, 3, 1)).reshape(C, 9 * C).astype(matmul_dtype)
    b1c = b1.reshape(C, 1).astype(jnp.float32)
    b2c = b2.reshape(C, 1).astype(jnp.float32)
    col = np.arange(n1) % Wp
    colmask = jnp.asarray(((col >= 2) & (col < W + 2)).astype(np.float32)
                          ).reshape(1, n1)

    flops = 2 * 9 * C * C * B * R * (n1 + n2)
    bytes_accessed = (4 * (B * R * C * (Th + 8) * Wp + B * C * H * Wp)
                      + 2 * 9 * C * C * rhs_bytes + 8 * C + 4 * n1)

    out_flat = pl.pallas_call(
        functools.partial(drb_kernel, Wp=Wp),
        out_shape=jax.ShapeDtypeStruct((B, C, H * Wp), jnp.float32),
        grid=(B, R),
        in_specs=[
            pl.BlockSpec(memory_space=pl.ANY),                 # x stays in HBM
            pl.BlockSpec((C, 9 * C), lambda b, r: (0, 0)),
            pl.BlockSpec((C, 1), lambda b, r: (0, 0)),
            pl.BlockSpec((C, 9 * C), lambda b, r: (0, 0)),
            pl.BlockSpec((C, 1), lambda b, r: (0, 0)),
            pl.BlockSpec((1, n1), lambda b, r: (0, 0)),
        ],
        out_specs=pl.BlockSpec((None, C, n2), lambda b, r: (b, 0, r)),
        scratch_shapes=[
            pltpu.VMEM((2, C, (Th + 8) * Wp), jnp.float32),    # window dbl buf
            pltpu.VMEM((C, (Th + 8) * Wp), matmul_dtype),      # bf16 window
            pltpu.VMEM((C, n1), matmul_dtype),                 # relu(conv1)
            pltpu.VMEM((9 * C, n1), matmul_dtype),             # shared im2col
            pltpu.SemaphoreType.DMA((2,)),
        ],
        compiler_params=pltpu.CompilerParams(
            dimension_semantics=("parallel", "arbitrary"),
            vmem_limit_bytes=vmem_limit),
        cost_estimate=pl.CostEstimate(
            flops=flops, transcendentals=0, bytes_accessed=bytes_accessed),
    )(xpad, w1f, b1c, w2f, b2c, colmask)

    return out_flat.reshape(B, C, H, Wp)[:, :, :, 2:2 + W]


# -----------------------------------------------------------------------------
# Pure-JAX reference (lax conv) for correctness checking.
# -----------------------------------------------------------------------------
def drb_reference(x, w1, b1, w2, b2):
    def conv(h, w, b):
        y = jax.lax.conv_general_dilated(
            h, w, window_strides=(1, 1), padding=((2, 2), (2, 2)),
            rhs_dilation=(2, 2),
            dimension_numbers=("NCHW", "OIHW", "NCHW"))
        return y + b.reshape(1, -1, 1, 1)
    y = jax.nn.relu(conv(x, w1, b1))
    return conv(y, w2, b2) + x


if __name__ == "__main__":
    B, C, H, W = 2, 4, 16, 16

    key = jax.random.PRNGKey(0)
    key, xk, k1, k2, k3, k4 = jax.random.split(key, 6)
    x = jax.random.normal(xk, (B, C, H, W), dtype=jnp.float32)
    w1 = 0.1 * jax.random.normal(k1, (C, C, 3, 3), dtype=jnp.float32)   # OIHW
    b1 = 0.1 * jax.random.normal(k2, (C,), dtype=jnp.float32)
    w2 = 0.1 * jax.random.normal(k3, (C, C, 3, 3), dtype=jnp.float32)
    b2 = 0.1 * jax.random.normal(k4, (C,), dtype=jnp.float32)

    ref = jax.block_until_ready(drb_reference(x, w1, b1, w2, b2))

    # Exact-precision path (f32 MXU operands) -> tight tolerance.
    drb_f32 = jax.jit(functools.partial(drb_forward, matmul_dtype=jnp.float32))
    out_f32 = jax.block_until_ready(drb_f32(x, w1, b1, w2, b2))
    np.testing.assert_allclose(np.asarray(out_f32), np.asarray(ref),
                               rtol=1e-4, atol=1e-4)

    # Default perf path (bf16 MXU operands, f32 accumulation / elementwise).
    drb = jax.jit(drb_forward)
    out = jax.block_until_ready(drb(x, w1, b1, w2, b2))
    np.testing.assert_allclose(np.asarray(out), np.asarray(ref),
                               rtol=5e-2, atol=5e-2)

    print("KERNEL_OK")
</pallas_src>

<mosaic_0001>
module attributes {stable_mosaic.version = 11 : i64} {
  func.func @drb_kernel(%arg0: i32, %arg1: i32, %arg2: memref<2x4x3072xf32, #tpu.memory_space<any>>, %arg3: memref<4x36xf32, #tpu.memory_space<vmem>>, %arg4: memref<4x1xf32, #tpu.memory_space<vmem>>, %arg5: memref<4x36xf32, #tpu.memory_space<vmem>>, %arg6: memref<4x1xf32, #tpu.memory_space<vmem>>, %arg7: memref<1x2560xf32, #tpu.memory_space<vmem>>, %arg8: memref<1x4x2048xf32, #tpu.memory_space<vmem>>, %arg9: memref<2x4x3072xf32, #tpu.memory_space<vmem>>, %arg10: memref<4x3072xf32, #tpu.memory_space<vmem>>, %arg11: memref<4x2560xf32, #tpu.memory_space<vmem>>, %arg12: memref<36x2560xf32, #tpu.memory_space<vmem>>, %arg13: memref<2x!tpu.dma_semaphore, #tpu.memory_space<semaphore_mem>>) attributes {dimension_semantics = [#tpu.dimension_semantics<parallel>, #tpu.dimension_semantics<arbitrary>], iteration_bounds = array<i64: 2, 1>, scalar_prefetch = 0 : i64, scratch_operands = 5 : i64, tpu.core_type = #tpu.core_type<tc>, window_params = [{}, {pipeline_mode = #tpu.pipeline_mode<synchronous>, transform_indices = @transform_1, window_bounds = array<i64: 4, 36>}, {pipeline_mode = #tpu.pipeline_mode<synchronous>, transform_indices = @transform_2, window_bounds = array<i64: 4, 1>}, {pipeline_mode = #tpu.pipeline_mode<synchronous>, transform_indices = @transform_3, window_bounds = array<i64: 4, 36>}, {pipeline_mode = #tpu.pipeline_mode<synchronous>, transform_indices = @transform_4, window_bounds = array<i64: 4, 1>}, {pipeline_mode = #tpu.pipeline_mode<synchronous>, transform_indices = @transform_5, window_bounds = array<i64: 1, 2560>}, {transform_indices = @transform_6, window_bounds = array<i64: 1, 4, 2048>}]} {
    %c2_i32 = arith.constant 2 : i32
    %0 = arith.remsi %arg1, %c2_i32 : i32
    %c0_i32 = arith.constant 0 : i32
    %1 = arith.cmpi eq, %arg1, %c0_i32 : i32
    %2 = arith.extui %1 : i1 to i32
    %c0_i32_0 = arith.constant 0 : i32
    %3 = arith.cmpi ne, %2, %c0_i32_0 : i32
    scf.if %3 {
      %c0_i32_108 = arith.constant 0 : i32
      %99 = tpu.assume_multiple %c0_i32_108, 128 : i32
      %c0_i32_109 = arith.constant 0 : i32
      %c0_i32_110 = arith.constant 0 : i32
      %c0_i32_111 = arith.constant 0 : i32
      %100 = tpu.memref_slice %arg2[%arg0, %c0_i32_111, %99] : memref<2x4x3072xf32, #tpu.memory_space<any>> -> memref<1x4x3072xf32, #tpu.memory_space<any>>
      %101 = tpu.memref_squeeze %100 : memref<1x4x3072xf32, #tpu.memory_space<any>> -> memref<4x3072xf32, #tpu.memory_space<any>>
      %c0_i32_112 = arith.constant 0 : i32
      %c0_i32_113 = arith.constant 0 : i32
      %102 = tpu.memref_slice %arg9[%c0_i32_109, %c0_i32_112, %c0_i32_113] : memref<2x4x3072xf32, #tpu.memory_space<vmem>> -> memref<1x4x3072xf32, #tpu.memory_space<vmem>>
      %103 = tpu.memref_squeeze %102 : memref<1x4x3072xf32, #tpu.memory_space<vmem>> -> memref<4x3072xf32, #tpu.memory_space<vmem>>
      %104 = tpu.memref_slice %arg13[%c0_i32_110] : memref<2x!tpu.dma_semaphore, #tpu.memory_space<semaphore_mem>> -> memref<1x!tpu.dma_semaphore, #tpu.memory_space<semaphore_mem>>
      %105 = tpu.memref_squeeze %104 : memref<1x!tpu.dma_semaphore, #tpu.memory_space<semaphore_mem>> -> memref<!tpu.dma_semaphore, #tpu.memory_space<semaphore_mem>>
      tpu.enqueue_dma source(%101 : memref<4x3072xf32, #tpu.memory_space<any>>) target(%103 : memref<4x3072xf32, #tpu.memory_space<vmem>>) target_semaphore(%105 : memref<!tpu.dma_semaphore, #tpu.memory_space<semaphore_mem>>)
    } else {
    }
    %c2048_i32 = arith.constant 2048 : i32
    %4 = arith.muli %arg1, %c2048_i32 : i32
    %5 = tpu.assume_multiple %4, 128 : i32
    %c0_i32_1 = arith.constant 0 : i32
    %6 = tpu.memref_slice %arg2[%arg0, %c0_i32_1, %5] : memref<2x4x3072xf32, #tpu.memory_space<any>> -> memref<1x4x3072xf32, #tpu.memory_space<any>>
    %7 = tpu.memref_squeeze %6 : memref<1x4x3072xf32, #tpu.memory_space<any>> -> memref<4x3072xf32, #tpu.memory_space<any>>
    %c0_i32_2 = arith.constant 0 : i32
    %c0_i32_3 = arith.constant 0 : i32
    %8 = tpu.memref_slice %arg9[%0, %c0_i32_2, %c0_i32_3] : memref<2x4x3072xf32, #tpu.memory_space<vmem>> -> memref<1x4x3072xf32, #tpu.memory_space<vmem>>
    %9 = tpu.memref_squeeze %8 : memref<1x4x3072xf32, #tpu.memory_space<vmem>> -> memref<4x3072xf32, #tpu.memory_space<vmem>>
    %10 = tpu.memref_slice %arg13[%0] : memref<2x!tpu.dma_semaphore, #tpu.memory_space<semaphore_mem>> -> memref<1x!tpu.dma_semaphore, #tpu.memory_space<semaphore_mem>>
    %11 = tpu.memref_squeeze %10 : memref<1x!tpu.dma_semaphore, #tpu.memory_space<semaphore_mem>> -> memref<!tpu.dma_semaphore, #tpu.memory_space<semaphore_mem>>
    tpu.wait_dma2 semaphore(%11 : memref<!tpu.dma_semaphore, #tpu.memory_space<semaphore_mem>>) src(%7 : memref<4x3072xf32, #tpu.memory_space<any>>) dst(%9 : memref<4x3072xf32, #tpu.memory_space<vmem>>)
    %c1_i32 = arith.constant 1 : i32
    %12 = arith.addi %arg1, %c1_i32 : i32
    %c1_i32_4 = arith.constant 1 : i32
    %13 = arith.cmpi slt, %12, %c1_i32_4 : i32
    %14 = arith.extui %13 : i1 to i32
    %c0_i32_5 = arith.constant 0 : i32
    %15 = arith.cmpi ne, %14, %c0_i32_5 : i32
    scf.if %15 {
      %c1_i32_108 = arith.constant 1 : i32
      %99 = arith.addi %arg1, %c1_i32_108 : i32
      %c1_i32_109 = arith.constant 1 : i32
      %100 = arith.subi %c1_i32_109, %0 : i32
      %c2048_i32_110 = arith.constant 2048 : i32
      %101 = arith.muli %99, %c2048_i32_110 : i32
      %102 = tpu.assume_multiple %101, 128 : i32
      %c0_i32_111 = arith.constant 0 : i32
      %103 = tpu.memref_slice %arg2[%arg0, %c0_i32_111, %102] : memref<2x4x3072xf32, #tpu.memory_space<any>> -> memref<1x4x3072xf32, #tpu.memory_space<any>>
      %104 = tpu.memref_squeeze %103 : memref<1x4x3072xf32, #tpu.memory_space<any>> -> memref<4x3072xf32, #tpu.memory_space<any>>
      %c0_i32_112 = arith.constant 0 : i32
      %c0_i32_113 = arith.constant 0 : i32
      %105 = tpu.memref_slice %arg9[%100, %c0_i32_112, %c0_i32_113] : memref<2x4x3072xf32, #tpu.memory_space<vmem>> -> memref<1x4x3072xf32, #tpu.memory_space<vmem>>
      %106 = tpu.memref_squeeze %105 : memref<1x4x3072xf32, #tpu.memory_space<vmem>> -> memref<4x3072xf32, #tpu.memory_space<vmem>>
      %107 = tpu.memref_slice %arg13[%100] : memref<2x!tpu.dma_semaphore, #tpu.memory_space<semaphore_mem>> -> memref<1x!tpu.dma_semaphore, #tpu.memory_space<semaphore_mem>>
      %108 = tpu.memref_squeeze %107 : memref<1x!tpu.dma_semaphore, #tpu.memory_space<semaphore_mem>> -> memref<!tpu.dma_semaphore, #tpu.memory_space<semaphore_mem>>
      tpu.enqueue_dma source(%104 : memref<4x3072xf32, #tpu.memory_space<any>>) target(%106 : memref<4x3072xf32, #tpu.memory_space<vmem>>) target_semaphore(%108 : memref<!tpu.dma_semaphore, #tpu.memory_space<semaphore_mem>>)
    } else {
    }
    %16 = arith.index_cast %0 : i32 to index
    %c0 = arith.constant 0 : index
    %c0_6 = arith.constant 0 : index
    %17 = vector.load %arg9[%16, %c0, %c0_6] : memref<2x4x3072xf32, #tpu.memory_space<vmem>>, vector<1x4x3072xf32>
    %18 = vector.shape_cast %17 : vector<1x4x3072xf32> to vector<4x3072xf32>
    %c0_7 = arith.constant 0 : index
    %c0_8 = arith.constant 0 : index
    %19 = vector.load %arg10[%c0_7, %c0_8] : memref<4x3072xf32, #tpu.memory_space<vmem>>, vector<4x3072xf32>
    tpu.vector_store %arg10[%c0_7, %c0_8], %18 {strides = array<i32>} : memref<4x3072xf32, #tpu.memory_space<vmem>>, vector<4x3072xf32>,
    %c0_9 = arith.constant 0 : index
    %c0_10 = arith.constant 0 : index
    %20 = vector.load %arg10[%c0_9, %c0_10] : memref<4x3072xf32, #tpu.memory_space<vmem>>, vector<4x2560xf32>
    %c2_i32_11 = arith.constant 2 : i32
    %21 = tpu.dynamic_rotate %20 by %c2_i32_11 dim 1 : vector<4x2560xf32>, i32 -> vector<4x2560xf32>
    %c0_12 = arith.constant 0 : index
    %c0_13 = arith.constant 0 : index
    %22 = vector.load %arg12[%c0_12, %c0_13] : memref<36x2560xf32, #tpu.memory_space<vmem>>, vector<4x2560xf32>
    tpu.vector_store %arg12[%c0_12, %c0_13], %21 {strides = array<i32>} : memref<36x2560xf32, #tpu.memory_space<vmem>>, vector<4x2560xf32>,
    %c0_14 = arith.constant 0 : index
    %c0_15 = arith.constant 0 : index
    %23 = vector.load %arg10[%c0_14, %c0_15] : memref<4x3072xf32, #tpu.memory_space<vmem>>, vector<4x2560xf32>
    %c4 = arith.constant 4 : index
    %c0_16 = arith.constant 0 : index
    %24 = vector.load %arg12[%c4, %c0_16] : memref<36x2560xf32, #tpu.memory_space<vmem>>, vector<4x2560xf32>
    tpu.vector_store %arg12[%c4, %c0_16], %23 {strides = array<i32>} : memref<36x2560xf32, #tpu.memory_space<vmem>>, vector<4x2560xf32>,
    %c0_17 = arith.constant 0 : index
    %c0_18 = arith.constant 0 : index
    %25 = vector.load %arg10[%c0_17, %c0_18] : memref<4x3072xf32, #tpu.memory_space<vmem>>, vector<4x2560xf32>
    %c2558_i32 = arith.constant 2558 : i32
    %26 = tpu.dynamic_rotate %25 by %c2558_i32 dim 1 : vector<4x2560xf32>, i32 -> vector<4x2560xf32>
    %c8 = arith.constant 8 : index
    %c0_19 = arith.constant 0 : index
    %27 = vector.load %arg12[%c8, %c0_19] : memref<36x2560xf32, #tpu.memory_space<vmem>>, vector<4x2560xf32>
    tpu.vector_store %arg12[%c8, %c0_19], %26 {strides = array<i32>} : memref<36x2560xf32, #tpu.memory_space<vmem>>, vector<4x2560xf32>,
    %c0_20 = arith.constant 0 : index
    %c256 = arith.constant 256 : index
    %28 = vector.load %arg10[%c0_20, %c256] : memref<4x3072xf32, #tpu.memory_space<vmem>>, vector<4x2560xf32>
    %c2_i32_21 = arith.constant 2 : i32
    %29 = tpu.dynamic_rotate %28 by %c2_i32_21 dim 1 : vector<4x2560xf32>, i32 -> vector<4x2560xf32>
    %c12 = arith.constant 12 : index
    %c0_22 = arith.constant 0 : index
    %30 = vector.load %arg12[%c12, %c0_22] : memref<36x2560xf32, #tpu.memory_space<vmem>>, vector<4x2560xf32>
    tpu.vector_store %arg12[%c12, %c0_22], %29 {strides = array<i32>} : memref<36x2560xf32, #tpu.memory_space<vmem>>, vector<4x2560xf32>,
    %c0_23 = arith.constant 0 : index
    %c256_24 = arith.constant 256 : index
    %31 = vector.load %arg10[%c0_23, %c256_24] : memref<4x3072xf32, #tpu.memory_space<vmem>>, vector<4x2560xf32>
    %c16 = arith.constant 16 : index
    %c0_25 = arith.constant 0 : index
    %32 = vector.load %arg12[%c16, %c0_25] : memref<36x2560xf32, #tpu.memory_space<vmem>>, vector<4x2560xf32>
    tpu.vector_store %arg12[%c16, %c0_25], %31 {strides = array<i32>} : memref<36x2560xf32, #tpu.memory_space<vmem>>, vector<4x2560xf32>,
    %c0_26 = arith.constant 0 : index
    %c256_27 = arith.constant 256 : index
    %33 = vector.load %arg10[%c0_26, %c256_27] : memref<4x3072xf32, #tpu.memory_space<vmem>>, vector<4x2560xf32>
    %c2558_i32_28 = arith.constant 2558 : i32
    %34 = tpu.dynamic_rotate %33 by %c2558_i32_28 dim 1 : vector<4x2560xf32>, i32 -> vector<4x2560xf32>
    %c20 = arith.constant 20 : index
    %c0_29 = arith.constant 0 : index
    %35 = vector.load %arg12[%c20, %c0_29] : memref<36x2560xf32, #tpu.memory_space<vmem>>, vector<4x2560xf32>
    tpu.vector_store %arg12[%c20, %c0_29], %34 {strides = array<i32>} : memref<36x2560xf32, #tpu.memory_space<vmem>>, vector<4x2560xf32>,
    %c0_30 = arith.constant 0 : index
    %c512 = arith.constant 512 : index
    %36 = vector.load %arg10[%c0_30, %c512] : memref<4x3072xf32, #tpu.memory_space<vmem>>, vector<4x2560xf32>
    %c2_i32_31 = arith.constant 2 : i32
    %37 = tpu.dynamic_rotate %36 by %c2_i32_31 dim 1 : vector<4x2560xf32>, i32 -> vector<4x2560xf32>
    %c24 = arith.constant 24 : index
    %c0_32 = arith.constant 0 : index
    %38 = vector.load %arg12[%c24, %c0_32] : memref<36x2560xf32, #tpu.memory_space<vmem>>, vector<4x2560xf32>
    tpu.vector_store %arg12[%c24, %c0_32], %37 {strides = array<i32>} : memref<36x2560xf32, #tpu.memory_space<vmem>>, vector<4x2560xf32>,
    %c0_33 = arith.constant 0 : index
    %c512_34 = arith.constant 512 : index
    %39 = vector.load %arg10[%c0_33, %c512_34] : memref<4x3072xf32, #tpu.memory_space<vmem>>, vector<4x2560xf32>
    %c28 = arith.constant 28 : index
    %c0_35 = arith.constant 0 : index
    %40 = vector.load %arg12[%c28, %c0_35] : memref<36x2560xf32, #tpu.memory_space<vmem>>, vector<4x2560xf32>
    tpu.vector_store %arg12[%c28, %c0_35], %39 {strides = array<i32>} : memref<36x2560xf32, #tpu.memory_space<vmem>>, vector<4x2560xf32>,
    %c0_36 = arith.constant 0 : index
    %c512_37 = arith.constant 512 : index
    %41 = vector.load %arg10[%c0_36, %c512_37] : memref<4x3072xf32, #tpu.memory_space<vmem>>, vector<4x2560xf32>
    %c2558_i32_38 = arith.constant 2558 : i32
    %42 = tpu.dynamic_rotate %41 by %c2558_i32_38 dim 1 : vector<4x2560xf32>, i32 -> vector<4x2560xf32>
    %c32 = arith.constant 32 : index
    %c0_39 = arith.constant 0 : index
    %43 = vector.load %arg12[%c32, %c0_39] : memref<36x2560xf32, #tpu.memory_space<vmem>>, vector<4x2560xf32>
    tpu.vector_store %arg12[%c32, %c0_39], %42 {strides = array<i32>} : memref<36x2560xf32, #tpu.memory_space<vmem>>, vector<4x2560xf32>,
    %c0_40 = arith.constant 0 : index
    %c0_41 = arith.constant 0 : index
    %44 = vector.load %arg3[%c0_40, %c0_41] : memref<4x36xf32, #tpu.memory_space<vmem>>, vector<4x36xf32>
    %c0_42 = arith.constant 0 : index
    %c0_43 = arith.constant 0 : index
    %45 = vector.load %arg12[%c0_42, %c0_43] : memref<36x2560xf32, #tpu.memory_space<vmem>>, vector<36x2560xf32>
    %cst = arith.constant dense<0.000000e+00> : vector<4x2560xf32>
    %46 = tpu.matmul %44, %45, %cst {dimension_numbers = #tpu.dot_dimension_numbers<[1], [0], [0], [1], [0, 0, 1, 1], [], []>} : vector<4x36xf32>, vector<36x2560xf32>, vector<4x2560xf32> -> vector<4x2560xf32>
    %c0_44 = arith.constant 0 : index
    %c0_45 = arith.constant 0 : index
    %47 = vector.load %arg4[%c0_44, %c0_45] : memref<4x1xf32, #tpu.memory_space<vmem>>, vector<4x1xf32>
    %48 = vector.broadcast %47 : vector<4x1xf32> to vector<4x2560xf32>
    %49 = arith.addf %46, %48 : vector<4x2560xf32>
    %cst_46 = arith.constant 0.000000e+00 : f32
    %50 = vector.broadcast %cst_46 : f32 to vector<4x2560xf32>
    %51 = arith.maximumf %49, %50 : vector<4x2560xf32>
    %c0_47 = arith.constant 0 : index
    %c0_48 = arith.constant 0 : index
    %52 = vector.load %arg7[%c0_47, %c0_48] : memref<1x2560xf32, #tpu.memory_space<vmem>>, vector<1x2560xf32>
    %53 = vector.broadcast %52 : vector<1x2560xf32> to vector<4x2560xf32>
    %54 = arith.mulf %51, %53 : vector<4x2560xf32>
    %c0_49 = arith.constant 0 : index
    %c0_50 = arith.constant 0 : index
    %55 = vector.load %arg11[%c0_49, %c0_50] : memref<4x2560xf32, #tpu.memory_space<vmem>>, vector<4x2560xf32>
    tpu.vector_store %arg11[%c0_49, %c0_50], %54 {strides = array<i32>} : memref<4x2560xf32, #tpu.memory_space<vmem>>, vector<4x2560xf32>,
    %c0_i32_51 = arith.constant 0 : i32
    %56 = arith.cmpi eq, %arg1, %c0_i32_51 : i32
    %57 = arith.extui %56 : i1 to i32
    %c0_i32_52 = arith.constant 0 : i32
    %58 = arith.cmpi ne, %57, %c0_i32_52 : i32
    scf.if %58 {
      %cst_108 = arith.constant 0.000000e+00 : f32
      %99 = vector.broadcast %cst_108 : f32 to vector<4x256xf32>
      %c0_109 = arith.constant 0 : index
      %c0_110 = arith.constant 0 : index
      %100 = vector.load %arg11[%c0_109, %c0_110] : memref<4x2560xf32, #tpu.memory_space<vmem>>, vector<4x256xf32>
      tpu.vector_store %arg11[%c0_109, %c0_110], %99 {strides = array<i32>} : memref<4x2560xf32, #tpu.memory_space<vmem>>, vector<4x256xf32>,
    } else {
    }
    %c0_i32_53 = arith.constant 0 : i32
    %59 = arith.cmpi eq, %arg1, %c0_i32_53 : i32
    %60 = arith.extui %59 : i1 to i32
    %c0_i32_54 = arith.constant 0 : i32
    %61 = arith.cmpi ne, %60, %c0_i32_54 : i32
    scf.if %61 {
      %cst_108 = arith.constant 0.000000e+00 : f32
      %99 = vector.broadcast %cst_108 : f32 to vector<4x256xf32>
      %c0_109 = arith.constant 0 : index
      %c2304 = arith.constant 2304 : index
      %100 = vector.load %arg11[%c0_109, %c2304] : memref<4x2560xf32, #tpu.memory_space<vmem>>, vector<4x256xf32>
      tpu.vector_store %arg11[%c0_109, %c2304], %99 {strides = array<i32>} : memref<4x2560xf32, #tpu.memory_space<vmem>>, vector<4x256xf32>,
    } else {
    }
    %c0_55 = arith.constant 0 : index
    %c0_56 = arith.constant 0 : index
    %62 = vector.load %arg11[%c0_55, %c0_56] : memref<4x2560xf32, #tpu.memory_space<vmem>>, vector<4x2048xf32>
    %c2_i32_57 = arith.constant 2 : i32
    %63 = tpu.dynamic_rotate %62 by %c2_i32_57 dim 1 : vector<4x2048xf32>, i32 -> vector<4x2048xf32>
    %c0_58 = arith.constant 0 : index
    %c0_59 = arith.constant 0 : index
    %64 = vector.load %arg12[%c0_58, %c0_59] : memref<36x2560xf32, #tpu.memory_space<vmem>>, vector<4x2048xf32>
    tpu.vector_store %arg12[%c0_58, %c0_59], %63 {strides = array<i32>} : memref<36x2560xf32, #tpu.memory_space<vmem>>, vector<4x2048xf32>,
    %c0_60 = arith.constant 0 : index
    %c0_61 = arith.constant 0 : index
    %65 = vector.load %arg11[%c0_60, %c0_61] : memref<4x2560xf32, #tpu.memory_space<vmem>>, vector<4x2048xf32>
    %c4_62 = arith.constant 4 : index
    %c0_63 = arith.constant 0 : index
    %66 = vector.load %arg12[%c4_62, %c0_63] : memref<36x2560xf32, #tpu.memory_space<vmem>>, vector<4x2048xf32>
    tpu.vector_store %arg12[%c4_62, %c0_63], %65 {strides = array<i32>} : memref<36x2560xf32, #tpu.memory_space<vmem>>, vector<4x2048xf32>,
    %c0_64 = arith.constant 0 : index
    %c0_65 = arith.constant 0 : index
    %67 = vector.load %arg11[%c0_64, %c0_65] : memref<4x2560xf32, #tpu.memory_space<vmem>>, vector<4x2048xf32>
    %c2046_i32 = arith.constant 2046 : i32
    %68 = tpu.dynamic_rotate %67 by %c2046_i32 dim 1 : vector<4x2048xf32>, i32 -> vector<4x2048xf32>
    %c8_66 = arith.constant 8 : index
    %c0_67 = arith.constant 0 : index
    %69 = vector.load %arg12[%c8_66, %c0_67] : memref<36x2560xf32, #tpu.memory_space<vmem>>, vector<4x2048xf32>
    tpu.vector_store %arg12[%c8_66, %c0_67], %68 {strides = array<i32>} : memref<36x2560xf32, #tpu.memory_space<vmem>>, vector<4x2048xf32>,
    %c0_68 = arith.constant 0 : index
    %c256_69 = arith.constant 256 : index
    %70 = vector.load %arg11[%c0_68, %c256_69] : memref<4x2560xf32, #tpu.memory_space<vmem>>, vector<4x2048xf32>
    %c2_i32_70 = arith.constant 2 : i32
    %71 = tpu.dynamic_rotate %70 by %c2_i32_70 dim 1 : vector<4x2048xf32>, i32 -> vector<4x2048xf32>
    %c12_71 = arith.constant 12 : index
    %c0_72 = arith.constant 0 : index
    %72 = vector.load %arg12[%c12_71, %c0_72] : memref<36x2560xf32, #tpu.memory_space<vmem>>, vector<4x2048xf32>
    tpu.vector_store %arg12[%c12_71, %c0_72], %71 {strides = array<i32>} : memref<36x2560xf32, #tpu.memory_space<vmem>>, vector<4x2048xf32>,
    %c0_73 = arith.constant 0 : index
    %c256_74 = arith.constant 256 : index
    %73 = vector.load %arg11[%c0_73, %c256_74] : memref<4x2560xf32, #tpu.memory_space<vmem>>, vector<4x2048xf32>
    %c16_75 = arith.constant 16 : index
    %c0_76 = arith.constant 0 : index
    %74 = vector.load %arg12[%c16_75, %c0_76] : memref<36x2560xf32, #tpu.memory_space<vmem>>, vector<4x2048xf32>
    tpu.vector_store %arg12[%c16_75, %c0_76], %73 {strides = array<i32>} : memref<36x2560xf32, #tpu.memory_space<vmem>>, vector<4x2048xf32>,
    %c0_77 = arith.constant 0 : index
    %c256_78 = arith.constant 256 : index
    %75 = vector.load %arg11[%c0_77, %c256_78] : memref<4x2560xf32, #tpu.memory_space<vmem>>, vector<4x2048xf32>
    %c2046_i32_79 = arith.constant 2046 : i32
    %76 = tpu.dynamic_rotate %75 by %c2046_i32_79 dim 1 : vector<4x2048xf32>, i32 -> vector<4x2048xf32>
    %c20_80 = arith.constant 20 : index
    %c0_81 = arith.constant 0 : index
    %77 = vector.load %arg12[%c20_80, %c0_81] : memref<36x2560xf32, #tpu.memory_space<vmem>>, vector<4x2048xf32>
    tpu.vector_store %arg12[%c20_80, %c0_81], %76 {strides = array<i32>} : memref<36x2560xf32, #tpu.memory_space<vmem>>, vector<4x2048xf32>,
    %c0_82 = arith.constant 0 : index
    %c512_83 = arith.constant 512 : index
    %78 = vector.load %arg11[%c0_82, %c512_83] : memref<4x2560xf32, #tpu.memory_space<vmem>>, vector<4x2048xf32>
    %c2_i32_84 = arith.constant 2 : i32
    %79 = tpu.dynamic_rotate %78 by %c2_i32_84 dim 1 : vector<4x2048xf32>, i32 -> vector<4x2048xf32>
    %c24_85 = arith.constant 24 : index
    %c0_86 = arith.constant 0 : index
    %80 = vector.load %arg12[%c24_85, %c0_86] : memref<36x2560xf32, #tpu.memory_space<vmem>>, vector<4x2048xf32>
    tpu.vector_store %arg12[%c24_85, %c0_86], %79 {strides = array<i32>} : memref<36x2560xf32, #tpu.memory_space<vmem>>, vector<4x2048xf32>,
    %c0_87 = arith.constant 0 : index
    %c512_88 = arith.constant 512 : index
    %81 = vector.load %arg11[%c0_87, %c512_88] : memref<4x2560xf32, #tpu.memory_space<vmem>>, vector<4x2048xf32>
    %c28_89 = arith.constant 28 : index
    %c0_90 = arith.constant 0 : index
    %82 = vector.load %arg12[%c28_89, %c0_90] : memref<36x2560xf32, #tpu.memory_space<vmem>>, vector<4x2048xf32>
    tpu.vector_store %arg12[%c28_89, %c0_90], %81 {strides = array<i32>} : memref<36x2560xf32, #tpu.memory_space<vmem>>, vector<4x2048xf32>,
    %c0_91 = arith.constant 0 : index
    %c512_92 = arith.constant 512 : index
    %83 = vector.load %arg11[%c0_91, %c512_92] : memref<4x2560xf32, #tpu.memory_space<vmem>>, vector<4x2048xf32>
    %c2046_i32_93 = arith.constant 2046 : i32
    %84 = tpu.dynamic_rotate %83 by %c2046_i32_93 dim 1 : vector<4x2048xf32>, i32 -> vector<4x2048xf32>
    %c32_94 = arith.constant 32 : index
    %c0_95 = arith.constant 0 : index
    %85 = vector.load %arg12[%c32_94, %c0_95] : memref<36x2560xf32, #tpu.memory_space<vmem>>, vector<4x2048xf32>
    tpu.vector_store %arg12[%c32_94, %c0_95], %84 {strides = array<i32>} : memref<36x2560xf32, #tpu.memory_space<vmem>>, vector<4x2048xf32>,
    %c0_96 = arith.constant 0 : index
    %c0_97 = arith.constant 0 : index
    %86 = vector.load %arg5[%c0_96, %c0_97] : memref<4x36xf32, #tpu.memory_space<vmem>>, vector<4x36xf32>
    %c0_98 = arith.constant 0 : index
    %c0_99 = arith.constant 0 : index
    %87 = vector.load %arg12[%c0_98, %c0_99] : memref<36x2560xf32, #tpu.memory_space<vmem>>, vector<36x2048xf32>
    %cst_100 = arith.constant dense<0.000000e+00> : vector<4x2048xf32>
    %88 = tpu.matmul %86, %87, %cst_100 {dimension_numbers = #tpu.dot_dimension_numbers<[1], [0], [0], [1], [0, 0, 1, 1], [], []>} : vector<4x36xf32>, vector<36x2048xf32>, vector<4x2048xf32> -> vector<4x2048xf32>
    %89 = arith.index_cast %0 : i32 to index
    %c0_101 = arith.constant 0 : index
    %c512_102 = arith.constant 512 : index
    %90 = vector.load %arg9[%89, %c0_101, %c512_102] : memref<2x4x3072xf32, #tpu.memory_space<vmem>>, vector<1x4x2048xf32>
    %91 = vector.shape_cast %90 : vector<1x4x2048xf32> to vector<4x2048xf32>
    %c0_103 = arith.constant 0 : index
    %c0_104 = arith.constant 0 : index
    %92 = vector.load %arg6[%c0_103, %c0_104] : memref<4x1xf32, #tpu.memory_space<vmem>>, vector<4x1xf32>
    %93 = vector.broadcast %92 : vector<4x1xf32> to vector<4x2048xf32>
    %94 = arith.addf %88, %93 : vector<4x2048xf32>
    %95 = arith.addf %94, %91 : vector<4x2048xf32>
    %c0_105 = arith.constant 0 : index
    %c0_106 = arith.constant 0 : index
    %c0_107 = arith.constant 0 : index
    %96 = vector.load %arg8[%c0_105, %c0_106, %c0_107] : memref<1x4x2048xf32, #tpu.memory_space<vmem>>, vector<1x4x2048xf32>
    %97 = vector.shape_cast %96 : vector<1x4x2048xf32> to vector<4x2048xf32>
    %98 = vector.shape_cast %95 : vector<4x2048xf32> to vector<1x4x2048xf32>
    tpu.vector_store %arg8[%c0_105, %c0_106, %c0_107], %98 {strides = array<i32>} : memref<1x4x2048xf32, #tpu.memory_space<vmem>>, vector<1x4x2048xf32>,
    return
  }
  func.func @transform_1(%arg0: i32, %arg1: i32) -> (i32, i32) {
    %c0_i32 = arith.constant 0 : i32
    %c0_i32_0 = arith.constant 0 : i32
    %c0_i32_1 = arith.constant 0 : i32
    return %c0_i32, %c0_i32_0 : i32, i32
  }
  func.func @transform_2(%arg0: i32, %arg1: i32) -> (i32, i32) {
    %c0_i32 = arith.constant 0 : i32
    %c0_i32_0 = arith.constant 0 : i32
    %c0_i32_1 = arith.constant 0 : i32
    return %c0_i32, %c0_i32_0 : i32, i32
  }
  func.func @transform_3(%arg0: i32, %arg1: i32) -> (i32, i32) {
    %c0_i32 = arith.constant 0 : i32
    %c0_i32_0 = arith.constant 0 : i32
    %c0_i32_1 = arith.constant 0 : i32
    return %c0_i32, %c0_i32_0 : i32, i32
  }
  func.func @transform_4(%arg0: i32, %arg1: i32) -> (i32, i32) {
    %c0_i32 = arith.constant 0 : i32
    %c0_i32_0 = arith.constant 0 : i32
    %c0_i32_1 = arith.constant 0 : i32
    return %c0_i32, %c0_i32_0 : i32, i32
  }
  func.func @transform_5(%arg0: i32, %arg1: i32) -> (i32, i32) {
    %c0_i32 = arith.constant 0 : i32
    %c0_i32_0 = arith.constant 0 : i32
    %c0_i32_1 = arith.constant 0 : i32
    return %c0_i32, %c0_i32_0 : i32, i32
  }
  func.func @transform_6(%arg0: i32, %arg1: i32) -> (i32, i32, i32) {
    %c0_i32 = arith.constant 0 : i32
    %c0_i32_0 = arith.constant 0 : i32
    return %arg0, %c0_i32, %arg1 : i32, i32, i32
  }
}

</mosaic_0001>

<llo_original>
// kernel: drb_forward.1
$region0: #{drb_forward.1}
  #allocation0 [shape = 'u32[]', space=smem, size = 0x4, offset = 0x4, fixed_abs, tag = 'smem constant byte address 0x4 - core index']
  #allocation1 [shape = 'u32[144,128]{1,0:T(1,128)}', space=vmem, size = 0x12000, scoped, tag = 'internal scratch']
  #allocation2 [shape = 'f32[2,4,3072]{2,1,0:T(4,128)}', space=vmem, size = 0x18000, scoped, tag = 'scratch operand']
  #allocation3 [shape = 'f32[4,3072]{1,0:T(4,128)}', space=vmem, size = 0xc000, scoped, tag = 'scratch operand']
  #allocation4 [shape = 'f32[4,2560]{1,0:T(4,128)}', space=vmem, size = 0xa000, scoped, tag = 'scratch operand']
  #allocation5 [shape = 'f32[36,2560]{1,0:T(8,128)}', space=vmem, size = 0x64000, scoped, tag = 'scratch operand']
  #allocation6 [shape = 's32[2]{0}', space=sflag, size = 0x8, scoped, tag = 'scratch operand']
  #allocation7 [shape = 's32[]', space=sflag, size = 0x4, offset = 0, fixed_abs, tag = 'sflag constant byte address 0x0 - dummy sync flag']
  #allocation8 [shape = 's32[]', space=sflag, size = 0x4, offset = 0, fixed_abs, tag = 'sflag constant byte address 0x0 - dummy sync flag']
  %s0 = inlined_call_operand.vmem [shape: f32[2,4,3072], index: 0, kind: input, shape index: {}]
  %s1 = inlined_call_operand.vmem [shape: f32[4,36], index: 1, kind: input, shape index: {}]
  %s2 = inlined_call_operand.vmem [shape: f32[4,1], index: 2, kind: input, shape index: {}]
  %s3 = inlined_call_operand.vmem [shape: f32[4,36], index: 3, kind: input, shape index: {}]
  %s4 = inlined_call_operand.vmem [shape: f32[4,1], index: 4, kind: input, shape index: {}]
  %s5 = inlined_call_operand.vmem [shape: f32[1,2560], index: 5, kind: input, shape index: {}]
  %s6 = inlined_call_operand.vmem [shape: f32[2,4,2048], index: 6, kind: output, shape index: {}]
  %s7 = sld [smem:[#allocation0]]
  $region133: #{drb_forward.1} parent=0
    _
  %s9 = ssub.s32 1, %s7
  %s10 = scalar_select 0, %s9, %s7
  loop: start=0, step=1, limit=4
  $region2: #{drb_forward.1} parent=0 // loop_pre_header
    _
  $region3: #{drb_forward.1} parent=0 // loop_header
    %s12 = sphi 0, %s16
    %p13 = scmp.ge.s32.totalorder %s12, 4
    %s19 = sphi 0, %s31
    %s20 = sphi 0, %s27
    %s21 = sphi 0, %s19
    %s22 = sphi 0, %s20
    %s23 = sphi 0, %s21
    %s24 = sphi 0, %s22
    %s32 = sphi 0, %s32
    %s34 = sphi 0, %s32
    %s35 = sphi 0, %s34
    %s49 = sphi 0, %s35
    %s53 = sphi 0, %s53
    %s55 = sphi 0, %s53
    %s56 = sphi 0, %s55
    %s70 = sphi 0, %s56
    %s74 = sphi 0, %s74
    %s76 = sphi 0, %s74
    %s77 = sphi 0, %s76
    %s91 = sphi 0, %s77
    %s95 = sphi 0, %s95
    %s97 = sphi 0, %s95
    %s98 = sphi 0, %s97
    %s112 = sphi 0, %s98
    %s116 = sphi 0, %s116
    %s118 = sphi 0, %s116
    %s119 = sphi 0, %s118
    %s133 = sphi 0, %s119
    %s141 = sphi 0, %s143
    %s144 = sphi 0, %s141
    %s145 = sphi 0, %s144
    %s161 = sphi 0, %s145
  $region4: #{drb_forward.1} parent=0 // loop_header_branch
    %15 = sbr.rel (%p13) target = $region8
  $region5: #{drb_forward.1} parent=0 // loop_body
    %s17 = ssub.s32 %s12, 1
    %s18 = ssub.s32 %s12, 2
    %s25 = sadd.s32 1, %s20
    %p26 = scmp.ge.s32.totalorder %s25, 1
    %s27 = scalar_select %p26, 0, %s25
    %s28 = sadd.s32 1, %s19
    %s29 = scalar_select %p26, %s28, %s19
    %p30 = scmp.ge.s32.totalorder %s29, 2
    %s31 = scalar_select %p30, 0, %s29
    %s33 = sadd.s32 %s32, 1
    %p36 = scmp.eq.s32.totalorder %s12, 1
    %p37 = scmp.ne.s32.totalorder %s32, %s34
    %p38 = scmp.eq.s32.totalorder %s12, 0
    %p39 = por %p37, %p38
    %p40 = scmp.ne.s32.totalorder %s32, %s34
    %p41 = scmp.eq.s32.totalorder %s17, 1
    %p42 = por %p40, %p41
    %p43 = scmp.ne.s32.totalorder %s34, %s35
    %p44 = scmp.eq.s32.totalorder %s17, 0
    %p45 = por %p43, %p44
    %p46 = scmp.ne.s32.totalorder %s34, %s35
    %p47 = scmp.eq.s32.totalorder %s18, 1
    %p48 = por %p46, %p47
    %p50 = scmp.ne.s32.totalorder %s35, %s49
    %p51 = scmp.eq.s32.totalorder %s18, 0
    %p52 = por %p50, %p51
    %s54 = sadd.s32 %s53, 1
    %p57 = scmp.eq.s32.totalorder %s12, 1
    %p58 = scmp.ne.s32.totalorder %s53, %s55
    %p59 = scmp.eq.s32.totalorder %s12, 0
    %p60 = por %p58, %p59
    %p61 = scmp.ne.s32.totalorder %s53, %s55
    %p62 = scmp.eq.s32.totalorder %s17, 1
    %p63 = por %p61, %p62
    %p64 = scmp.ne.s32.totalorder %s55, %s56
    %p65 = scmp.eq.s32.totalorder %s17, 0
    %p66 = por %p64, %p65
    %p67 = scmp.ne.s32.totalorder %s55, %s56
    %p68 = scmp.eq.s32.totalorder %s18, 1
    %p69 = por %p67, %p68
    %p71 = scmp.ne.s32.totalorder %s56, %s70
    %p72 = scmp.eq.s32.totalorder %s18, 0
    %p73 = por %p71, %p72
    %s75 = sadd.s32 %s74, 1
    %p78 = scmp.eq.s32.totalorder %s12, 1
    %p79 = scmp.ne.s32.totalorder %s74, %s76
    %p80 = scmp.eq.s32.totalorder %s12, 0
    %p81 = por %p79, %p80
    %p82 = scmp.ne.s32.totalorder %s74, %s76
    %p83 = scmp.eq.s32.totalorder %s17, 1
    %p84 = por %p82, %p83
    %p85 = scmp.ne.s32.totalorder %s76, %s77
    %p86 = scmp.eq.s32.totalorder %s17, 0
    %p87 = por %p85, %p86
    %p88 = scmp.ne.s32.totalorder %s76, %s77
    %p89 = scmp.eq.s32.totalorder %s18, 1
    %p90 = por %p88, %p89
    %p92 = scmp.ne.s32.totalorder %s77, %s91
    %p93 = scmp.eq.s32.totalorder %s18, 0
    %p94 = por %p92, %p93
    %s96 = sadd.s32 %s95, 1
    %p99 = scmp.eq.s32.totalorder %s12, 1
    %p100 = scmp.ne.s32.totalorder %s95, %s97
    %p101 = scmp.eq.s32.totalorder %s12, 0
    %p102 = por %p100, %p101
    %p103 = scmp.ne.s32.totalorder %s95, %s97
    %p104 = scmp.eq.s32.totalorder %s17, 1
    %p105 = por %p103, %p104
    %p106 = scmp.ne.s32.totalorder %s97, %s98
    %p107 = scmp.eq.s32.totalorder %s17, 0
    %p108 = por %p106, %p107
    %p109 = scmp.ne.s32.totalorder %s97, %s98
    %p110 = scmp.eq.s32.totalorder %s18, 1
    %p111 = por %p109, %p110
    %p113 = scmp.ne.s32.totalorder %s98, %s112
    %p114 = scmp.eq.s32.totalorder %s18, 0
    %p115 = por %p113, %p114
    %s117 = sadd.s32 %s116, 1
    %p120 = scmp.eq.s32.totalorder %s12, 1
    %p121 = scmp.ne.s32.totalorder %s116, %s118
    %p122 = scmp.eq.s32.totalorder %s12, 0
    %p123 = por %p121, %p122
    %p124 = scmp.ne.s32.totalorder %s116, %s118
    %p125 = scmp.eq.s32.totalorder %s17, 1
    %p126 = por %p124, %p125
    %p127 = scmp.ne.s32.totalorder %s118, %s119
    %p128 = scmp.eq.s32.totalorder %s17, 0
    %p129 = por %p127, %p128
    %p130 = scmp.ne.s32.totalorder %s118, %s119
    %p131 = scmp.eq.s32.totalorder %s18, 1
    %p132 = por %p130, %p131
    %p134 = scmp.ne.s32.totalorder %s119, %s133
    %p135 = scmp.eq.s32.totalorder %s18, 0
    %p136 = por %p134, %p135
    %s137 = ssub.s32 %s19, %s31
    %s138 = ssub.s32 %s20, %s27
    %s139 = sor.u32 %s137, %s138
    %p140 = scmp.eq.s32.totalorder %s139, 0
    %s142 = sadd.s32 %s141, 1
    %s143 = scalar_select %p140, %s141, %s142
    %p146 = pneg %p140
    %p147 = scmp.eq.s32.totalorder %s12, 1
    %p148 = por %p146, %p147
    %p149 = scmp.ne.s32.totalorder %s141, %s144
    %p150 = scmp.eq.s32.totalorder %s12, 0
    %p151 = por %p149, %p150
    %p152 = scmp.ne.s32.totalorder %s141, %s144
    %p153 = scmp.eq.s32.totalorder %s17, 1
    %p154 = por %p152, %p153
    %p155 = scmp.ne.s32.totalorder %s144, %s145
    %p156 = scmp.eq.s32.totalorder %s17, 0
    %p157 = por %p155, %p156
    %p158 = scmp.ne.s32.totalorder %s144, %s145
    %p159 = scmp.eq.s32.totalorder %s18, 1
    %p160 = por %p158, %p159
    %p162 = scmp.ne.s32.totalorder %s145, %s161
    %p163 = scmp.eq.s32.totalorder %s18, 0
    %p164 = por %p162, %p163
    %p165 = scmp.le.s32.totalorder 1, %s12
    %p166 = scmp.lt.s32.totalorder %s12, 3
    %p167 = pnand %p165, %p166
    %p168 = pneg %p167
    // Predicated region
    $region9: #{drb_forward.1} parent=5 // pred_check
      _
    $region10: #{drb_forward.1} parent=5 // pred_check_branch
      %170 = sbr.rel (%p167) target = $region12
    $region11: #{drb_forward.1} parent=5 // pred_region
      %s171 = ssub.s32 %s12, 1
      // Predicated region
      $region13: #{drb_forward.1} parent=11 // pred_check
        %p172 = pneg %p45
      $region14: #{drb_forward.1} parent=11 // pred_check_branch
        %174 = sbr.rel (%p172) target = $region16
      $region15: #{drb_forward.1} parent=11 // pred_region
        _
      $region16: #{drb_forward.1} parent=11 // pred_fallthru
        _
      // Predicated region
      $region17: #{drb_forward.1} parent=11 // pred_check
        %p175 = pneg %p66
      $region18: #{drb_forward.1} parent=11 // pred_check_branch
        %177 = sbr.rel (%p175) target = $region20
      $region19: #{drb_forward.1} parent=11 // pred_region
        _
      $region20: #{drb_forward.1} parent=11 // pred_fallthru
        _
      // Predicated region
      $region21: #{drb_forward.1} parent=11 // pred_check
        %p178 = pneg %p87
      $region22: #{drb_forward.1} parent=11 // pred_check_branch
        %180 = sbr.rel (%p178) target = $region24
      $region23: #{drb_forward.1} parent=11 // pred_region
        _
      $region24: #{drb_forward.1} parent=11 // pred_fallthru
        _
      // Predicated region
      $region25: #{drb_forward.1} parent=11 // pred_check
        %p181 = pneg %p108
      $region26: #{drb_forward.1} parent=11 // pred_check_branch
        %183 = sbr.rel (%p181) target = $region28
      $region27: #{drb_forward.1} parent=11 // pred_region
        _
      $region28: #{drb_forward.1} parent=11 // pred_fallthru
        _
      // Predicated region
      $region29: #{drb_forward.1} parent=11 // pred_check
        %p184 = pneg %p129
      $region30: #{drb_forward.1} parent=11 // pred_check_branch
        %186 = sbr.rel (%p184) target = $region32
      $region31: #{drb_forward.1} parent=11 // pred_region
        _
      $region32: #{drb_forward.1} parent=11 // pred_fallthru
        _
    $region12: #{drb_forward.1} parent=5 // pred_fallthru
      _
    %p187 = scmp.lt.s32.totalorder %s12, 2
    // Predicated region
    $region33: #{drb_forward.1} parent=5 // pred_check
      %p188 = pneg %p187
    $region34: #{drb_forward.1} parent=5 // pred_check_branch
      %190 = sbr.rel (%p188) target = $region36
    $region35: #{drb_forward.1} parent=5 // pred_region
      _
    $region36: #{drb_forward.1} parent=5 // pred_fallthru
      _
    %p191 = scmp.le.s32.totalorder 1, %s12
    %p192 = scmp.lt.s32.totalorder %s12, 3
    %p193 = pnand %p191, %p192
    %p194 = pneg %p193
    // Predicated region
    $region37: #{drb_forward.1} parent=5 // pred_check
      _
    $region38: #{drb_forward.1} parent=5 // pred_check_branch
      %196 = sbr.rel (%p193) target = $region40
    $region39: #{drb_forward.1} parent=5 // pred_region
      %s197 = ssub.s32 %s12, 1
      %p198 = pneg %p45
      %p199 = pneg %p42
      %p200 = pneg %p66
      %p201 = pneg %p63
      %p202 = pneg %p87
      %p203 = pneg %p84
      %p204 = pneg %p108
      %p205 = pneg %p105
      %p206 = pneg %p129
      %p207 = pneg %p126
      %p208 = pneg %p157
      %p209 = pneg %p154
      %s210 = smul.u32 16, %s22
      %p211 = scmp.lt.s32.totalorder %s21, 1
      %s212 = scalar_select %p211, %s21, 1
      %p213 = scmp.lt.s32.totalorder %s210, 15
      %s214 = scalar_select %p213, %s210, 15
      %s215 = smul.addr %s212, 16
      %s216 = sadd.s32 %s214, %s215
      %s217 = smul.addr %s216, 4
      %s218 = scalar_lea.vmem %s6, %s217
      %s219 = smul.u32 16, %s22
      %p220 = scmp.lt.s32.totalorder %s21, 1
      %s221 = scalar_select %p220, %s21, 1
      %p222 = scmp.lt.s32.totalorder %s219, 15
      %s223 = scalar_select %p222, %s219, 15
      %s224 = smul.addr %s221, 16
      %s225 = sadd.s32 %s223, %s224
      %s226 = smul.addr %s225, 4
      %s227 = scalar_lea.vmem %s6, %s226
      %s228 = smul.u32 16, %s22
      %p229 = scmp.lt.s32.totalorder %s22, 0
      %s230 = ssub.s32 0, %s22
      %s231 = scalar_select %p229, %s230, %s22
      %s232 = sand.u32 %s231, 1
      %s233 = ssub.s32 0, %s232
      %s234 = scalar_select %p229, %s233, %s232
      %p235 = scmp.eq.s32.totalorder %s22, 0
      // Predicated region
      $region41: #{drb_forward.1} parent=39 // pred_check
        %p236 = pneg %p235
      $region42: #{drb_forward.1} parent=39 // pred_check_branch
        %238 = sbr.rel (%p236) target = $region44
      $region43: #{drb_forward.1} parent=39 // pred_region
        %s239 = smul.u32 %s21, 24
        %s240 = sadd.s32 0, %s239
        %s241 = smul.addr %s240, 4
        %s242 = scalar_lea.vmem %s0, %s241
        %p244 = scmp.lt.u32.totalorder 96, 8
        %p245 = pneg %p244
        // Predicated region
        $region45: #{drb_forward.1} parent=43 // pred_check
          _
        $region46: #{drb_forward.1} parent=43 // pred_check_branch
          %247 = sbr.rel (%p244) target = $region48
        $region47: #{drb_forward.1} parent=43 // pred_region
          %s262 = sand.u32 96, 7
          %p263 = scmp.eq.s32.totalorder %s262, 0
          // Predicated region
          $region60: #{drb_forward.1} parent=47 // pred_check
            %p264 = pneg %p263
          $region61: #{drb_forward.1} parent=47 // pred_check_branch
            %266 = sbr.rel (%p264) target = $region63
          $region62: #{drb_forward.1} parent=47 // pred_region
            loop: start=0, step=1, limit=1
            $region64: #{drb_forward.1} parent=62 // loop_pre_header
              _
            $region65: #{drb_forward.1} parent=62 // loop_header
              %s268 = sphi 0, %s272
              %p269 = scmp.ge.s32.totalorder %s268, 1
              %s273 = sphi %s242, %s242
              %s274 = sphi [#allocation2], [#allocation2]
            $region66: #{drb_forward.1} parent=62 // loop_header_branch
              %271 = sbr.rel (%p269) target = $region70
            $region67: #{drb_forward.1} parent=62 // loop_body
              %v275 = vld [vmem:[%s273] sm:$0xff]
              %276 = vst [vmem:[%s274] sm:$0xff] %v275
              %v277 = vld [vmem:[%s273 + $0x8] sm:$0xff]
              %278 = vst [vmem:[%s274 + $0x8] sm:$0xff] %v277
              %v279 = vld [vmem:[%s273 + $0x10] sm:$0xff]
              %280 = vst [vmem:[%s274 + $0x10] sm:$0xff] %v279
              %v281 = vld [vmem:[%s273 + $0x18] sm:$0xff]
              %282 = vst [vmem:[%s274 + $0x18] sm:$0xff] %v281
              %v283 = vld [vmem:[%s273 + $0x20] sm:$0xff]
              %284 = vst [vmem:[%s274 + $0x20] sm:$0xff] %v283
              %v285 = vld [vmem:[%s273 + $0x28] sm:$0xff]
              %286 = vst [vmem:[%s274 + $0x28] sm:$0xff] %v285
              %v287 = vld [vmem:[%s273 + $0x30] sm:$0xff]
              %288 = vst [vmem:[%s274 + $0x30] sm:$0xff] %v287
              %v289 = vld [vmem:[%s273 + $0x38] sm:$0xff]
              %290 = vst [vmem:[%s274 + $0x38] sm:$0xff] %v289
              %v291 = vld [vmem:[%s273 + $0x40] sm:$0xff]
              %292 = vst [vmem:[%s274 + $0x40] sm:$0xff] %v291
              %v293 = vld [vmem:[%s273 + $0x48] sm:$0xff]
              %294 = vst [vmem:[%s274 + $0x48] sm:$0xff] %v293
              %v295 = vld [vmem:[%s273 + $0x50] sm:$0xff]
              %296 = vst [vmem:[%s274 + $0x50] sm:$0xff] %v295
              %v297 = vld [vmem:[%s273 + $0x58] sm:$0xff]
              %298 = vst [vmem:[%s274 + $0x58] sm:$0xff] %v297
            $region68: #{drb_forward.1} parent=62 // loop_footer
              %s272 = sadd.s32 1, %s268
            $region69: #{drb_forward.1} parent=62 // loop_footer_branch
              %267 = sbr.rel target = $region65
            $region70: #{drb_forward.1} parent=62 // loop_exit
              _
          $region63: #{drb_forward.1} parent=47 // pred_fallthru
            _
          %p299 = pneg %p263
          // Predicated region
          $region71: #{drb_forward.1} parent=47 // pred_check
            _
          $region72: #{drb_forward.1} parent=47 // pred_check_branch
            %301 = sbr.rel (%p263) target = $region74
          $region73: #{drb_forward.1} parent=47 // pred_region
            %s302 = sand.u32 96, 7
          $region74: #{drb_forward.1} parent=47 // pred_fallthru
            _
        $region48: #{drb_forward.1} parent=43 // pred_fallthru
          _
        // Predicated region
        $region49: #{drb_forward.1} parent=43 // pred_check
          %p248 = pneg %p244
        $region50: #{drb_forward.1} parent=43 // pred_check_branch
          %250 = sbr.rel (%p248) target = $region52
        $region51: #{drb_forward.1} parent=43 // pred_region
          %s251 = sshllo.u32 0, 96
          loop: start=0, step=1, limit=1
          $region53: #{drb_forward.1} parent=51 // loop_pre_header
            _
          $region54: #{drb_forward.1} parent=51 // loop_header
            %s253 = sphi 0, %s257
            %p254 = scmp.ge.s32.totalorder %s253, 1
            %s258 = sphi %s242, %s242
            %s259 = sphi [#allocation2], [#allocation2]
          $region55: #{drb_forward.1} parent=51 // loop_header_branch
            %256 = sbr.rel (%p254) target = $region59
          $region56: #{drb_forward.1} parent=51 // loop_body
            %v260 = vld [vmem:[%s258] sm:%s251]
            %261 = vst [vmem:[%s259] sm:%s251] %v260
          $region57: #{drb_forward.1} parent=51 // loop_footer
            %s257 = sadd.s32 1, %s253
          $region58: #{drb_forward.1} parent=51 // loop_footer_branch
            %252 = sbr.rel target = $region54
          $region59: #{drb_forward.1} parent=51 // loop_exit
            _
        $region52: #{drb_forward.1} parent=43 // pred_fallthru
          _
        // Predicated region
        $region75: #{drb_forward.1} parent=43 // pred_check
          _
        $region76: #{drb_forward.1} parent=43 // pred_check_branch
          %305 = sbr.rel (0) target = $region78
        $region77: #{drb_forward.1} parent=43 // pred_region
          %306 = vsyncadd [#allocation6], 1536
        $region78: #{drb_forward.1} parent=43 // pred_fallthru
          _
      $region44: #{drb_forward.1} parent=39 // pred_fallthru
        _
      %s307 = smul.u32 %s22, 2048
      %s308 = smul.u32 %s234, 24
      %s309 = smul.addr %s308, 4
      %s310 = scalar_lea.vmem [#allocation2], %s309
      %s311 = scalar_lea.sflag [#allocation6], %s234
      %s312 = smul.u32 4, 1
      %s313 = smul.u32 %s312, 24
      %s314 = sshll.u32 %s313, 4
      %315 = dma.done %s311, %s314
      %s316 = sadd.s32 %s22, 1
      %p317 = scmp.lt.s32.totalorder %s316, 1
      // Predicated region
      $region79: #{drb_forward.1} parent=39 // pred_check
        %p318 = pneg %p317
      $region80: #{drb_forward.1} parent=39 // pred_check_branch
        %320 = sbr.rel (%p318) target = $region82
      $region81: #{drb_forward.1} parent=39 // pred_region
        %s321 = ssub.s32 1, %s234
        %s322 = smul.u32 %s316, 2048
        %s323 = sshra.s32 %s322, 7
        %s324 = sand.u32 %s322, 127
        %s325 = smul.u32 %s21, 24
        %s326 = sadd.s32 %s323, %s325
        %s327 = smul.addr %s326, 4
        %s328 = scalar_lea.vmem %s0, %s327
        %s329 = smul.u32 %s321, 24
        %s330 = smul.addr %s329, 4
        %s331 = scalar_lea.vmem [#allocation2], %s330
        %s332 = scalar_lea.sflag [#allocation6], %s321
        %p334 = scmp.lt.u32.totalorder 96, 8
        %p335 = pneg %p334
        // Predicated region
        $region83: #{drb_forward.1} parent=81 // pred_check
          _
        $region84: #{drb_forward.1} parent=81 // pred_check_branch
          %337 = sbr.rel (%p334) target = $region86
        $region85: #{drb_forward.1} parent=81 // pred_region
          %s352 = sand.u32 96, 7
          %p353 = scmp.eq.s32.totalorder %s352, 0
          // Predicated region
          $region98: #{drb_forward.1} parent=85 // pred_check
            %p354 = pneg %p353
          $region99: #{drb_forward.1} parent=85 // pred_check_branch
            %356 = sbr.rel (%p354) target = $region101
          $region100: #{drb_forward.1} parent=85 // pred_region
            loop: start=0, step=1, limit=1
            $region102: #{drb_forward.1} parent=100 // loop_pre_header
              _
            $region103: #{drb_forward.1} parent=100 // loop_header
              %s358 = sphi 0, %s362
              %p359 = scmp.ge.s32.totalorder %s358, 1
              %s363 = sphi %s328, %s328
              %s364 = sphi %s331, %s331
            $region104: #{drb_forward.1} parent=100 // loop_header_branch
              %361 = sbr.rel (%p359) target = $region108
            $region105: #{drb_forward.1} parent=100 // loop_body
              %v365 = vld [vmem:[%s363] sm:$0xff]
              %366 = vst [vmem:[%s364] sm:$0xff] %v365
              %v367 = vld [vmem:[%s363 + $0x8] sm:$0xff]
              %368 = vst [vmem:[%s364 + $0x8] sm:$0xff] %v367
              %v369 = vld [vmem:[%s363 + $0x10] sm:$0xff]
              %370 = vst [vmem:[%s364 + $0x10] sm:$0xff] %v369
              %v371 = vld [vmem:[%s363 + $0x18] sm:$0xff]
              %372 = vst [vmem:[%s364 + $0x18] sm:$0xff] %v371
              %v373 = vld [vmem:[%s363 + $0x20] sm:$0xff]
              %374 = vst [vmem:[%s364 + $0x20] sm:$0xff] %v373
              %v375 = vld [vmem:[%s363 + $0x28] sm:$0xff]
              %376 = vst [vmem:[%s364 + $0x28] sm:$0xff] %v375
              %v377 = vld [vmem:[%s363 + $0x30] sm:$0xff]
              %378 = vst [vmem:[%s364 + $0x30] sm:$0xff] %v377
              %v379 = vld [vmem:[%s363 + $0x38] sm:$0xff]
              %380 = vst [vmem:[%s364 + $0x38] sm:$0xff] %v379
              %v381 = vld [vmem:[%s363 + $0x40] sm:$0xff]
              %382 = vst [vmem:[%s364 + $0x40] sm:$0xff] %v381
              %v383 = vld [vmem:[%s363 + $0x48] sm:$0xff]
              %384 = vst [vmem:[%s364 + $0x48] sm:$0xff] %v383
              %v385 = vld [vmem:[%s363 + $0x50] sm:$0xff]
              %386 = vst [vmem:[%s364 + $0x50] sm:$0xff] %v385
              %v387 = vld [vmem:[%s363 + $0x58] sm:$0xff]
              %388 = vst [vmem:[%s364 + $0x58] sm:$0xff] %v387
            $region106: #{drb_forward.1} parent=100 // loop_footer
              %s362 = sadd.s32 1, %s358
            $region107: #{drb_forward.1} parent=100 // loop_footer_branch
              %357 = sbr.rel target = $region103
            $region108: #{drb_forward.1} parent=100 // loop_exit
              _
          $region101: #{drb_forward.1} parent=85 // pred_fallthru
            _
          %p389 = pneg %p353
          // Predicated region
          $region109: #{drb_forward.1} parent=85 // pred_check
            _
          $region110: #{drb_forward.1} parent=85 // pred_check_branch
            %391 = sbr.rel (%p353) target = $region112
          $region111: #{drb_forward.1} parent=85 // pred_region
            %s392 = sand.u32 96, 7
          $region112: #{drb_forward.1} parent=85 // pred_fallthru
            _
        $region86: #{drb_forward.1} parent=81 // pred_fallthru
          _
        // Predicated region
        $region87: #{drb_forward.1} parent=81 // pred_check
          %p338 = pneg %p334
        $region88: #{drb_forward.1} parent=81 // pred_check_branch
          %340 = sbr.rel (%p338) target = $region90
        $region89: #{drb_forward.1} parent=81 // pred_region
          %s341 = sshllo.u32 0, 96
          loop: start=0, step=1, limit=1
          $region91: #{drb_forward.1} parent=89 // loop_pre_header
            _
          $region92: #{drb_forward.1} parent=89 // loop_header
            %s343 = sphi 0, %s347
            %p344 = scmp.ge.s32.totalorder %s343, 1
            %s348 = sphi %s328, %s328
            %s349 = sphi %s331, %s331
          $region93: #{drb_forward.1} parent=89 // loop_header_branch
            %346 = sbr.rel (%p344) target = $region97
          $region94: #{drb_forward.1} parent=89 // loop_body
            %v350 = vld [vmem:[%s348] sm:%s341]
            %351 = vst [vmem:[%s349] sm:%s341] %v350
          $region95: #{drb_forward.1} parent=89 // loop_footer
            %s347 = sadd.s32 1, %s343
          $region96: #{drb_forward.1} parent=89 // loop_footer_branch
            %342 = sbr.rel target = $region92
          $region97: #{drb_forward.1} parent=89 // loop_exit
            _
        $region90: #{drb_forward.1} parent=81 // pred_fallthru
          _
        // Predicated region
        $region113: #{drb_forward.1} parent=81 // pred_check
          _
        $region114: #{drb_forward.1} parent=81 // pred_check_branch
          %395 = sbr.rel (0) target = $region116
        $region115: #{drb_forward.1} parent=81 // pred_region
          %396 = vsyncadd %s332, 1536
        $region116: #{drb_forward.1} parent=81 // pred_fallthru
          _
      $region82: #{drb_forward.1} parent=39 // pred_fallthru
        _
      %v397 = vld [vmem:[%s310] sm:$0xff]
      %v398 = vld [vmem:[%s310 + $0x8] sm:$0xff]
      %v399 = vld [vmem:[%s310 + $0x10] sm:$0xff]
      %v400 = vld [vmem:[%s310 + $0x18] sm:$0xff]
      %v401 = vld [vmem:[%s310 + $0x20] sm:$0xff]
      %v402 = vld [vmem:[%s310 + $0x28] sm:$0xff]
      %v403 = vld [vmem:[%s310 + $0x30] sm:$0xff]
      %v404 = vld [vmem:[%s310 + $0x38] sm:$0xff]
      %v405 = vld [vmem:[%s310 + $0x40] sm:$0xff]
      %v406 = vld [vmem:[%s310 + $0x48] sm:$0xff]
      %v407 = vld [vmem:[%s310 + $0x50] sm:$0xff]
      %v408 = vld [vmem:[%s310 + $0x58] sm:$0xff]
      %409 = vst [vmem:[#allocation3] sm:$0xff] %v397
      %410 = vst [vmem:[#allocation3 + $0x8] sm:$0xff] %v398
      %411 = vst [vmem:[#allocation3 + $0x10] sm:$0xff] %v399
      %412 = vst [vmem:[#allocation3 + $0x18] sm:$0xff] %v400
      %413 = vst [vmem:[#allocation3 + $0x20] sm:$0xff] %v401
      %414 = vst [vmem:[#allocation3 + $0x28] sm:$0xff] %v402
      %415 = vst [vmem:[#allocation3 + $0x30] sm:$0xff] %v403
      %416 = vst [vmem:[#allocation3 + $0x38] sm:$0xff] %v404
      %417 = vst [vmem:[#allocation3 + $0x40] sm:$0xff] %v405
      %418 = vst [vmem:[#allocation3 + $0x48] sm:$0xff] %v406
      %419 = vst [vmem:[#allocation3 + $0x50] sm:$0xff] %v407
      %420 = vst [vmem:[#allocation3 + $0x58] sm:$0xff] %v408
      %v421 = vld [vmem:[#allocation3] sm:$0xff]
      %v422 = vld [vmem:[#allocation3 + $0x8] sm:$0xff]
      %v423 = vld [vmem:[#allocation3 + $0x10] sm:$0xff]
      %v424 = vld [vmem:[#allocation3 + $0x18] sm:$0xff]
      %v425 = vld [vmem:[#allocation3 + $0x20] sm:$0xff]
      %v426 = vld [vmem:[#allocation3 + $0x28] sm:$0xff]
      %v427 = vld [vmem:[#allocation3 + $0x30] sm:$0xff]
      %v428 = vld [vmem:[#allocation3 + $0x38] sm:$0xff]
      %v429 = vld [vmem:[#allocation3 + $0x40] sm:$0xff]
      %v430 = vld [vmem:[#allocation3 + $0x48] sm:$0xff]
      %v441 = vcombine.high %v421, %v421
      %v442 = vcombine.high %v422, %v422
      %v443 = vcombine.high %v423, %v423
      %v444 = vcombine.high %v424, %v424
      %v445 = vcombine.high %v425, %v425
      %v446 = vcombine.high %v426, %v426
      %v447 = vcombine.high %v427, %v427
      %v448 = vcombine.high %v428, %v428
      %v449 = vcombine.high %v429, %v429
      %v450 = vcombine.high %v430, %v430
      %461 = vrot.lane.b32.xlu0 %v421, 2
      %v462 = vpop.permute.xlu0 %461
      %463 = vrot.lane.b32.xlu0 %v441, 2
      %v464 = vpop.permute.xlu0 %463
      %465 = vrot.lane.b32.xlu0 %v422, 2
      %v466 = vpop.permute.xlu0 %465
      %467 = vrot.lane.b32.xlu0 %v442, 2
      %v468 = vpop.permute.xlu0 %467
      %469 = vrot.lane.b32.xlu0 %v423, 2
      %v470 = vpop.permute.xlu0 %469
      %471 = vrot.lane.b32.xlu0 %v443, 2
      %v472 = vpop.permute.xlu0 %471
      %473 = vrot.lane.b32.xlu0 %v424, 2
      %v474 = vpop.permute.xlu0 %473
      %475 = vrot.lane.b32.xlu0 %v444, 2
      %v476 = vpop.permute.xlu0 %475
      %477 = vrot.lane.b32.xlu0 %v425, 2
      %v478 = vpop.permute.xlu0 %477
      %479 = vrot.lane.b32.xlu0 %v445, 2
      %v480 = vpop.permute.xlu0 %479
      %481 = vrot.lane.b32.xlu0 %v426, 2
      %v482 = vpop.permute.xlu0 %481
      %483 = vrot.lane.b32.xlu0 %v446, 2
      %v484 = vpop.permute.xlu0 %483
      %485 = vrot.lane.b32.xlu0 %v427, 2
      %v486 = vpop.permute.xlu0 %485
      %487 = vrot.lane.b32.xlu0 %v447, 2
      %v488 = vpop.permute.xlu0 %487
      %489 = vrot.lane.b32.xlu0 %v428, 2
      %v490 = vpop.permute.xlu0 %489
      %491 = vrot.lane.b32.xlu0 %v448, 2
      %v492 = vpop.permute.xlu0 %491
      %493 = vrot.lane.b32.xlu0 %v429, 2
      %v494 = vpop.permute.xlu0 %493
      %495 = vrot.lane.b32.xlu0 %v449, 2
      %v496 = vpop.permute.xlu0 %495
      %497 = vrot.lane.b32.xlu0 %v430, 2
      %v498 = vpop.permute.xlu0 %497
      %499 = vrot.lane.b32.xlu0 %v450, 2
      %v500 = vpop.permute.xlu0 %499
      %v501 = vlaneseq
      %v502 = vand.u32 %v501, 127
      %vm503 = vcmp.lt.s32.totalorder %v502, 2
      %v504 = vsel %vm503, %v498, %v500
      %v505 = vsel %vm503, %v496, %v498
      %v506 = vsel %vm503, %v494, %v496
      %v507 = vsel %vm503, %v492, %v494
      %v508 = vsel %vm503, %v490, %v492
      %v509 = vsel %vm503, %v488, %v490
      %v510 = vsel %vm503, %v486, %v488
      %v511 = vsel %vm503, %v484, %v486
      %v512 = vsel %vm503, %v482, %v484
      %v513 = vsel %vm503, %v480, %v482
      %v514 = vsel %vm503, %v478, %v480
      %v515 = vsel %vm503, %v476, %v478
      %v516 = vsel %vm503, %v474, %v476
      %v517 = vsel %vm503, %v472, %v474
      %v518 = vsel %vm503, %v470, %v472
      %v519 = vsel %vm503, %v468, %v470
      %v520 = vsel %vm503, %v466, %v468
      %v521 = vsel %vm503, %v464, %v466
      %v522 = vsel %vm503, %v462, %v464
      %v523 = vsel %vm503, %v500, %v462
      %524 = vst [vmem:[#allocation5] sm:$0xf] %v523
      %525 = vst [vmem:[#allocation5 + $0x8] sm:$0xf] %v522
      %526 = vst [vmem:[#allocation5 + $0x10] sm:$0xf] %v521
      %527 = vst [vmem:[#allocation5 + $0x18] sm:$0xf] %v520
      %528 = vst [vmem:[#allocation5 + $0x20] sm:$0xf] %v519
      %529 = vst [vmem:[#allocation5 + $0x28] sm:$0xf] %v518
      %530 = vst [vmem:[#allocation5 + $0x30] sm:$0xf] %v517
      %531 = vst [vmem:[#allocation5 + $0x38] sm:$0xf] %v516
      %532 = vst [vmem:[#allocation5 + $0x40] sm:$0xf] %v515
      %533 = vst [vmem:[#allocation5 + $0x48] sm:$0xf] %v514
      %534 = vst [vmem:[#allocation5 + $0x50] sm:$0xf] %v513
      %535 = vst [vmem:[#allocation5 + $0x58] sm:$0xf] %v512
      %536 = vst [vmem:[#allocation5 + $0x60] sm:$0xf] %v511
      %537 = vst [vmem:[#allocation5 + $0x68] sm:$0xf] %v510
      %538 = vst [vmem:[#allocation5 + $0x70] sm:$0xf] %v509
      %539 = vst [vmem:[#allocation5 + $0x78] sm:$0xf] %v508
      %540 = vst [vmem:[#allocation5 + $0x80] sm:$0xf] %v507
      %541 = vst [vmem:[#allocation5 + $0x88] sm:$0xf] %v506
      %542 = vst [vmem:[#allocation5 + $0x90] sm:$0xf] %v505
      %543 = vst [vmem:[#allocation5 + $0x98] sm:$0xf] %v504
      %v544 = vld [vmem:[#allocation3] sm:$0xff]
      %v545 = vld [vmem:[#allocation3 + $0x8] sm:$0xff]
      %v546 = vld [vmem:[#allocation3 + $0x10] sm:$0xff]
      %v547 = vld [vmem:[#allocation3 + $0x18] sm:$0xff]
      %v548 = vld [vmem:[#allocation3 + $0x20] sm:$0xff]
      %v549 = vld [vmem:[#allocation3 + $0x28] sm:$0xff]
      %v550 = vld [vmem:[#allocation3 + $0x30] sm:$0xff]
      %v551 = vld [vmem:[#allocation3 + $0x38] sm:$0xff]
      %v552 = vld [vmem:[#allocation3 + $0x40] sm:$0xff]
      %v553 = vld [vmem:[#allocation3 + $0x48] sm:$0xff]
      %v564 = vcombine.low %v544, %v544
      %v565 = vcombine.low %v545, %v545
      %v566 = vcombine.low %v546, %v546
      %v567 = vcombine.low %v547, %v547
      %v568 = vcombine.low %v548, %v548
      %v569 = vcombine.low %v549, %v549
      %v570 = vcombine.low %v550, %v550
      %v571 = vcombine.low %v551, %v551
      %v572 = vcombine.low %v552, %v552
      %v573 = vcombine.low %v553, %v553
      %584 = vst [vmem:[#allocation5] sm:$0xf0] %v564
      %585 = vst [vmem:[#allocation5 + $0x8] sm:$0xf0] %v544
      %586 = vst [vmem:[#allocation5 + $0x10] sm:$0xf0] %v565
      %587 = vst [vmem:[#allocation5 + $0x18] sm:$0xf0] %v545
      %588 = vst [vmem:[#allocation5 + $0x20] sm:$0xf0] %v566
      %589 = vst [vmem:[#allocation5 + $0x28] sm:$0xf0] %v546
      %590 = vst [vmem:[#allocation5 + $0x30] sm:$0xf0] %v567
      %591 = vst [vmem:[#allocation5 + $0x38] sm:$0xf0] %v547
      %592 = vst [vmem:[#allocation5 + $0x40] sm:$0xf0] %v568
      %593 = vst [vmem:[#allocation5 + $0x48] sm:$0xf0] %v548
      %594 = vst [vmem:[#allocation5 + $0x50] sm:$0xf0] %v569
      %595 = vst [vmem:[#allocation5 + $0x58] sm:$0xf0] %v549
      %596 = vst [vmem:[#allocation5 + $0x60] sm:$0xf0] %v570
      %597 = vst [vmem:[#allocation5 + $0x68] sm:$0xf0] %v550
      %598 = vst [vmem:[#allocation5 + $0x70] sm:$0xf0] %v571
      %599 = vst [vmem:[#allocation5 + $0x78] sm:$0xf0] %v551
      %600 = vst [vmem:[#allocation5 + $0x80] sm:$0xf0] %v572
      %601 = vst [vmem:[#allocation5 + $0x88] sm:$0xf0] %v552
      %602 = vst [vmem:[#allocation5 + $0x90] sm:$0xf0] %v573
      %603 = vst [vmem:[#allocation5 + $0x98] sm:$0xf0] %v553
      %v604 = vld [vmem:[#allocation3] sm:$0xff]
      %v605 = vld [vmem:[#allocation3 + $0x8] sm:$0xff]
      %v606 = vld [vmem:[#allocation3 + $0x10] sm:$0xff]
      %v607 = vld [vmem:[#allocation3 + $0x18] sm:$0xff]
      %v608 = vld [vmem:[#allocation3 + $0x20] sm:$0xff]
      %v609 = vld [vmem:[#allocation3 + $0x28] sm:$0xff]
      %v610 = vld [vmem:[#allocation3 + $0x30] sm:$0xff]
      %v611 = vld [vmem:[#allocation3 + $0x38] sm:$0xff]
      %v612 = vld [vmem:[#allocation3 + $0x40] sm:$0xff]
      %v613 = vld [vmem:[#allocation3 + $0x48] sm:$0xff]
      %v624 = vcombine.high %v604, %v604
      %v625 = vcombine.high %v605, %v605
      %v626 = vcombine.high %v606, %v606
      %v627 = vcombine.high %v607, %v607
      %v628 = vcombine.high %v608, %v608
      %v629 = vcombine.high %v609, %v609
      %v630 = vcombine.high %v610, %v610
      %v631 = vcombine.high %v611, %v611
      %v632 = vcombine.high %v612, %v612
      %v633 = vcombine.high %v613, %v613
      %644 = vrot.lane.b32.xlu0 %v604, 126
      %v645 = vpop.permute.xlu0 %644
      %646 = vrot.lane.b32.xlu0 %v624, 126
      %v647 = vpop.permute.xlu0 %646
      %648 = vrot.lane.b32.xlu0 %v605, 126
      %v649 = vpop.permute.xlu0 %648
      %650 = vrot.lane.b32.xlu0 %v625, 126
      %v651 = vpop.permute.xlu0 %650
      %652 = vrot.lane.b32.xlu0 %v606, 126
      %v653 = vpop.permute.xlu0 %652
      %654 = vrot.lane.b32.xlu0 %v626, 126
      %v655 = vpop.permute.xlu0 %654
      %656 = vrot.lane.b32.xlu0 %v607, 126
      %v657 = vpop.permute.xlu0 %656
      %658 = vrot.lane.b32.xlu0 %v627, 126
      %v659 = vpop.permute.xlu0 %658
      %660 = vrot.lane.b32.xlu0 %v608, 126
      %v661 = vpop.permute.xlu0 %660
      %662 = vrot.lane.b32.xlu0 %v628, 126
      %v663 = vpop.permute.xlu0 %662
      %664 = vrot.lane.b32.xlu0 %v609, 126
      %v665 = vpop.permute.xlu0 %664
      %666 = vrot.lane.b32.xlu0 %v629, 126
      %v667 = vpop.permute.xlu0 %666
      %668 = vrot.lane.b32.xlu0 %v610, 126
      %v669 = vpop.permute.xlu0 %668
      %670 = vrot.lane.b32.xlu0 %v630, 126
      %v671 = vpop.permute.xlu0 %670
      %672 = vrot.lane.b32.xlu0 %v611, 126
      %v673 = vpop.permute.xlu0 %672
      %674 = vrot.lane.b32.xlu0 %v631, 126
      %v675 = vpop.permute.xlu0 %674
      %676 = vrot.lane.b32.xlu0 %v612, 126
      %v677 = vpop.permute.xlu0 %676
      %678 = vrot.lane.b32.xlu0 %v632, 126
      %v679 = vpop.permute.xlu0 %678
      %680 = vrot.lane.b32.xlu0 %v613, 126
      %v681 = vpop.permute.xlu0 %680
      %682 = vrot.lane.b32.xlu0 %v633, 126
      %v683 = vpop.permute.xlu0 %682
      %vm684 = vcmp.lt.s32.totalorder %v502, 126
      %v685 = vsel %vm684, %v681, %v683
      %v686 = vsel %vm684, %v679, %v681
      %v687 = vsel %vm684, %v677, %v679
      %v688 = vsel %vm684, %v675, %v677
      %v689 = vsel %vm684, %v673, %v675
      %v690 = vsel %vm684, %v671, %v673
      %v691 = vsel %vm684, %v669, %v671
      %v692 = vsel %vm684, %v667, %v669
      %v693 = vsel %vm684, %v665, %v667
      %v694 = vsel %vm684, %v663, %v665
      %v695 = vsel %vm684, %v661, %v663
      %v696 = vsel %vm684, %v659, %v661
      %v697 = vsel %vm684, %v657, %v659
      %v698 = vsel %vm684, %v655, %v657
      %v699 = vsel %vm684, %v653, %v655
      %v700 = vsel %vm684, %v651, %v653
      %v701 = vsel %vm684, %v649, %v651
      %v702 = vsel %vm684, %v647, %v649
      %v703 = vsel %vm684, %v645, %v647
      %v704 = vsel %vm684, %v683, %v645
      %705 = vst [vmem:[#allocation5 + $0xa0] sm:$0xf] %v703
      %706 = vst [vmem:[#allocation5 + $0xa8] sm:$0xf] %v702
      %707 = vst [vmem:[#allocation5 + $0xb0] sm:$0xf] %v701
      %708 = vst [vmem:[#allocation5 + $0xb8] sm:$0xf] %v700
      %709 = vst [vmem:[#allocation5 + $0xc0] sm:$0xf] %v699
      %710 = vst [vmem:[#allocation5 + $0xc8] sm:$0xf] %v698
      %711 = vst [vmem:[#allocation5 + $0xd0] sm:$0xf] %v697
      %712 = vst [vmem:[#allocation5 + $0xd8] sm:$0xf] %v696
      %713 = vst [vmem:[#allocation5 + $0xe0] sm:$0xf] %v695
      %714 = vst [vmem:[#allocation5 + $0xe8] sm:$0xf] %v694
      %715 = vst [vmem:[#allocation5 + $0xf0] sm:$0xf] %v693
      %716 = vst [vmem:[#allocation5 + $0xf8] sm:$0xf] %v692
      %717 = vst [vmem:[#allocation5 + $0x100] sm:$0xf] %v691
      %718 = vst [vmem:[#allocation5 + $0x108] sm:$0xf] %v690
      %719 = vst [vmem:[#allocation5 + $0x110] sm:$0xf] %v689
      %720 = vst [vmem:[#allocation5 + $0x118] sm:$0xf] %v688
      %721 = vst [vmem:[#allocation5 + $0x120] sm:$0xf] %v687
      %722 = vst [vmem:[#allocation5 + $0x128] sm:$0xf] %v686
      %723 = vst [vmem:[#allocation5 + $0x130] sm:$0xf] %v685
      %724 = vst [vmem:[#allocation5 + $0x138] sm:$0xf] %v704
      %v725 = vld [vmem:[#allocation3 + $0x8] sm:$0xff]
      %v726 = vld [vmem:[#allocation3 + $0x10] sm:$0xff]
      %v727 = vld [vmem:[#allocation3 + $0x18] sm:$0xff]
      %v728 = vld [vmem:[#allocation3 + $0x20] sm:$0xff]
      %v729 = vld [vmem:[#allocation3 + $0x28] sm:$0xff]
      %v730 = vld [vmem:[#allocation3 + $0x30] sm:$0xff]
      %v731 = vld [vmem:[#allocation3 + $0x38] sm:$0xff]
      %v732 = vld [vmem:[#allocation3 + $0x40] sm:$0xff]
      %v733 = vld [vmem:[#allocation3 + $0x48] sm:$0xff]
      %v734 = vld [vmem:[#allocation3 + $0x50] sm:$0xff]
      %v745 = vcombine.high %v725, %v725
      %v746 = vcombine.high %v726, %v726
      %v747 = vcombine.high %v727, %v727
      %v748 = vcombine.high %v728, %v728
      %v749 = vcombine.high %v729, %v729
      %v750 = vcombine.high %v730, %v730
      %v751 = vcombine.high %v731, %v731
      %v752 = vcombine.high %v732, %v732
      %v753 = vcombine.high %v733, %v733
      %v754 = vcombine.high %v734, %v734
      %765 = vrot.lane.b32.xlu0 %v725, 2
      %v766 = vpop.permute.xlu0 %765
      %767 = vrot.lane.b32.xlu0 %v745, 2
      %v768 = vpop.permute.xlu0 %767
      %769 = vrot.lane.b32.xlu0 %v726, 2
      %v770 = vpop.permute.xlu0 %769
      %771 = vrot.lane.b32.xlu0 %v746, 2
      %v772 = vpop.permute.xlu0 %771
      %773 = vrot.lane.b32.xlu0 %v727, 2
      %v774 = vpop.permute.xlu0 %773
      %775 = vrot.lane.b32.xlu0 %v747, 2
      %v776 = vpop.permute.xlu0 %775
      %777 = vrot.lane.b32.xlu0 %v728, 2
      %v778 = vpop.permute.xlu0 %777
      %779 = vrot.lane.b32.xlu0 %v748, 2
      %v780 = vpop.permute.xlu0 %779
      %781 = vrot.lane.b32.xlu0 %v729, 2
      %v782 = vpop.permute.xlu0 %781
      %783 = vrot.lane.b32.xlu0 %v749, 2
      %v784 = vpop.permute.xlu0 %783
      %785 = vrot.lane.b32.xlu0 %v730, 2
      %v786 = vpop.permute.xlu0 %785
      %787 = vrot.lane.b32.xlu0 %v750, 2
      %v788 = vpop.permute.xlu0 %787
      %789 = vrot.lane.b32.xlu0 %v731, 2
      %v790 = vpop.permute.xlu0 %789
      %791 = vrot.lane.b32.xlu0 %v751, 2
      %v792 = vpop.permute.xlu0 %791
      %793 = vrot.lane.b32.xlu0 %v732, 2
      %v794 = vpop.permute.xlu0 %793
      %795 = vrot.lane.b32.xlu0 %v752, 2
      %v796 = vpop.permute.xlu0 %795
      %797 = vrot.lane.b32.xlu0 %v733, 2
      %v798 = vpop.permute.xlu0 %797
      %799 = vrot.lane.b32.xlu0 %v753, 2
      %v800 = vpop.permute.xlu0 %799
      %801 = vrot.lane.b32.xlu0 %v734, 2
      %v802 = vpop.permute.xlu0 %801
      %803 = vrot.lane.b32.xlu0 %v754, 2
      %v804 = vpop.permute.xlu0 %803
      %v805 = vsel %vm503, %v802, %v804
      %v806 = vsel %vm503, %v800, %v802
      %v807 = vsel %vm503, %v798, %v800
      %v808 = vsel %vm503, %v796, %v798
      %v809 = vsel %vm503, %v794, %v796
      %v810 = vsel %vm503, %v792, %v794
      %v811 = vsel %vm503, %v790, %v792
      %v812 = vsel %vm503, %v788, %v790
      %v813 = vsel %vm503, %v786, %v788
      %v814 = vsel %vm503, %v784, %v786
      %v815 = vsel %vm503, %v782, %v784
      %v816 = vsel %vm503, %v780, %v782
      %v817 = vsel %vm503, %v778, %v780
      %v818 = vsel %vm503, %v776, %v778
      %v819 = vsel %vm503, %v774, %v776
      %v820 = vsel %vm503, %v772, %v774
      %v821 = vsel %vm503, %v770, %v772
      %v822 = vsel %vm503, %v768, %v770
      %v823 = vsel %vm503, %v766, %v768
      %v824 = vsel %vm503, %v804, %v766
      %v845 = vrot.slane %v824, 4
      %v846 = vrot.slane %v823, 4
      %v847 = vrot.slane %v822, 4
      %v848 = vrot.slane %v821, 4
      %v849 = vrot.slane %v820, 4
      %v850 = vrot.slane %v819, 4
      %v851 = vrot.slane %v818, 4
      %v852 = vrot.slane %v817, 4
      %v853 = vrot.slane %v816, 4
      %v854 = vrot.slane %v815, 4
      %v855 = vrot.slane %v814, 4
      %v856 = vrot.slane %v813, 4
      %v857 = vrot.slane %v812, 4
      %v858 = vrot.slane %v811, 4
      %v859 = vrot.slane %v810, 4
      %v860 = vrot.slane %v809, 4
      %v861 = vrot.slane %v808, 4
      %v862 = vrot.slane %v807, 4
      %v863 = vrot.slane %v806, 4
      %v864 = vrot.slane %v805, 4
      %885 = vst [vmem:[#allocation5 + $0xa0] sm:$0xf0] %v845
      %886 = vst [vmem:[#allocation5 + $0xa8] sm:$0xf0] %v846
      %887 = vst [vmem:[#allocation5 + $0xb0] sm:$0xf0] %v847
      %888 = vst [vmem:[#allocation5 + $0xb8] sm:$0xf0] %v848
      %889 = vst [vmem:[#allocation5 + $0xc0] sm:$0xf0] %v849
      %890 = vst [vmem:[#allocation5 + $0xc8] sm:$0xf0] %v850
      %891 = vst [vmem:[#allocation5 + $0xd0] sm:$0xf0] %v851
      %892 = vst [vmem:[#allocation5 + $0xd8] sm:$0xf0] %v852
      %893 = vst [vmem:[#allocation5 + $0xe0] sm:$0xf0] %v853
      %894 = vst [vmem:[#allocation5 + $0xe8] sm:$0xf0] %v854
      %895 = vst [vmem:[#allocation5 + $0xf0] sm:$0xf0] %v855
      %896 = vst [vmem:[#allocation5 + $0xf8] sm:$0xf0] %v856
      %897 = vst [vmem:[#allocation5 + $0x100] sm:$0xf0] %v857
      %898 = vst [vmem:[#allocation5 + $0x108] sm:$0xf0] %v858
      %899 = vst [vmem:[#allocation5 + $0x110] sm:$0xf0] %v859
      %900 = vst [vmem:[#allocation5 + $0x118] sm:$0xf0] %v860
      %901 = vst [vmem:[#allocation5 + $0x120] sm:$0xf0] %v861
      %902 = vst [vmem:[#allocation5 + $0x128] sm:$0xf0] %v862
      %903 = vst [vmem:[#allocation5 + $0x130] sm:$0xf0] %v863
      %904 = vst [vmem:[#allocation5 + $0x138] sm:$0xf0] %v864
      %v905 = vld [vmem:[#allocation3 + $0x8] sm:$0xff]
      %v906 = vld [vmem:[#allocation3 + $0x10] sm:$0xff]
      %v907 = vld [vmem:[#allocation3 + $0x18] sm:$0xff]
      %v908 = vld [vmem:[#allocation3 + $0x20] sm:$0xff]
      %v909 = vld [vmem:[#allocation3 + $0x28] sm:$0xff]
      %v910 = vld [vmem:[#allocation3 + $0x30] sm:$0xff]
      %v911 = vld [vmem:[#allocation3 + $0x38] sm:$0xff]
      %v912 = vld [vmem:[#allocation3 + $0x40] sm:$0xff]
      %v913 = vld [vmem:[#allocation3 + $0x48] sm:$0xff]
      %v914 = vld [vmem:[#allocation3 + $0x50] sm:$0xff]
      %v925 = vcombine.high %v905, %v905
      %v926 = vcombine.high %v906, %v906
      %v927 = vcombine.high %v907, %v907
      %v928 = vcombine.high %v908, %v908
      %v929 = vcombine.high %v909, %v909
      %v930 = vcombine.high %v910, %v910
      %v931 = vcombine.high %v911, %v911
      %v932 = vcombine.high %v912, %v912
      %v933 = vcombine.high %v913, %v913
      %v934 = vcombine.high %v914, %v914
      %945 = vst [vmem:[#allocation5 + $0x140] sm:$0xf] %v905
      %946 = vst [vmem:[#allocation5 + $0x148] sm:$0xf] %v925
      %947 = vst [vmem:[#allocation5 + $0x150] sm:$0xf] %v906
      %948 = vst [vmem:[#allocation5 + $0x158] sm:$0xf] %v926
      %949 = vst [vmem:[#allocation5 + $0x160] sm:$0xf] %v907
      %950 = vst [vmem:[#allocation5 + $0x168] sm:$0xf] %v927
      %951 = vst [vmem:[#allocation5 + $0x170] sm:$0xf] %v908
      %952 = vst [vmem:[#allocation5 + $0x178] sm:$0xf] %v928
      %953 = vst [vmem:[#allocation5 + $0x180] sm:$0xf] %v909
      %954 = vst [vmem:[#allocation5 + $0x188] sm:$0xf] %v929
      %955 = vst [vmem:[#allocation5 + $0x190] sm:$0xf] %v910
      %956 = vst [vmem:[#allocation5 + $0x198] sm:$0xf] %v930
      %957 = vst [vmem:[#allocation5 + $0x1a0] sm:$0xf] %v911
      %958 = vst [vmem:[#allocation5 + $0x1a8] sm:$0xf] %v931
      %959 = vst [vmem:[#allocation5 + $0x1b0] sm:$0xf] %v912
      %960 = vst [vmem:[#allocation5 + $0x1b8] sm:$0xf] %v932
      %961 = vst [vmem:[#allocation5 + $0x1c0] sm:$0xf] %v913
      %962 = vst [vmem:[#allocation5 + $0x1c8] sm:$0xf] %v933
      %963 = vst [vmem:[#allocation5 + $0x1d0] sm:$0xf] %v914
      %964 = vst [vmem:[#allocation5 + $0x1d8] sm:$0xf] %v934
      %v965 = vld [vmem:[#allocation3 + $0x8] sm:$0xff]
      %v966 = vld [vmem:[#allocation3 + $0x10] sm:$0xff]
      %v967 = vld [vmem:[#allocation3 + $0x18] sm:$0xff]
      %v968 = vld [vmem:[#allocation3 + $0x20] sm:$0xff]
      %v969 = vld [vmem:[#allocation3 + $0x28] sm:$0xff]
      %v970 = vld [vmem:[#allocation3 + $0x30] sm:$0xff]
      %v971 = vld [vmem:[#allocation3 + $0x38] sm:$0xff]
      %v972 = vld [vmem:[#allocation3 + $0x40] sm:$0xff]
      %v973 = vld [vmem:[#allocation3 + $0x48] sm:$0xff]
      %v974 = vld [vmem:[#allocation3 + $0x50] sm:$0xff]
      %v985 = vcombine.high %v965, %v965
      %v986 = vcombine.high %v966, %v966
      %v987 = vcombine.high %v967, %v967
      %v988 = vcombine.high %v968, %v968
      %v989 = vcombine.high %v969, %v969
      %v990 = vcombine.high %v970, %v970
      %v991 = vcombine.high %v971, %v971
      %v992 = vcombine.high %v972, %v972
      %v993 = vcombine.high %v973, %v973
      %v994 = vcombine.high %v974, %v974
      %1005 = vrot.lane.b32.xlu0 %v965, 126
      %v1006 = vpop.permute.xlu0 %1005
      %1007 = vrot.lane.b32.xlu0 %v985, 126
      %v1008 = vpop.permute.xlu0 %1007
      %1009 = vrot.lane.b32.xlu0 %v966, 126
      %v1010 = vpop.permute.xlu0 %1009
      %1011 = vrot.lane.b32.xlu0 %v986, 126
      %v1012 = vpop.permute.xlu0 %1011
      %1013 = vrot.lane.b32.xlu0 %v967, 126
      %v1014 = vpop.permute.xlu0 %1013
      %1015 = vrot.lane.b32.xlu0 %v987, 126
      %v1016 = vpop.permute.xlu0 %1015
      %1017 = vrot.lane.b32.xlu0 %v968, 126
      %v1018 = vpop.permute.xlu0 %1017
      %1019 = vrot.lane.b32.xlu0 %v988, 126
      %v1020 = vpop.permute.xlu0 %1019
      %1021 = vrot.lane.b32.xlu0 %v969, 126
      %v1022 = vpop.permute.xlu0 %1021
      %1023 = vrot.lane.b32.xlu0 %v989, 126
      %v1024 = vpop.permute.xlu0 %1023
      %1025 = vrot.lane.b32.xlu0 %v970, 126
      %v1026 = vpop.permute.xlu0 %1025
      %1027 = vrot.lane.b32.xlu0 %v990, 126
      %v1028 = vpop.permute.xlu0 %1027
      %1029 = vrot.lane.b32.xlu0 %v971, 126
      %v1030 = vpop.permute.xlu0 %1029
      %1031 = vrot.lane.b32.xlu0 %v991, 126
      %v1032 = vpop.permute.xlu0 %1031
      %1033 = vrot.lane.b32.xlu0 %v972, 126
      %v1034 = vpop.permute.xlu0 %1033
      %1035 = vrot.lane.b32.xlu0 %v992, 126
      %v1036 = vpop.permute.xlu0 %1035
      %1037 = vrot.lane.b32.xlu0 %v973, 126
      %v1038 = vpop.permute.xlu0 %1037
      %1039 = vrot.lane.b32.xlu0 %v993, 126
      %v1040 = vpop.permute.xlu0 %1039
      %1041 = vrot.lane.b32.xlu0 %v974, 126
      %v1042 = vpop.permute.xlu0 %1041
      %1043 = vrot.lane.b32.xlu0 %v994, 126
      %v1044 = vpop.permute.xlu0 %1043
      %v1045 = vsel %vm684, %v1042, %v1044
      %v1046 = vsel %vm684, %v1040, %v1042
      %v1047 = vsel %vm684, %v1038, %v1040
      %v1048 = vsel %vm684, %v1036, %v1038
      %v1049 = vsel %vm684, %v1034, %v1036
      %v1050 = vsel %vm684, %v1032, %v1034
      %v1051 = vsel %vm684, %v1030, %v1032
      %v1052 = vsel %vm684, %v1028, %v1030
      %v1053 = vsel %vm684, %v1026, %v1028
      %v1054 = vsel %vm684, %v1024, %v1026
      %v1055 = vsel %vm684, %v1022, %v1024
      %v1056 = vsel %vm684, %v1020, %v1022
      %v1057 = vsel %vm684, %v1018, %v1020
      %v1058 = vsel %vm684, %v1016, %v1018
      %v1059 = vsel %vm684, %v1014, %v1016
      %v1060 = vsel %vm684, %v1012, %v1014
      %v1061 = vsel %vm684, %v1010, %v1012
      %v1062 = vsel %vm684, %v1008, %v1010
      %v1063 = vsel %vm684, %v1006, %v1008
      %v1064 = vsel %vm684, %v1044, %v1006
      %v1085 = vrot.slane %v1063, 4
      %v1086 = vrot.slane %v1062, 4
      %v1087 = vrot.slane %v1061, 4
      %v1088 = vrot.slane %v1060, 4
      %v1089 = vrot.slane %v1059, 4
      %v1090 = vrot.slane %v1058, 4
      %v1091 = vrot.slane %v1057, 4
      %v1092 = vrot.slane %v1056, 4
      %v1093 = vrot.slane %v1055, 4
      %v1094 = vrot.slane %v1054, 4
      %v1095 = vrot.slane %v1053, 4
      %v1096 = vrot.slane %v1052, 4
      %v1097 = vrot.slane %v1051, 4
      %v1098 = vrot.slane %v1050, 4
      %v1099 = vrot.slane %v1049, 4
      %v1100 = vrot.slane %v1048, 4
      %v1101 = vrot.slane %v1047, 4
      %v1102 = vrot.slane %v1046, 4
      %v1103 = vrot.slane %v1045, 4
      %v1104 = vrot.slane %v1064, 4
      %1125 = vst [vmem:[#allocation5 + $0x140] sm:$0xf0] %v1085
      %1126 = vst [vmem:[#allocation5 + $0x148] sm:$0xf0] %v1086
      %1127 = vst [vmem:[#allocation5 + $0x150] sm:$0xf0] %v1087
      %1128 = vst [vmem:[#allocation5 + $0x158] sm:$0xf0] %v1088
      %1129 = vst [vmem:[#allocation5 + $0x160] sm:$0xf0] %v1089
      %1130 = vst [vmem:[#allocation5 + $0x168] sm:$0xf0] %v1090
      %1131 = vst [vmem:[#allocation5 + $0x170] sm:$0xf0] %v1091
      %1132 = vst [vmem:[#allocation5 + $0x178] sm:$0xf0] %v1092
      %1133 = vst [vmem:[#allocation5 + $0x180] sm:$0xf0] %v1093
      %1134 = vst [vmem:[#allocation5 + $0x188] sm:$0xf0] %v1094
      %1135 = vst [vmem:[#allocation5 + $0x190] sm:$0xf0] %v1095
      %1136 = vst [vmem:[#allocation5 + $0x198] sm:$0xf0] %v1096
      %1137 = vst [vmem:[#allocation5 + $0x1a0] sm:$0xf0] %v1097
      %1138 = vst [vmem:[#allocation5 + $0x1a8] sm:$0xf0] %v1098
      %1139 = vst [vmem:[#allocation5 + $0x1b0] sm:$0xf0] %v1099
      %1140 = vst [vmem:[#allocation5 + $0x1b8] sm:$0xf0] %v1100
      %1141 = vst [vmem:[#allocation5 + $0x1c0] sm:$0xf0] %v1101
      %1142 = vst [vmem:[#allocation5 + $0x1c8] sm:$0xf0] %v1102
      %1143 = vst [vmem:[#allocation5 + $0x1d0] sm:$0xf0] %v1103
      %1144 = vst [vmem:[#allocation5 + $0x1d8] sm:$0xf0] %v1104
      %v1145 = vld [vmem:[#allocation3 + $0x10] sm:$0xff]
      %v1146 = vld [vmem:[#allocation3 + $0x18] sm:$0xff]
      %v1147 = vld [vmem:[#allocation3 + $0x20] sm:$0xff]
      %v1148 = vld [vmem:[#allocation3 + $0x28] sm:$0xff]
      %v1149 = vld [vmem:[#allocation3 + $0x30] sm:$0xff]
      %v1150 = vld [vmem:[#allocation3 + $0x38] sm:$0xff]
      %v1151 = vld [vmem:[#allocation3 + $0x40] sm:$0xff]
      %v1152 = vld [vmem:[#allocation3 + $0x48] sm:$0xff]
      %v1153 = vld [vmem:[#allocation3 + $0x50] sm:$0xff]
      %v1154 = vld [vmem:[#allocation3 + $0x58] sm:$0xff]
      %v1165 = vcombine.high %v1145, %v1145
      %v1166 = vcombine.high %v1146, %v1146
      %v1167 = vcombine.high %v1147, %v1147
      %v1168 = vcombine.high %v1148, %v1148
      %v1169 = vcombine.high %v1149, %v1149
      %v1170 = vcombine.high %v1150, %v1150
      %v1171 = vcombine.high %v1151, %v1151
      %v1172 = vcombine.high %v1152, %v1152
      %v1173 = vcombine.high %v1153, %v1153
      %v1174 = vcombine.high %v1154, %v1154
      %1185 = vrot.lane.b32.xlu0 %v1145, 2
      %v1186 = vpop.permute.xlu0 %1185
      %1187 = vrot.lane.b32.xlu0 %v1165, 2
      %v1188 = vpop.permute.xlu0 %1187
      %1189 = vrot.lane.b32.xlu0 %v1146, 2
      %v1190 = vpop.permute.xlu0 %1189
      %1191 = vrot.lane.b32.xlu0 %v1166, 2
      %v1192 = vpop.permute.xlu0 %1191
      %1193 = vrot.lane.b32.xlu0 %v1147, 2
      %v1194 = vpop.permute.xlu0 %1193
      %1195 = vrot.lane.b32.xlu0 %v1167, 2
      %v1196 = vpop.permute.xlu0 %1195
      %1197 = vrot.lane.b32.xlu0 %v1148, 2
      %v1198 = vpop.permute.xlu0 %1197
      %1199 = vrot.lane.b32.xlu0 %v1168, 2
      %v1200 = vpop.permute.xlu0 %1199
      %1201 = vrot.lane.b32.xlu0 %v1149, 2
      %v1202 = vpop.permute.xlu0 %1201
      %1203 = vrot.lane.b32.xlu0 %v1169, 2
      %v1204 = vpop.permute.xlu0 %1203
      %1205 = vrot.lane.b32.xlu0 %v1150, 2
      %v1206 = vpop.permute.xlu0 %1205
      %1207 = vrot.lane.b32.xlu0 %v1170, 2
      %v1208 = vpop.permute.xlu0 %1207
      %1209 = vrot.lane.b32.xlu0 %v1151, 2
      %v1210 = vpop.permute.xlu0 %1209
      %1211 = vrot.lane.b32.xlu0 %v1171, 2
      %v1212 = vpop.permute.xlu0 %1211
      %1213 = vrot.lane.b32.xlu0 %v1152, 2
      %v1214 = vpop.permute.xlu0 %1213
      %1215 = vrot.lane.b32.xlu0 %v1172, 2
      %v1216 = vpop.permute.xlu0 %1215
      %1217 = vrot.lane.b32.xlu0 %v1153, 2
      %v1218 = vpop.permute.xlu0 %1217
      %1219 = vrot.lane.b32.xlu0 %v1173, 2
      %v1220 = vpop.permute.xlu0 %1219
      %1221 = vrot.lane.b32.xlu0 %v1154, 2
      %v1222 = vpop.permute.xlu0 %1221
      %1223 = vrot.lane.b32.xlu0 %v1174, 2
      %v1224 = vpop.permute.xlu0 %1223
      %v1225 = vsel %vm503, %v1222, %v1224
      %v1226 = vsel %vm503, %v1220, %v1222
      %v1227 = vsel %vm503, %v1218, %v1220
      %v1228 = vsel %vm503, %v1216, %v1218
      %v1229 = vsel %vm503, %v1214, %v1216
      %v1230 = vsel %vm503, %v1212, %v1214
      %v1231 = vsel %vm503, %v1210, %v1212
      %v1232 = vsel %vm503, %v1208, %v1210
      %v1233 = vsel %vm503, %v1206, %v1208
      %v1234 = vsel %vm503, %v1204, %v1206
      %v1235 = vsel %vm503, %v1202, %v1204
      %v1236 = vsel %vm503, %v1200, %v1202
      %v1237 = vsel %vm503, %v1198, %v1200
      %v1238 = vsel %vm503, %v1196, %v1198
      %v1239 = vsel %vm503, %v1194, %v1196
      %v1240 = vsel %vm503, %v1192, %v1194
      %v1241 = vsel %vm503, %v1190, %v1192
      %v1242 = vsel %vm503, %v1188, %v1190
      %v1243 = vsel %vm503, %v1186, %v1188
      %v1244 = vsel %vm503, %v1224, %v1186
      %1245 = vst [vmem:[#allocation5 + $0x1e0] sm:$0xf] %v1244
      %1246 = vst [vmem:[#allocation5 + $0x1e8] sm:$0xf] %v1243
      %1247 = vst [vmem:[#allocation5 + $0x1f0] sm:$0xf] %v1242
      %1248 = vst [vmem:[#allocation5 + $0x1f8] sm:$0xf] %v1241
      %1249 = vst [vmem:[#allocation5 + $0x200] sm:$0xf] %v1240
      %1250 = vst [vmem:[#allocation5 + $0x208] sm:$0xf] %v1239
      %1251 = vst [vmem:[#allocation5 + $0x210] sm:$0xf] %v1238
      %1252 = vst [vmem:[#allocation5 + $0x218] sm:$0xf] %v1237
      %1253 = vst [vmem:[#allocation5 + $0x220] sm:$0xf] %v1236
      %1254 = vst [vmem:[#allocation5 + $0x228] sm:$0xf] %v1235
      %1255 = vst [vmem:[#allocation5 + $0x230] sm:$0xf] %v1234
      %1256 = vst [vmem:[#allocation5 + $0x238] sm:$0xf] %v1233
      %1257 = vst [vmem:[#allocation5 + $0x240] sm:$0xf] %v1232
      %1258 = vst [vmem:[#allocation5 + $0x248] sm:$0xf] %v1231
      %1259 = vst [vmem:[#allocation5 + $0x250] sm:$0xf] %v1230
      %1260 = vst [vmem:[#allocation5 + $0x258] sm:$0xf] %v1229
      %1261 = vst [vmem:[#allocation5 + $0x260] sm:$0xf] %v1228
      %1262 = vst [vmem:[#allocation5 + $0x268] sm:$0xf] %v1227
      %1263 = vst [vmem:[#allocation5 + $0x270] sm:$0xf] %v1226
      %1264 = vst [vmem:[#allocation5 + $0x278] sm:$0xf] %v1225
      %v1265 = vld [vmem:[#allocation3 + $0x10] sm:$0xff]
      %v1266 = vld [vmem:[#allocation3 + $0x18] sm:$0xff]
      %v1267 = vld [vmem:[#allocation3 + $0x20] sm:$0xff]
      %v1268 = vld [vmem:[#allocation3 + $0x28] sm:$0xff]
      %v1269 = vld [vmem:[#allocation3 + $0x30] sm:$0xff]
      %v1270 = vld [vmem:[#allocation3 + $0x38] sm:$0xff]
      %v1271 = vld [vmem:[#allocation3 + $0x40] sm:$0xff]
      %v1272 = vld [vmem:[#allocation3 + $0x48] sm:$0xff]
      %v1273 = vld [vmem:[#allocation3 + $0x50] sm:$0xff]
      %v1274 = vld [vmem:[#allocation3 + $0x58] sm:$0xff]
      %v1285 = vcombine.low %v1265, %v1265
      %v1286 = vcombine.low %v1266, %v1266
      %v1287 = vcombine.low %v1267, %v1267
      %v1288 = vcombine.low %v1268, %v1268
      %v1289 = vcombine.low %v1269, %v1269
      %v1290 = vcombine.low %v1270, %v1270
      %v1291 = vcombine.low %v1271, %v1271
      %v1292 = vcombine.low %v1272, %v1272
      %v1293 = vcombine.low %v1273, %v1273
      %v1294 = vcombine.low %v1274, %v1274
      %1305 = vst [vmem:[#allocation5 + $0x1e0] sm:$0xf0] %v1285
      %1306 = vst [vmem:[#allocation5 + $0x1e8] sm:$0xf0] %v1265
      %1307 = vst [vmem:[#allocation5 + $0x1f0] sm:$0xf0] %v1286
      %1308 = vst [vmem:[#allocation5 + $0x1f8] sm:$0xf0] %v1266
      %1309 = vst [vmem:[#allocation5 + $0x200] sm:$0xf0] %v1287
      %1310 = vst [vmem:[#allocation5 + $0x208] sm:$0xf0] %v1267
      %1311 = vst [vmem:[#allocation5 + $0x210] sm:$0xf0] %v1288
      %1312 = vst [vmem:[#allocation5 + $0x218] sm:$0xf0] %v1268
      %1313 = vst [vmem:[#allocation5 + $0x220] sm:$0xf0] %v1289
      %1314 = vst [vmem:[#allocation5 + $0x228] sm:$0xf0] %v1269
      %1315 = vst [vmem:[#allocation5 + $0x230] sm:$0xf0] %v1290
      %1316 = vst [vmem:[#allocation5 + $0x238] sm:$0xf0] %v1270
      %1317 = vst [vmem:[#allocation5 + $0x240] sm:$0xf0] %v1291
      %1318 = vst [vmem:[#allocation5 + $0x248] sm:$0xf0] %v1271
      %1319 = vst [vmem:[#allocation5 + $0x250] sm:$0xf0] %v1292
      %1320 = vst [vmem:[#allocation5 + $0x258] sm:$0xf0] %v1272
      %1321 = vst [vmem:[#allocation5 + $0x260] sm:$0xf0] %v1293
      %1322 = vst [vmem:[#allocation5 + $0x268] sm:$0xf0] %v1273
      %1323 = vst [vmem:[#allocation5 + $0x270] sm:$0xf0] %v1294
      %1324 = vst [vmem:[#allocation5 + $0x278] sm:$0xf0] %v1274
      %v1325 = vld [vmem:[#allocation3 + $0x10] sm:$0xff]
      %v1326 = vld [vmem:[#allocation3 + $0x18] sm:$0xff]
      %v1327 = vld [vmem:[#allocation3 + $0x20] sm:$0xff]
      %v1328 = vld [vmem:[#allocation3 + $0x28] sm:$0xff]
      %v1329 = vld [vmem:[#allocation3 + $0x30] sm:$0xff]
      %v1330 = vld [vmem:[#allocation3 + $0x38] sm:$0xff]
      %v1331 = vld [vmem:[#allocation3 + $0x40] sm:$0xff]
      %v1332 = vld [vmem:[#allocation3 + $0x48] sm:$0xff]
      %v1333 = vld [vmem:[#allocation3 + $0x50] sm:$0xff]
      %v1334 = vld [vmem:[#allocation3 + $0x58] sm:$0xff]
      %v1345 = vcombine.high %v1325, %v1325
      %v1346 = vcombine.high %v1326, %v1326
      %v1347 = vcombine.high %v1327, %v1327
      %v1348 = vcombine.high %v1328, %v1328
      %v1349 = vcombine.high %v1329, %v1329
      %v1350 = vcombine.high %v1330, %v1330
      %v1351 = vcombine.high %v1331, %v1331
      %v1352 = vcombine.high %v1332, %v1332
      %v1353 = vcombine.high %v1333, %v1333
      %v1354 = vcombine.high %v1334, %v1334
      %1365 = vrot.lane.b32.xlu0 %v1325, 126
      %v1366 = vpop.permute.xlu0 %1365
      %1367 = vrot.lane.b32.xlu0 %v1345, 126
      %v1368 = vpop.permute.xlu0 %1367
      %1369 = vrot.lane.b32.xlu0 %v1326, 126
      %v1370 = vpop.permute.xlu0 %1369
      %1371 = vrot.lane.b32.xlu0 %v1346, 126
      %v1372 = vpop.permute.xlu0 %1371
      %1373 = vrot.lane.b32.xlu0 %v1327, 126
      %v1374 = vpop.permute.xlu0 %1373
      %1375 = vrot.lane.b32.xlu0 %v1347, 126
      %v1376 = vpop.permute.xlu0 %1375
      %1377 = vrot.lane.b32.xlu0 %v1328, 126
      %v1378 = vpop.permute.xlu0 %1377
      %1379 = vrot.lane.b32.xlu0 %v1348, 126
      %v1380 = vpop.permute.xlu0 %1379
      %1381 = vrot.lane.b32.xlu0 %v1329, 126
      %v1382 = vpop.permute.xlu0 %1381
      %1383 = vrot.lane.b32.xlu0 %v1349, 126
      %v1384 = vpop.permute.xlu0 %1383
      %1385 = vrot.lane.b32.xlu0 %v1330, 126
      %v1386 = vpop.permute.xlu0 %1385
      %1387 = vrot.lane.b32.xlu0 %v1350, 126
      %v1388 = vpop.permute.xlu0 %1387
      %1389 = vrot.lane.b32.xlu0 %v1331, 126
      %v1390 = vpop.permute.xlu0 %1389
      %1391 = vrot.lane.b32.xlu0 %v1351, 126
      %v1392 = vpop.permute.xlu0 %1391
      %1393 = vrot.lane.b32.xlu0 %v1332, 126
      %v1394 = vpop.permute.xlu0 %1393
      %1395 = vrot.lane.b32.xlu0 %v1352, 126
      %v1396 = vpop.permute.xlu0 %1395
      %1397 = vrot.lane.b32.xlu0 %v1333, 126
      %v1398 = vpop.permute.xlu0 %1397
      %1399 = vrot.lane.b32.xlu0 %v1353, 126
      %v1400 = vpop.permute.xlu0 %1399
      %1401 = vrot.lane.b32.xlu0 %v1334, 126
      %v1402 = vpop.permute.xlu0 %1401
      %1403 = vrot.lane.b32.xlu0 %v1354, 126
      %v1404 = vpop.permute.xlu0 %1403
      %v1405 = vsel %vm684, %v1402, %v1404
      %v1406 = vsel %vm684, %v1400, %v1402
      %v1407 = vsel %vm684, %v1398, %v1400
      %v1408 = vsel %vm684, %v1396, %v1398
      %v1409 = vsel %vm684, %v1394, %v1396
      %v1410 = vsel %vm684, %v1392, %v1394
      %v1411 = vsel %vm684, %v1390, %v1392
      %v1412 = vsel %vm684, %v1388, %v1390
      %v1413 = vsel %vm684, %v1386, %v1388
      %v1414 = vsel %vm684, %v1384, %v1386
      %v1415 = vsel %vm684, %v1382, %v1384
      %v1416 = vsel %vm684, %v1380, %v1382
      %v1417 = vsel %vm684, %v1378, %v1380
      %v1418 = vsel %vm684, %v1376, %v1378
      %v1419 = vsel %vm684, %v1374, %v1376
      %v1420 = vsel %vm684, %v1372, %v1374
      %v1421 = vsel %vm684, %v1370, %v1372
      %v1422 = vsel %vm684, %v1368, %v1370
      %v1423 = vsel %vm684, %v1366, %v1368
      %v1424 = vsel %vm684, %v1404, %v1366
      %1425 = vst [vmem:[#allocation5 + $0x280] sm:$0xf] %v1423
      %1426 = vst [vmem:[#allocation5 + $0x288] sm:$0xf] %v1422
      %1427 = vst [vmem:[#allocation5 + $0x290] sm:$0xf] %v1421
      %1428 = vst [vmem:[#allocation5 + $0x298] sm:$0xf] %v1420
      %1429 = vst [vmem:[#allocation5 + $0x2a0] sm:$0xf] %v1419
      %1430 = vst [vmem:[#allocation5 + $0x2a8] sm:$0xf] %v1418
      %1431 = vst [vmem:[#allocation5 + $0x2b0] sm:$0xf] %v1417
      %1432 = vst [vmem:[#allocation5 + $0x2b8] sm:$0xf] %v1416
      %1433 = vst [vmem:[#allocation5 + $0x2c0] sm:$0xf] %v1415
      %1434 = vst [vmem:[#allocation5 + $0x2c8] sm:$0xf] %v1414
      %1435 = vst [vmem:[#allocation5 + $0x2d0] sm:$0xf] %v1413
      %1436 = vst [vmem:[#allocation5 + $0x2d8] sm:$0xf] %v1412
      %1437 = vst [vmem:[#allocation5 + $0x2e0] sm:$0xf] %v1411
      %1438 = vst [vmem:[#allocation5 + $0x2e8] sm:$0xf] %v1410
      %1439 = vst [vmem:[#allocation5 + $0x2f0] sm:$0xf] %v1409
      %1440 = vst [vmem:[#allocation5 + $0x2f8] sm:$0xf] %v1408
      %1441 = vst [vmem:[#allocation5 + $0x300] sm:$0xf] %v1407
      %1442 = vst [vmem:[#allocation5 + $0x308] sm:$0xf] %v1406
      %1443 = vst [vmem:[#allocation5 + $0x310] sm:$0xf] %v1405
      %1444 = vst [vmem:[#allocation5 + $0x318] sm:$0xf] %v1424
      %v1445 = vld [vmem:[%s1] sm:$0xf]
      %v1446 = vld [vmem:[#allocation5] sm:$0xff]
      %v1447 = vld [vmem:[#allocation5 + $0x8] sm:$0xff]
      %v1448 = vld [vmem:[#allocation5 + $0x10] sm:$0xff]
      %v1449 = vld [vmem:[#allocation5 + $0x18] sm:$0xff]
      %v1450 = vld [vmem:[#allocation5 + $0x20] sm:$0xff]
      %v1451 = vld [vmem:[#allocation5 + $0x28] sm:$0xff]
      %v1452 = vld [vmem:[#allocation5 + $0x30] sm:$0xff]
      %v1453 = vld [vmem:[#allocation5 + $0x38] sm:$0xff]
      %v1454 = vld [vmem:[#allocation5 + $0x40] sm:$0xff]
      %v1455 = vld [vmem:[#allocation5 + $0x48] sm:$0xff]
      %v1456 = vld [vmem:[#allocation5 + $0x50] sm:$0xff]
      %v1457 = vld [vmem:[#allocation5 + $0x58] sm:$0xff]
      %v1458 = vld [vmem:[#allocation5 + $0x60] sm:$0xff]
      %v1459 = vld [vmem:[#allocation5 + $0x68] sm:$0xff]
      %v1460 = vld [vmem:[#allocation5 + $0x70] sm:$0xff]
      %v1461 = vld [vmem:[#allocation5 + $0x78] sm:$0xff]
      %v1462 = vld [vmem:[#allocation5 + $0x80] sm:$0xff]
      %v1463 = vld [vmem:[#allocation5 + $0x88] sm:$0xff]
      %v1464 = vld [vmem:[#allocation5 + $0x90] sm:$0xff]
      %v1465 = vld [vmem:[#allocation5 + $0x98] sm:$0xff]
      %v1466 = vld [vmem:[#allocation5 + $0xa0] sm:$0xff]
      %v1467 = vld [vmem:[#allocation5 + $0xa8] sm:$0xff]
      %v1468 = vld [vmem:[#allocation5 + $0xb0] sm:$0xff]
      %v1469 = vld [vmem:[#allocation5 + $0xb8] sm:$0xff]
      %v1470 = vld [vmem:[#allocation5 + $0xc0] sm:$0xff]
      %v1471 = vld [vmem:[#allocation5 + $0xc8] sm:$0xff]
      %v1472 = vld [vmem:[#allocation5 + $0xd0] sm:$0xff]
      %v1473 = vld [vmem:[#allocation5 + $0xd8] sm:$0xff]
      %v1474 = vld [vmem:[#allocation5 + $0xe0] sm:$0xff]
      %v1475 = vld [vmem:[#allocation5 + $0xe8] sm:$0xff]
      %v1476 = vld [vmem:[#allocation5 + $0xf0] sm:$0xff]
      %v1477 = vld [vmem:[#allocation5 + $0xf8] sm:$0xff]
      %v1478 = vld [vmem:[#allocation5 + $0x100] sm:$0xff]
      %v1479 = vld [vmem:[#allocation5 + $0x108] sm:$0xff]
      %v1480 = vld [vmem:[#allocation5 + $0x110] sm:$0xff]
      %v1481 = vld [vmem:[#allocation5 + $0x118] sm:$0xff]
      %v1482 = vld [vmem:[#allocation5 + $0x120] sm:$0xff]
      %v1483 = vld [vmem:[#allocation5 + $0x128] sm:$0xff]
      %v1484 = vld [vmem:[#allocation5 + $0x130] sm:$0xff]
      %v1485 = vld [vmem:[#allocation5 + $0x138] sm:$0xff]
      %v1486 = vld [vmem:[#allocation5 + $0x140] sm:$0xff]
      %v1487 = vld [vmem:[#allocation5 + $0x148] sm:$0xff]
      %v1488 = vld [vmem:[#allocation5 + $0x150] sm:$0xff]
      %v1489 = vld [vmem:[#allocation5 + $0x158] sm:$0xff]
      %v1490 = vld [vmem:[#allocation5 + $0x160] sm:$0xff]
      %v1491 = vld [vmem:[#allocation5 + $0x168] sm:$0xff]
      %v1492 = vld [vmem:[#allocation5 + $0x170] sm:$0xff]
      %v1493 = vld [vmem:[#allocation5 + $0x178] sm:$0xff]
      %v1494 = vld [vmem:[#allocation5 + $0x180] sm:$0xff]
      %v1495 = vld [vmem:[#allocation5 + $0x188] sm:$0xff]
      %v1496 = vld [vmem:[#allocation5 + $0x190] sm:$0xff]
      %v1497 = vld [vmem:[#allocation5 + $0x198] sm:$0xff]
      %v1498 = vld [vmem:[#allocation5 + $0x1a0] sm:$0xff]
      %v1499 = vld [vmem:[#allocation5 + $0x1a8] sm:$0xff]
      %v1500 = vld [vmem:[#allocation5 + $0x1b0] sm:$0xff]
      %v1501 = vld [vmem:[#allocation5 + $0x1b8] sm:$0xff]
      %v1502 = vld [vmem:[#allocation5 + $0x1c0] sm:$0xff]
      %v1503 = vld [vmem:[#allocation5 + $0x1c8] sm:$0xff]
      %v1504 = vld [vmem:[#allocation5 + $0x1d0] sm:$0xff]
      %v1505 = vld [vmem:[#allocation5 + $0x1d8] sm:$0xff]
      %v1506 = vld [vmem:[#allocation5 + $0x1e0] sm:$0xff]
      %v1507 = vld [vmem:[#allocation5 + $0x1e8] sm:$0xff]
      %v1508 = vld [vmem:[#allocation5 + $0x1f0] sm:$0xff]
      %v1509 = vld [vmem:[#allocation5 + $0x1f8] sm:$0xff]
      %v1510 = vld [vmem:[#allocation5 + $0x200] sm:$0xff]
      %v1511 = vld [vmem:[#allocation5 + $0x208] sm:$0xff]
      %v1512 = vld [vmem:[#allocation5 + $0x210] sm:$0xff]
      %v1513 = vld [vmem:[#allocation5 + $0x218] sm:$0xff]
      %v1514 = vld [vmem:[#allocation5 + $0x220] sm:$0xff]
      %v1515 = vld [vmem:[#allocation5 + $0x228] sm:$0xff]
      %v1516 = vld [vmem:[#allocation5 + $0x230] sm:$0xff]
      %v1517 = vld [vmem:[#allocation5 + $0x238] sm:$0xff]
      %v1518 = vld [vmem:[#allocation5 + $0x240] sm:$0xff]
      %v1519 = vld [vmem:[#allocation5 + $0x248] sm:$0xff]
      %v1520 = vld [vmem:[#allocation5 + $0x250] sm:$0xff]
      %v1521 = vld [vmem:[#allocation5 + $0x258] sm:$0xff]
      %v1522 = vld [vmem:[#allocation5 + $0x260] sm:$0xff]
      %v1523 = vld [vmem:[#allocation5 + $0x268] sm:$0xff]
      %v1524 = vld [vmem:[#allocation5 + $0x270] sm:$0xff]
      %v1525 = vld [vmem:[#allocation5 + $0x278] sm:$0xff]
      %v1526 = vld [vmem:[#allocation5 + $0x280] sm:$0xf]
      %v1527 = vld [vmem:[#allocation5 + $0x288] sm:$0xf]
      %v1528 = vld [vmem:[#allocation5 + $0x290] sm:$0xf]
      %v1529 = vld [vmem:[#allocation5 + $0x298] sm:$0xf]
      %v1530 = vld [vmem:[#allocation5 + $0x2a0] sm:$0xf]
      %v1531 = vld [vmem:[#allocation5 + $0x2a8] sm:$0xf]
      %v1532 = vld [vmem:[#allocation5 + $0x2b0] sm:$0xf]
      %v1533 = vld [vmem:[#allocation5 + $0x2b8] sm:$0xf]
      %v1534 = vld [vmem:[#allocation5 + $0x2c0] sm:$0xf]
      %v1535 = vld [vmem:[#allocation5 + $0x2c8] sm:$0xf]
      %v1536 = vld [vmem:[#allocation5 + $0x2d0] sm:$0xf]
      %v1537 = vld [vmem:[#allocation5 + $0x2d8] sm:$0xf]
      %v1538 = vld [vmem:[#allocation5 + $0x2e0] sm:$0xf]
      %v1539 = vld [vmem:[#allocation5 + $0x2e8] sm:$0xf]
      %v1540 = vld [vmem:[#allocation5 + $0x2f0] sm:$0xf]
      %v1541 = vld [vmem:[#allocation5 + $0x2f8] sm:$0xf]
      %v1542 = vld [vmem:[#allocation5 + $0x300] sm:$0xf]
      %v1543 = vld [vmem:[#allocation5 + $0x308] sm:$0xf]
      %v1544 = vld [vmem:[#allocation5 + $0x310] sm:$0xf]
      %v1545 = vld [vmem:[#allocation5 + $0x318] sm:$0xf]
      %v1546 = vld [vmem:[%s2] sm:$0xf]
      %1548 = vset.pattern.permute.xlu0 0
      %1549 = vperm.xlu0 %1548, %v1546
      %v1550 = vpop.permute.xlu0 %1549
      %vm1552 = vcmask 293888
      %v1554 = vsel %vm1552, %v1445, 0
      %vm1556 = vcmask 1043456
      %v1558 = vsel %vm1556, %v1526, 0
      %v1561 = vsel %vm1556, %v1527, 0
      %v1564 = vsel %vm1556, %v1528, 0
      %v1567 = vsel %vm1556, %v1529, 0
      %v1570 = vsel %vm1556, %v1530, 0
      %v1573 = vsel %vm1556, %v1531, 0
      %v1576 = vsel %vm1556, %v1532, 0
      %v1579 = vsel %vm1556, %v1533, 0
      %v1582 = vsel %vm1556, %v1534, 0
      %v1585 = vsel %vm1556, %v1535, 0
      %v1588 = vsel %vm1556, %v1536, 0
      %v1591 = vsel %vm1556, %v1537, 0
      %v1594 = vsel %vm1556, %v1538, 0
      %v1597 = vsel %vm1556, %v1539, 0
      %v1600 = vsel %vm1556, %v1540, 0
      %v1603 = vsel %vm1556, %v1541, 0
      %v1606 = vsel %vm1556, %v1542, 0
      %v1609 = vsel %vm1556, %v1543, 0
      %v1612 = vsel %vm1556, %v1544, 0
      %v1615 = vsel %vm1556, %v1545, 0
      %1617 = vmatprep.subr.mxu0 %v1447
      %1618 = vmatpush1.msra.mxu0 %v1446
      %1619 = vmatprep.subr.mxu0 %v1467
      %1620 = vmatpush1.msra.mxu0 %v1466
      %1621 = vmatprep.subr.mxu0 %v1487
      %1622 = vmatpush1.msra.mxu0 %v1486
      %1623 = vmatprep.subr.mxu0 %v1507
      %1624 = vmatpush1.msra.mxu0 %v1506
      %1625 = vmatprep.subr.mxu0 %v1561
      %1626 = vmatpush1.msra.mxu0 %v1558
      %1627 = vmatprep.subr.mxu0 0.0
      %1628 = vmatpush1.msra.mxu0 0.0
      %1629 = vmatprep.subr.mxu0 0.0
      %1630 = vmatpush1.msra.mxu0 0.0
      %1631 = vmatprep.subr.mxu0 0.0
      %1632 = vmatpush1.msra.mxu0 0.0
      %1633 = vmatprep.subr.mxu0 0.0
      %1634 = vmatpush1.msra.mxu0 0.0
      %1635 = vmatprep.subr.mxu0 0.0
      %1636 = vmatpush1.msra.mxu0 0.0
      %1637 = vmatprep.subr.mxu0 0.0
      %1638 = vmatpush1.msra.mxu0 0.0
      %1639 = vmatprep.subr.mxu0 0.0
      %1640 = vmatpush1.msra.mxu0 0.0
      %1641 = vmatprep.subr.mxu0 0.0
      %1642 = vmatpush1.msra.mxu0 0.0
      %1643 = vmatprep.subr.mxu0 0.0
      %1644 = vmatpush1.msra.mxu0 0.0
      %1645 = vmatprep.subr.mxu0 0.0
      %1646 = vmatpush1.msra.mxu0 0.0
      %1647 = vmatprep.subr.mxu0 0.0
      %1648 = vmatpush1.msra.mxu0 0.0
      %1649 = vmatprep.subr.mxu0 0.0
      %1650 = vmatpush1.msra.mxu0 0.0
      %1651 = vmatprep.subr.mxu0 0.0
      %1652 = vmatpush1.msra.mxu0 0.0
      %1653 = vmatprep.subr.mxu0 0.0
      %1654 = vmatpush1.msra.mxu0 0.0
      %1655 = vmatprep.subr.mxu0 0.0
      %1656 = vmatpush1.msra.mxu0 0.0
      %1657 = vmatprep.subr.mxu0 0.0
      %1658 = vmatpush1.msra.mxu0 0.0
      %1659 = vmatprep.subr.mxu0 0.0
      %1660 = vmatpush1.msra.mxu0 0.0
      %1661 = vmatprep.subr.mxu0 0.0
      %1662 = vmatpush1.msra.mxu0 0.0
      %1663 = vmatprep.subr.mxu0 0.0
      %1664 = vmatpush1.msra.mxu0 0.0
      %1665 = vmatprep.subr.mxu0 0.0
      %1666 = vmatpush1.msra.mxu0 0.0
      %1667 = vmatprep.subr.mxu0 0.0
      %1668 = vmatpush1.msra.mxu0 0.0
      %1669 = vmatprep.subr.mxu0 0.0
      %1670 = vmatpush1.msra.mxu0 0.0
      %1671 = vmatprep.subr.mxu0 0.0
      %1672 = vmatpush1.msra.mxu0 0.0
      %1673 = vmatprep.subr.mxu0 0.0
      %1674 = vmatpush1.msra.mxu0 0.0
      %1675 = vmatprep.subr.mxu0 0.0
      %1676 = vmatpush1.msra.mxu0 0.0
      %1677 = vmatprep.subr.mxu0 0.0
      %1678 = vmatpush1.msra.mxu0 0.0
      %1679 = vmatprep.subr.mxu0 0.0
      %1680 = vmatpush1.msra.mxu0 0.0
      %1681 = vmatprep.mubr.f32.mxu0 0.0
      %1682 = vmatmul.mubr.f32.gmra.mrb[0].mxu0 %v1554
      %v1683 = vpop.f32.mrb[0].mxu0
      %v1684 = vadd.f32 %v1550, %v1683
      %v1685 = vpop.f32.mrb[0].mxu0
      %v1686 = vadd.f32 %v1550, %v1685
      %1687 = vdwg.mxu0
      %1688 = vmatprep.subr.mxu0 %v1449
      %1689 = vmatpush1.msra.mxu0 %v1448
      %1690 = vmatprep.subr.mxu0 %v1469
      %1691 = vmatpush1.msra.mxu0 %v1468
      %1692 = vmatprep.subr.mxu0 %v1489
      %1693 = vmatpush1.msra.mxu0 %v1488
      %1694 = vmatprep.subr.mxu0 %v1509
      %1695 = vmatpush1.msra.mxu0 %v1508
      %1696 = vmatprep.subr.mxu0 %v1567
      %1697 = vmatpush1.msra.mxu0 %v1564
      %1698 = vmatprep.subr.mxu0 0.0
      %1699 = vmatpush1.msra.mxu0 0.0
      %1700 = vmatprep.subr.mxu0 0.0
      %1701 = vmatpush1.msra.mxu0 0.0
      %1702 = vmatprep.subr.mxu0 0.0
      %1703 = vmatpush1.msra.mxu0 0.0
      %1704 = vmatprep.subr.mxu0 0.0
      %1705 = vmatpush1.msra.mxu0 0.0
      %1706 = vmatprep.subr.mxu0 0.0
      %1707 = vmatpush1.msra.mxu0 0.0
      %1708 = vmatprep.subr.mxu0 0.0
      %1709 = vmatpush1.msra.mxu0 0.0
      %1710 = vmatprep.subr.mxu0 0.0
      %1711 = vmatpush1.msra.mxu0 0.0
      %1712 = vmatprep.subr.mxu0 0.0
      %1713 = vmatpush1.msra.mxu0 0.0
      %1714 = vmatprep.subr.mxu0 0.0
      %1715 = vmatpush1.msra.mxu0 0.0
      %1716 = vmatprep.subr.mxu0 0.0
      %1717 = vmatpush1.msra.mxu0 0.0
      %1718 = vmatprep.subr.mxu0 0.0
      %1719 = vmatpush1.msra.mxu0 0.0
      %1720 = vmatprep.subr.mxu0 0.0
      %1721 = vmatpush1.msra.mxu0 0.0
      %1722 = vmatprep.subr.mxu0 0.0
      %1723 = vmatpush1.msra.mxu0 0.0
      %1724 = vmatprep.subr.mxu0 0.0
      %1725 = vmatpush1.msra.mxu0 0.0
      %1726 = vmatprep.subr.mxu0 0.0
      %1727 = vmatpush1.msra.mxu0 0.0
      %1728 = vmatprep.subr.mxu0 0.0
      %1729 = vmatpush1.msra.mxu0 0.0
      %1730 = vmatprep.subr.mxu0 0.0
      %1731 = vmatpush1.msra.mxu0 0.0
      %1732 = vmatprep.subr.mxu0 0.0
      %1733 = vmatpush1.msra.mxu0 0.0
      %1734 = vmatprep.subr.mxu0 0.0
      %1735 = vmatpush1.msra.mxu0 0.0
      %1736 = vmatprep.subr.mxu0 0.0
      %1737 = vmatpush1.msra.mxu0 0.0
      %1738 = vmatprep.subr.mxu0 0.0
      %1739 = vmatpush1.msra.mxu0 0.0
      %1740 = vmatprep.subr.mxu0 0.0
      %1741 = vmatpush1.msra.mxu0 0.0
      %1742 = vmatprep.subr.mxu0 0.0
      %1743 = vmatpush1.msra.mxu0 0.0
      %1744 = vmatprep.subr.mxu0 0.0
      %1745 = vmatpush1.msra.mxu0 0.0
      %1746 = vmatprep.subr.mxu0 0.0
      %1747 = vmatpush1.msra.mxu0 0.0
      %1748 = vmatprep.subr.mxu0 0.0
      %1749 = vmatpush1.msra.mxu0 0.0
      %1750 = vmatprep.subr.mxu0 0.0
      %1751 = vmatpush1.msra.mxu0 0.0
      %1752 = vmatprep.mubr.f32.mxu0 0.0
      %1753 = vmatmul.mubr.f32.gmra.mrb[0].mxu0 %v1554
      %v1754 = vpop.f32.mrb[0].mxu0
      %v1755 = vadd.f32 %v1550, %v1754
      %v1756 = vpop.f32.mrb[0].mxu0
      %v1757 = vadd.f32 %v1550, %v1756
      %1758 = vdwg.mxu0
      %1759 = vmatprep.subr.mxu0 %v1451
      %1760 = vmatpush1.msra.mxu0 %v1450
      %1761 = vmatprep.subr.mxu0 %v1471
      %1762 = vmatpush1.msra.mxu0 %v1470
      %1763 = vmatprep.subr.mxu0 %v1491
      %1764 = vmatpush1.msra.mxu0 %v1490
      %1765 = vmatprep.subr.mxu0 %v1511
      %1766 = vmatpush1.msra.mxu0 %v1510
      %1767 = vmatprep.subr.mxu0 %v1573
      %1768 = vmatpush1.msra.mxu0 %v1570
      %1769 = vmatprep.subr.mxu0 0.0
      %1770 = vmatpush1.msra.mxu0 0.0
      %1771 = vmatprep.subr.mxu0 0.0
      %1772 = vmatpush1.msra.mxu0 0.0
      %1773 = vmatprep.subr.mxu0 0.0
      %1774 = vmatpush1.msra.mxu0 0.0
      %1775 = vmatprep.subr.mxu0 0.0
      %1776 = vmatpush1.msra.mxu0 0.0
      %1777 = vmatprep.subr.mxu0 0.0
      %1778 = vmatpush1.msra.mxu0 0.0
      %1779 = vmatprep.subr.mxu0 0.0
      %1780 = vmatpush1.msra.mxu0 0.0
      %1781 = vmatprep.subr.mxu0 0.0
      %1782 = vmatpush1.msra.mxu0 0.0
      %1783 = vmatprep.subr.mxu0 0.0
      %1784 = vmatpush1.msra.mxu0 0.0
      %1785 = vmatprep.subr.mxu0 0.0
      %1786 = vmatpush1.msra.mxu0 0.0
      %1787 = vmatprep.subr.mxu0 0.0
      %1788 = vmatpush1.msra.mxu0 0.0
      %1789 = vmatprep.subr.mxu0 0.0
      %1790 = vmatpush1.msra.mxu0 0.0
      %1791 = vmatprep.subr.mxu0 0.0
      %1792 = vmatpush1.msra.mxu0 0.0
      %1793 = vmatprep.subr.mxu0 0.0
      %1794 = vmatpush1.msra.mxu0 0.0
      %1795 = vmatprep.subr.mxu0 0.0
      %1796 = vmatpush1.msra.mxu0 0.0
      %1797 = vmatprep.subr.mxu0 0.0
      %1798 = vmatpush1.msra.mxu0 0.0
      %1799 = vmatprep.subr.mxu0 0.0
      %1800 = vmatpush1.msra.mxu0 0.0
      %1801 = vmatprep.subr.mxu0 0.0
      %1802 = vmatpush1.msra.mxu0 0.0
      %1803 = vmatprep.subr.mxu0 0.0
      %1804 = vmatpush1.msra.mxu0 0.0
      %1805 = vmatprep.subr.mxu0 0.0
      %1806 = vmatpush1.msra.mxu0 0.0
      %1807 = vmatprep.subr.mxu0 0.0
      %1808 = vmatpush1.msra.mxu0 0.0
      %1809 = vmatprep.subr.mxu0 0.0
      %1810 = vmatpush1.msra.mxu0 0.0
      %1811 = vmatprep.subr.mxu0 0.0
      %1812 = vmatpush1.msra.mxu0 0.0
      %1813 = vmatprep.subr.mxu0 0.0
      %1814 = vmatpush1.msra.mxu0 0.0
      %1815 = vmatprep.subr.mxu0 0.0
      %1816 = vmatpush1.msra.mxu0 0.0
      %1817 = vmatprep.subr.mxu0 0.0
      %1818 = vmatpush1.msra.mxu0 0.0
      %1819 = vmatprep.subr.mxu0 0.0
      %1820 = vmatpush1.msra.mxu0 0.0
      %1821 = vmatprep.subr.mxu0 0.0
      %1822 = vmatpush1.msra.mxu0 0.0
      %1823 = vmatprep.mubr.f32.mxu0 0.0
      %1824 = vmatmul.mubr.f32.gmra.mrb[0].mxu0 %v1554
      %v1825 = vpop.f32.mrb[0].mxu0
      %v1826 = vadd.f32 %v1550, %v1825
      %v1827 = vpop.f32.mrb[0].mxu0
      %v1828 = vadd.f32 %v1550, %v1827
      %1829 = vdwg.mxu0
      %1830 = vmatprep.subr.mxu0 %v1453
      %1831 = vmatpush1.msra.mxu0 %v1452
      %1832 = vmatprep.subr.mxu0 %v1473
      %1833 = vmatpush1.msra.mxu0 %v1472
      %1834 = vmatprep.subr.mxu0 %v1493
      %1835 = vmatpush1.msra.mxu0 %v1492
      %1836 = vmatprep.subr.mxu0 %v1513
      %1837 = vmatpush1.msra.mxu0 %v1512
      %1838 = vmatprep.subr.mxu0 %v1579
      %1839 = vmatpush1.msra.mxu0 %v1576
      %1840 = vmatprep.subr.mxu0 0.0
      %1841 = vmatpush1.msra.mxu0 0.0
      %1842 = vmatprep.subr.mxu0 0.0
      %1843 = vmatpush1.msra.mxu0 0.0
      %1844 = vmatprep.subr.mxu0 0.0
      %1845 = vmatpush1.msra.mxu0 0.0
      %1846 = vmatprep.subr.mxu0 0.0
      %1847 = vmatpush1.msra.mxu0 0.0
      %1848 = vmatprep.subr.mxu0 0.0
      %1849 = vmatpush1.msra.mxu0 0.0
      %1850 = vmatprep.subr.mxu0 0.0
      %1851 = vmatpush1.msra.mxu0 0.0
      %1852 = vmatprep.subr.mxu0 0.0
      %1853 = vmatpush1.msra.mxu0 0.0
      %1854 = vmatprep.subr.mxu0 0.0
      %1855 = vmatpush1.msra.mxu0 0.0
      %1856 = vmatprep.subr.mxu0 0.0
      %1857 = vmatpush1.msra.mxu0 0.0
      %1858 = vmatprep.subr.mxu0 0.0
      %1859 = vmatpush1.msra.mxu0 0.0
      %1860 = vmatprep.subr.mxu0 0.0
      %1861 = vmatpush1.msra.mxu0 0.0
      %1862 = vmatprep.subr.mxu0 0.0
      %1863 = vmatpush1.msra.mxu0 0.0
      %1864 = vmatprep.subr.mxu0 0.0
      %1865 = vmatpush1.msra.mxu0 0.0
      %1866 = vmatprep.subr.mxu0 0.0
      %1867 = vmatpush1.msra.mxu0 0.0
      %1868 = vmatprep.subr.mxu0 0.0
      %1869 = vmatpush1.msra.mxu0 0.0
      %1870 = vmatprep.subr.mxu0 0.0
      %1871 = vmatpush1.msra.mxu0 0.0
      %1872 = vmatprep.subr.mxu0 0.0
      %1873 = vmatpush1.msra.mxu0 0.0
      %1874 = vmatprep.subr.mxu0 0.0
      %1875 = vmatpush1.msra.mxu0 0.0
      %1876 = vmatprep.subr.mxu0 0.0
      %1877 = vmatpush1.msra.mxu0 0.0
      %1878 = vmatprep.subr.mxu0 0.0
      %1879 = vmatpush1.msra.mxu0 0.0
      %1880 = vmatprep.subr.mxu0 0.0
      %1881 = vmatpush1.msra.mxu0 0.0
      %1882 = vmatprep.subr.mxu0 0.0
      %1883 = vmatpush1.msra.mxu0 0.0
      %1884 = vmatprep.subr.mxu0 0.0
      %1885 = vmatpush1.msra.mxu0 0.0
      %1886 = vmatprep.subr.mxu0 0.0
      %1887 = vmatpush1.msra.mxu0 0.0
      %1888 = vmatprep.subr.mxu0 0.0
      %1889 = vmatpush1.msra.mxu0 0.0
      %1890 = vmatprep.subr.mxu0 0.0
      %1891 = vmatpush1.msra.mxu0 0.0
      %1892 = vmatprep.subr.mxu0 0.0
      %1893 = vmatpush1.msra.mxu0 0.0
      %1894 = vmatprep.mubr.f32.mxu0 0.0
      %1895 = vmatmul.mubr.f32.gmra.mrb[0].mxu0 %v1554
      %v1896 = vpop.f32.mrb[0].mxu0
      %v1897 = vadd.f32 %v1550, %v1896
      %v1898 = vpop.f32.mrb[0].mxu0
      %v1899 = vadd.f32 %v1550, %v1898
      %1900 = vdwg.mxu0
      %1901 = vmatprep.subr.mxu0 %v1455
      %1902 = vmatpush1.msra.mxu0 %v1454
      %1903 = vmatprep.subr.mxu0 %v1475
      %1904 = vmatpush1.msra.mxu0 %v1474
      %1905 = vmatprep.subr.mxu0 %v1495
      %1906 = vmatpush1.msra.mxu0 %v1494
      %1907 = vmatprep.subr.mxu0 %v1515
      %1908 = vmatpush1.msra.mxu0 %v1514
      %1909 = vmatprep.subr.mxu0 %v1585
      %1910 = vmatpush1.msra.mxu0 %v1582
      %1911 = vmatprep.subr.mxu0 0.0
      %1912 = vmatpush1.msra.mxu0 0.0
      %1913 = vmatprep.subr.mxu0 0.0
      %1914 = vmatpush1.msra.mxu0 0.0
      %1915 = vmatprep.subr.mxu0 0.0
      %1916 = vmatpush1.msra.mxu0 0.0
      %1917 = vmatprep.subr.mxu0 0.0
      %1918 = vmatpush1.msra.mxu0 0.0
      %1919 = vmatprep.subr.mxu0 0.0
      %1920 = vmatpush1.msra.mxu0 0.0
      %1921 = vmatprep.subr.mxu0 0.0
      %1922 = vmatpush1.msra.mxu0 0.0
      %1923 = vmatprep.subr.mxu0 0.0
      %1924 = vmatpush1.msra.mxu0 0.0
      %1925 = vmatprep.subr.mxu0 0.0
      %1926 = vmatpush1.msra.mxu0 0.0
      %1927 = vmatprep.subr.mxu0 0.0
      %1928 = vmatpush1.msra.mxu0 0.0
      %1929 = vmatprep.subr.mxu0 0.0
      %1930 = vmatpush1.msra.mxu0 0.0
      %1931 = vmatprep.subr.mxu0 0.0
      %1932 = vmatpush1.msra.mxu0 0.0
      %1933 = vmatprep.subr.mxu0 0.0
      %1934 = vmatpush1.msra.mxu0 0.0
      %1935 = vmatprep.subr.mxu0 0.0
      %1936 = vmatpush1.msra.mxu0 0.0
      %1937 = vmatprep.subr.mxu0 0.0
      %1938 = vmatpush1.msra.mxu0 0.0
      %1939 = vmatprep.subr.mxu0 0.0
      %1940 = vmatpush1.msra.mxu0 0.0
      %1941 = vmatprep.subr.mxu0 0.0
      %1942 = vmatpush1.msra.mxu0 0.0
      %1943 = vmatprep.subr.mxu0 0.0
      %1944 = vmatpush1.msra.mxu0 0.0
      %1945 = vmatprep.subr.mxu0 0.0
      %1946 = vmatpush1.msra.mxu0 0.0
      %1947 = vmatprep.subr.mxu0 0.0
      %1948 = vmatpush1.msra.mxu0 0.0
      %1949 = vmatprep.subr.mxu0 0.0
      %1950 = vmatpush1.msra.mxu0 0.0
      %1951 = vmatprep.subr.mxu0 0.0
      %1952 = vmatpush1.msra.mxu0 0.0
      %1953 = vmatprep.subr.mxu0 0.0
      %1954 = vmatpush1.msra.mxu0 0.0
      %1955 = vmatprep.subr.mxu0 0.0
      %1956 = vmatpush1.msra.mxu0 0.0
      %1957 = vmatprep.subr.mxu0 0.0
      %1958 = vmatpush1.msra.mxu0 0.0
      %1959 = vmatprep.subr.mxu0 0.0
      %1960 = vmatpush1.msra.mxu0 0.0
      %1961 = vmatprep.subr.mxu0 0.0
      %1962 = vmatpush1.msra.mxu0 0.0
      %1963 = vmatprep.subr.mxu0 0.0
      %1964 = vmatpush1.msra.mxu0 0.0
      %1965 = vmatprep.mubr.f32.mxu0 0.0
      %1966 = vmatmul.mubr.f32.gmra.mrb[0].mxu0 %v1554
      %v1967 = vpop.f32.mrb[0].mxu0
      %v1968 = vadd.f32 %v1550, %v1967
      %v1969 = vpop.f32.mrb[0].mxu0
      %v1970 = vadd.f32 %v1550, %v1969
      %1971 = vdwg.mxu0
      %1972 = vmatprep.subr.mxu0 %v1457
      %1973 = vmatpush1.msra.mxu0 %v1456
      %1974 = vmatprep.subr.mxu0 %v1477
      %1975 = vmatpush1.msra.mxu0 %v1476
      %1976 = vmatprep.subr.mxu0 %v1497
      %1977 = vmatpush1.msra.mxu0 %v1496
      %1978 = vmatprep.subr.mxu0 %v1517
      %1979 = vmatpush1.msra.mxu0 %v1516
      %1980 = vmatprep.subr.mxu0 %v1591
      %1981 = vmatpush1.msra.mxu0 %v1588
      %1982 = vmatprep.subr.mxu0 0.0
      %1983 = vmatpush1.msra.mxu0 0.0
      %1984 = vmatprep.subr.mxu0 0.0
      %1985 = vmatpush1.msra.mxu0 0.0
      %1986 = vmatprep.subr.mxu0 0.0
      %1987 = vmatpush1.msra.mxu0 0.0
      %1988 = vmatprep.subr.mxu0 0.0
      %1989 = vmatpush1.msra.mxu0 0.0
      %1990 = vmatprep.subr.mxu0 0.0
      %1991 = vmatpush1.msra.mxu0 0.0
      %1992 = vmatprep.subr.mxu0 0.0
      %1993 = vmatpush1.msra.mxu0 0.0
      %1994 = vmatprep.subr.mxu0 0.0
      %1995 = vmatpush1.msra.mxu0 0.0
      %1996 = vmatprep.subr.mxu0 0.0
      %1997 = vmatpush1.msra.mxu0 0.0
      %1998 = vmatprep.subr.mxu0 0.0
      %1999 = vmatpush1.msra.mxu0 0.0
      %2000 = vmatprep.subr.mxu0 0.0
      %2001 = vmatpush1.msra.mxu0 0.0
      %2002 = vmatprep.subr.mxu0 0.0
      %2003 = vmatpush1.msra.mxu0 0.0
      %2004 = vmatprep.subr.mxu0 0.0
      %2005 = vmatpush1.msra.mxu0 0.0
      %2006 = vmatprep.subr.mxu0 0.0
      %2007 = vmatpush1.msra.mxu0 0.0
      %2008 = vmatprep.subr.mxu0 0.0
      %2009 = vmatpush1.msra.mxu0 0.0
      %2010 = vmatprep.subr.mxu0 0.0
      %2011 = vmatpush1.msra.mxu0 0.0
      %2012 = vmatprep.subr.mxu0 0.0
      %2013 = vmatpush1.msra.mxu0 0.0
      %2014 = vmatprep.subr.mxu0 0.0
      %2015 = vmatpush1.msra.mxu0 0.0
      %2016 = vmatprep.subr.mxu0 0.0
      %2017 = vmatpush1.msra.mxu0 0.0
      %2018 = vmatprep.subr.mxu0 0.0
      %2019 = vmatpush1.msra.mxu0 0.0
      %2020 = vmatprep.subr.mxu0 0.0
      %2021 = vmatpush1.msra.mxu0 0.0
      %2022 = vmatprep.subr.mxu0 0.0
      %2023 = vmatpush1.msra.mxu0 0.0
      %2024 = vmatprep.subr.mxu0 0.0
      %2025 = vmatpush1.msra.mxu0 0.0
      %2026 = vmatprep.subr.mxu0 0.0
      %2027 = vmatpush1.msra.mxu0 0.0
      %2028 = vmatprep.subr.mxu0 0.0
      %2029 = vmatpush1.msra.mxu0 0.0
      %2030 = vmatprep.subr.mxu0 0.0
      %2031 = vmatpush1.msra.mxu0 0.0
      %2032 = vmatprep.subr.mxu0 0.0
      %2033 = vmatpush1.msra.mxu0 0.0
      %2034 = vmatprep.subr.mxu0 0.0
      %2035 = vmatpush1.msra.mxu0 0.0
      %2036 = vmatprep.mubr.f32.mxu0 0.0
      %2037 = vmatmul.mubr.f32.gmra.mrb[0].mxu0 %v1554
      %v2038 = vpop.f32.mrb[0].mxu0
      %v2039 = vadd.f32 %v1550, %v2038
      %v2040 = vpop.f32.mrb[0].mxu0
      %v2041 = vadd.f32 %v1550, %v2040
      %2042 = vdwg.mxu0
      %2043 = vmatprep.subr.mxu0 %v1459
      %2044 = vmatpush1.msra.mxu0 %v1458
      %2045 = vmatprep.subr.mxu0 %v1479
      %2046 = vmatpush1.msra.mxu0 %v1478
      %2047 = vmatprep.subr.mxu0 %v1499
      %2048 = vmatpush1.msra.mxu0 %v1498
      %2049 = vmatprep.subr.mxu0 %v1519
      %2050 = vmatpush1.msra.mxu0 %v1518
      %2051 = vmatprep.subr.mxu0 %v1597
      %2052 = vmatpush1.msra.mxu0 %v1594
      %2053 = vmatprep.subr.mxu0 0.0
      %2054 = vmatpush1.msra.mxu0 0.0
      %2055 = vmatprep.subr.mxu0 0.0
      %2056 = vmatpush1.msra.mxu0 0.0
      %2057 = vmatprep.subr.mxu0 0.0
      %2058 = vmatpush1.msra.mxu0 0.0
      %2059 = vmatprep.subr.mxu0 0.0
      %2060 = vmatpush1.msra.mxu0 0.0
      %2061 = vmatprep.subr.mxu0 0.0
      %2062 = vmatpush1.msra.mxu0 0.0
      %2063 = vmatprep.subr.mxu0 0.0
      %2064 = vmatpush1.msra.mxu0 0.0
      %2065 = vmatprep.subr.mxu0 0.0
      %2066 = vmatpush1.msra.mxu0 0.0
      %2067 = vmatprep.subr.mxu0 0.0
      %2068 = vmatpush1.msra.mxu0 0.0
      %2069 = vmatprep.subr.mxu0 0.0
      %2070 = vmatpush1.msra.mxu0 0.0
      %2071 = vmatprep.subr.mxu0 0.0
      %2072 = vmatpush1.msra.mxu0 0.0
      %2073 = vmatprep.subr.mxu0 0.0
      %2074 = vmatpush1.msra.mxu0 0.0
      %2075 = vmatprep.subr.mxu0 0.0
      %2076 = vmatpush1.msra.mxu0 0.0
      %2077 = vmatprep.subr.mxu0 0.0
      %2078 = vmatpush1.msra.mxu0 0.0
      %2079 = vmatprep.subr.mxu0 0.0
      %2080 = vmatpush1.msra.mxu0 0.0
      %2081 = vmatprep.subr.mxu0 0.0
      %2082 = vmatpush1.msra.mxu0 0.0
      %2083 = vmatprep.subr.mxu0 0.0
      %2084 = vmatpush1.msra.mxu0 0.0
      %2085 = vmatprep.subr.mxu0 0.0
      %2086 = vmatpush1.msra.mxu0 0.0
      %2087 = vmatprep.subr.mxu0 0.0
      %2088 = vmatpush1.msra.mxu0 0.0
      %2089 = vmatprep.subr.mxu0 0.0
      %2090 = vmatpush1.msra.mxu0 0.0
      %2091 = vmatprep.subr.mxu0 0.0
      %2092 = vmatpush1.msra.mxu0 0.0
      %2093 = vmatprep.subr.mxu0 0.0
      %2094 = vmatpush1.msra.mxu0 0.0
      %2095 = vmatprep.subr.mxu0 0.0
      %2096 = vmatpush1.msra.mxu0 0.0
      %2097 = vmatprep.subr.mxu0 0.0
      %2098 = vmatpush1.msra.mxu0 0.0
      %2099 = vmatprep.subr.mxu0 0.0
      %2100 = vmatpush1.msra.mxu0 0.0
      %2101 = vmatprep.subr.mxu0 0.0
      %2102 = vmatpush1.msra.mxu0 0.0
      %2103 = vmatprep.subr.mxu0 0.0
      %2104 = vmatpush1.msra.mxu0 0.0
      %2105 = vmatprep.subr.mxu0 0.0
      %2106 = vmatpush1.msra.mxu0 0.0
      %2107 = vmatprep.mubr.f32.mxu0 0.0
      %2108 = vmatmul.mubr.f32.gmra.mrb[0].mxu0 %v1554
      %v2109 = vpop.f32.mrb[0].mxu0
      %v2110 = vadd.f32 %v1550, %v2109
      %v2111 = vpop.f32.mrb[0].mxu0
      %v2112 = vadd.f32 %v1550, %v2111
      %2113 = vdwg.mxu0
      %2114 = vmatprep.subr.mxu0 %v1461
      %2115 = vmatpush1.msra.mxu0 %v1460
      %2116 = vmatprep.subr.mxu0 %v1481
      %2117 = vmatpush1.msra.mxu0 %v1480
      %2118 = vmatprep.subr.mxu0 %v1501
      %2119 = vmatpush1.msra.mxu0 %v1500
      %2120 = vmatprep.subr.mxu0 %v1521
      %2121 = vmatpush1.msra.mxu0 %v1520
      %2122 = vmatprep.subr.mxu0 %v1603
      %2123 = vmatpush1.msra.mxu0 %v1600
      %2124 = vmatprep.subr.mxu0 0.0
      %2125 = vmatpush1.msra.mxu0 0.0
      %2126 = vmatprep.subr.mxu0 0.0
      %2127 = vmatpush1.msra.mxu0 0.0
      %2128 = vmatprep.subr.mxu0 0.0
      %2129 = vmatpush1.msra.mxu0 0.0
      %2130 = vmatprep.subr.mxu0 0.0
      %2131 = vmatpush1.msra.mxu0 0.0
      %2132 = vmatprep.subr.mxu0 0.0
      %2133 = vmatpush1.msra.mxu0 0.0
      %2134 = vmatprep.subr.mxu0 0.0
      %2135 = vmatpush1.msra.mxu0 0.0
      %2136 = vmatprep.subr.mxu0 0.0
      %2137 = vmatpush1.msra.mxu0 0.0
      %2138 = vmatprep.subr.mxu0 0.0
      %2139 = vmatpush1.msra.mxu0 0.0
      %2140 = vmatprep.subr.mxu0 0.0
      %2141 = vmatpush1.msra.mxu0 0.0
      %2142 = vmatprep.subr.mxu0 0.0
      %2143 = vmatpush1.msra.mxu0 0.0
      %2144 = vmatprep.subr.mxu0 0.0
      %2145 = vmatpush1.msra.mxu0 0.0
      %2146 = vmatprep.subr.mxu0 0.0
      %2147 = vmatpush1.msra.mxu0 0.0
      %2148 = vmatprep.subr.mxu0 0.0
      %2149 = vmatpush1.msra.mxu0 0.0
      %2150 = vmatprep.subr.mxu0 0.0
      %2151 = vmatpush1.msra.mxu0 0.0
      %2152 = vmatprep.subr.mxu0 0.0
      %2153 = vmatpush1.msra.mxu0 0.0
      %2154 = vmatprep.subr.mxu0 0.0
      %2155 = vmatpush1.msra.mxu0 0.0
      %2156 = vmatprep.subr.mxu0 0.0
      %2157 = vmatpush1.msra.mxu0 0.0
      %2158 = vmatprep.subr.mxu0 0.0
      %2159 = vmatpush1.msra.mxu0 0.0
      %2160 = vmatprep.subr.mxu0 0.0
      %2161 = vmatpush1.msra.mxu0 0.0
      %2162 = vmatprep.subr.mxu0 0.0
      %2163 = vmatpush1.msra.mxu0 0.0
      %2164 = vmatprep.subr.mxu0 0.0
      %2165 = vmatpush1.msra.mxu0 0.0
      %2166 = vmatprep.subr.mxu0 0.0
      %2167 = vmatpush1.msra.mxu0 0.0
      %2168 = vmatprep.subr.mxu0 0.0
      %2169 = vmatpush1.msra.mxu0 0.0
      %2170 = vmatprep.subr.mxu0 0.0
      %2171 = vmatpush1.msra.mxu0 0.0
      %2172 = vmatprep.subr.mxu0 0.0
      %2173 = vmatpush1.msra.mxu0 0.0
      %2174 = vmatprep.subr.mxu0 0.0
      %2175 = vmatpush1.msra.mxu0 0.0
      %2176 = vmatprep.subr.mxu0 0.0
      %2177 = vmatpush1.msra.mxu0 0.0
      %2178 = vmatprep.mubr.f32.mxu0 0.0
      %2179 = vmatmul.mubr.f32.gmra.mrb[0].mxu0 %v1554
      %v2180 = vpop.f32.mrb[0].mxu0
      %v2181 = vadd.f32 %v1550, %v2180
      %v2182 = vpop.f32.mrb[0].mxu0
      %v2183 = vadd.f32 %v1550, %v2182
      %2184 = vdwg.mxu0
      %2185 = vmatprep.subr.mxu0 %v1463
      %2186 = vmatpush1.msra.mxu0 %v1462
      %2187 = vmatprep.subr.mxu0 %v1483
      %2188 = vmatpush1.msra.mxu0 %v1482
      %2189 = vmatprep.subr.mxu0 %v1503
      %2190 = vmatpush1.msra.mxu0 %v1502
      %2191 = vmatprep.subr.mxu0 %v1523
      %2192 = vmatpush1.msra.mxu0 %v1522
      %2193 = vmatprep.subr.mxu0 %v1609
      %2194 = vmatpush1.msra.mxu0 %v1606
      %2195 = vmatprep.subr.mxu0 0.0
      %2196 = vmatpush1.msra.mxu0 0.0
      %2197 = vmatprep.subr.mxu0 0.0
      %2198 = vmatpush1.msra.mxu0 0.0
      %2199 = vmatprep.subr.mxu0 0.0
      %2200 = vmatpush1.msra.mxu0 0.0
      %2201 = vmatprep.subr.mxu0 0.0
      %2202 = vmatpush1.msra.mxu0 0.0
      %2203 = vmatprep.subr.mxu0 0.0
      %2204 = vmatpush1.msra.mxu0 0.0
      %2205 = vmatprep.subr.mxu0 0.0
      %2206 = vmatpush1.msra.mxu0 0.0
      %2207 = vmatprep.subr.mxu0 0.0
      %2208 = vmatpush1.msra.mxu0 0.0
      %2209 = vmatprep.subr.mxu0 0.0
      %2210 = vmatpush1.msra.mxu0 0.0
      %2211 = vmatprep.subr.mxu0 0.0
      %2212 = vmatpush1.msra.mxu0 0.0
      %2213 = vmatprep.subr.mxu0 0.0
      %2214 = vmatpush1.msra.mxu0 0.0
      %2215 = vmatprep.subr.mxu0 0.0
      %2216 = vmatpush1.msra.mxu0 0.0
      %2217 = vmatprep.subr.mxu0 0.0
      %2218 = vmatpush1.msra.mxu0 0.0
      %2219 = vmatprep.subr.mxu0 0.0
      %2220 = vmatpush1.msra.mxu0 0.0
      %2221 = vmatprep.subr.mxu0 0.0
      %2222 = vmatpush1.msra.mxu0 0.0
      %2223 = vmatprep.subr.mxu0 0.0
      %2224 = vmatpush1.msra.mxu0 0.0
      %2225 = vmatprep.subr.mxu0 0.0
      %2226 = vmatpush1.msra.mxu0 0.0
      %2227 = vmatprep.subr.mxu0 0.0
      %2228 = vmatpush1.msra.mxu0 0.0
      %2229 = vmatprep.subr.mxu0 0.0
      %2230 = vmatpush1.msra.mxu0 0.0
      %2231 = vmatprep.subr.mxu0 0.0
      %2232 = vmatpush1.msra.mxu0 0.0
      %2233 = vmatprep.subr.mxu0 0.0
      %2234 = vmatpush1.msra.mxu0 0.0
      %2235 = vmatprep.subr.mxu0 0.0
      %2236 = vmatpush1.msra.mxu0 0.0
      %2237 = vmatprep.subr.mxu0 0.0
      %2238 = vmatpush1.msra.mxu0 0.0
      %2239 = vmatprep.subr.mxu0 0.0
      %2240 = vmatpush1.msra.mxu0 0.0
      %2241 = vmatprep.subr.mxu0 0.0
      %2242 = vmatpush1.msra.mxu0 0.0
      %2243 = vmatprep.subr.mxu0 0.0
      %2244 = vmatpush1.msra.mxu0 0.0
      %2245 = vmatprep.subr.mxu0 0.0
      %2246 = vmatpush1.msra.mxu0 0.0
      %2247 = vmatprep.subr.mxu0 0.0
      %2248 = vmatpush1.msra.mxu0 0.0
      %2249 = vmatprep.mubr.f32.mxu0 0.0
      %2250 = vmatmul.mubr.f32.gmra.mrb[0].mxu0 %v1554
      %v2251 = vpop.f32.mrb[0].mxu0
      %v2252 = vadd.f32 %v1550, %v2251
      %v2253 = vpop.f32.mrb[0].mxu0
      %v2254 = vadd.f32 %v1550, %v2253
      %2255 = vdwg.mxu0
      %2256 = vmatprep.subr.mxu0 %v1465
      %2257 = vmatpush1.msra.mxu0 %v1464
      %2258 = vmatprep.subr.mxu0 %v1485
      %2259 = vmatpush1.msra.mxu0 %v1484
      %2260 = vmatprep.subr.mxu0 %v1505
      %2261 = vmatpush1.msra.mxu0 %v1504
      %2262 = vmatprep.subr.mxu0 %v1525
      %2263 = vmatpush1.msra.mxu0 %v1524
      %2264 = vmatprep.subr.mxu0 %v1615
      %2265 = vmatpush1.msra.mxu0 %v1612
      %2266 = vmatprep.subr.mxu0 0.0
      %2267 = vmatpush1.msra.mxu0 0.0
      %2268 = vmatprep.subr.mxu0 0.0
      %2269 = vmatpush1.msra.mxu0 0.0
      %2270 = vmatprep.subr.mxu0 0.0
      %2271 = vmatpush1.msra.mxu0 0.0
      %2272 = vmatprep.subr.mxu0 0.0
      %2273 = vmatpush1.msra.mxu0 0.0
      %2274 = vmatprep.subr.mxu0 0.0
      %2275 = vmatpush1.msra.mxu0 0.0
      %2276 = vmatprep.subr.mxu0 0.0
      %2277 = vmatpush1.msra.mxu0 0.0
      %2278 = vmatprep.subr.mxu0 0.0
      %2279 = vmatpush1.msra.mxu0 0.0
      %2280 = vmatprep.subr.mxu0 0.0
      %2281 = vmatpush1.msra.mxu0 0.0
      %2282 = vmatprep.subr.mxu0 0.0
      %2283 = vmatpush1.msra.mxu0 0.0
      %2284 = vmatprep.subr.mxu0 0.0
      %2285 = vmatpush1.msra.mxu0 0.0
      %2286 = vmatprep.subr.mxu0 0.0
      %2287 = vmatpush1.msra.mxu0 0.0
      %2288 = vmatprep.subr.mxu0 0.0
      %2289 = vmatpush1.msra.mxu0 0.0
      %2290 = vmatprep.subr.mxu0 0.0
      %2291 = vmatpush1.msra.mxu0 0.0
      %2292 = vmatprep.subr.mxu0 0.0
      %2293 = vmatpush1.msra.mxu0 0.0
      %2294 = vmatprep.subr.mxu0 0.0
      %2295 = vmatpush1.msra.mxu0 0.0
      %2296 = vmatprep.subr.mxu0 0.0
      %2297 = vmatpush1.msra.mxu0 0.0
      %2298 = vmatprep.subr.mxu0 0.0
      %2299 = vmatpush1.msra.mxu0 0.0
      %2300 = vmatprep.subr.mxu0 0.0
      %2301 = vmatpush1.msra.mxu0 0.0
      %2302 = vmatprep.subr.mxu0 0.0
      %2303 = vmatpush1.msra.mxu0 0.0
      %2304 = vmatprep.subr.mxu0 0.0
      %2305 = vmatpush1.msra.mxu0 0.0
      %2306 = vmatprep.subr.mxu0 0.0
      %2307 = vmatpush1.msra.mxu0 0.0
      %2308 = vmatprep.subr.mxu0 0.0
      %2309 = vmatpush1.msra.mxu0 0.0
      %2310 = vmatprep.subr.mxu0 0.0
      %2311 = vmatpush1.msra.mxu0 0.0
      %2312 = vmatprep.subr.mxu0 0.0
      %2313 = vmatpush1.msra.mxu0 0.0
      %2314 = vmatprep.subr.mxu0 0.0
      %2315 = vmatpush1.msra.mxu0 0.0
      %2316 = vmatprep.subr.mxu0 0.0
      %2317 = vmatpush1.msra.mxu0 0.0
      %2318 = vmatprep.subr.mxu0 0.0
      %2319 = vmatpush1.msra.mxu0 0.0
      %2320 = vmatprep.mubr.f32.mxu0 0.0
      %2321 = vmatmul.mubr.f32.gmra.mrb[0].mxu0 %v1554
      %v2322 = vpop.f32.mrb[0].mxu0
      %v2323 = vadd.f32 %v1550, %v2322
      %v2324 = vpop.f32.mrb[0].mxu0
      %v2325 = vadd.f32 %v1550, %v2324
      %2326 = vdwg.mxu0
      %v2327 = vmax.f32 %v1684, 0.0
      %v2328 = vmax.f32 %v1686, 0.0
      %v2329 = vmax.f32 %v1755, 0.0
      %v2330 = vmax.f32 %v1757, 0.0
      %v2331 = vmax.f32 %v1826, 0.0
      %v2332 = vmax.f32 %v1828, 0.0
      %v2333 = vmax.f32 %v1897, 0.0
      %v2334 = vmax.f32 %v1899, 0.0
      %v2335 = vmax.f32 %v1968, 0.0
      %v2336 = vmax.f32 %v1970, 0.0
      %v2337 = vmax.f32 %v2039, 0.0
      %v2338 = vmax.f32 %v2041, 0.0
      %v2339 = vmax.f32 %v2110, 0.0
      %v2340 = vmax.f32 %v2112, 0.0
      %v2341 = vmax.f32 %v2181, 0.0
      %v2342 = vmax.f32 %v2183, 0.0
      %v2343 = vmax.f32 %v2252, 0.0
      %v2344 = vmax.f32 %v2254, 0.0
      %v2345 = vmax.f32 %v2323, 0.0
      %v2346 = vmax.f32 %v2325, 0.0
      %v2347 = vld [vmem:[%s5] sm:$0xff]
      %v2348 = vld [vmem:[%s5 + $0x8] sm:$0xff]
      %v2349 = vld [vmem:[%s5 + $0x10] sm:$0xf]
      %v2353 = vlaneseq
      %v2354 = vshrl.u32 %v2353, 7
      %v2355 = vsub.s32 0, %v2354
      %v2356 = vrot.slane %v2347, %v2355
      %v2357 = vlaneseq
      %v2358 = vshrl.u32 %v2357, 7
      %v2359 = vsub.s32 1, %v2358
      %v2360 = vrot.slane %v2347, %v2359
      %v2361 = vlaneseq
      %v2362 = vshrl.u32 %v2361, 7
      %v2363 = vsub.s32 2, %v2362
      %v2364 = vrot.slane %v2347, %v2363
      %v2365 = vlaneseq
      %v2366 = vshrl.u32 %v2365, 7
      %v2367 = vsub.s32 3, %v2366
      %v2368 = vrot.slane %v2347, %v2367
      %v2369 = vlaneseq
      %v2370 = vshrl.u32 %v2369, 7
      %v2371 = vsub.s32 4, %v2370
      %v2372 = vrot.slane %v2347, %v2371
      %v2373 = vlaneseq
      %v2374 = vshrl.u32 %v2373, 7
      %v2375 = vsub.s32 5, %v2374
      %v2376 = vrot.slane %v2347, %v2375
      %v2377 = vlaneseq
      %v2378 = vshrl.u32 %v2377, 7
      %v2379 = vsub.s32 6, %v2378
      %v2380 = vrot.slane %v2347, %v2379
      %v2381 = vlaneseq
      %v2382 = vshrl.u32 %v2381, 7
      %v2383 = vsub.s32 7, %v2382
      %v2384 = vrot.slane %v2347, %v2383
      %v2385 = vlaneseq
      %v2386 = vshrl.u32 %v2385, 7
      %v2387 = vsub.s32 0, %v2386
      %v2388 = vrot.slane %v2348, %v2387
      %v2389 = vlaneseq
      %v2390 = vshrl.u32 %v2389, 7
      %v2391 = vsub.s32 1, %v2390
      %v2392 = vrot.slane %v2348, %v2391
      %v2393 = vlaneseq
      %v2394 = vshrl.u32 %v2393, 7
      %v2395 = vsub.s32 2, %v2394
      %v2396 = vrot.slane %v2348, %v2395
      %v2397 = vlaneseq
      %v2398 = vshrl.u32 %v2397, 7
      %v2399 = vsub.s32 3, %v2398
      %v2400 = vrot.slane %v2348, %v2399
      %v2401 = vlaneseq
      %v2402 = vshrl.u32 %v2401, 7
      %v2403 = vsub.s32 4, %v2402
      %v2404 = vrot.slane %v2348, %v2403
      %v2405 = vlaneseq
      %v2406 = vshrl.u32 %v2405, 7
      %v2407 = vsub.s32 5, %v2406
      %v2408 = vrot.slane %v2348, %v2407
      %v2409 = vlaneseq
      %v2410 = vshrl.u32 %v2409, 7
      %v2411 = vsub.s32 6, %v2410
      %v2412 = vrot.slane %v2348, %v2411
      %v2413 = vlaneseq
      %v2414 = vshrl.u32 %v2413, 7
      %v2415 = vsub.s32 7, %v2414
      %v2416 = vrot.slane %v2348, %v2415
      %v2417 = vlaneseq
      %v2418 = vshrl.u32 %v2417, 7
      %v2419 = vsub.s32 0, %v2418
      %v2420 = vrot.slane %v2349, %v2419
      %v2421 = vlaneseq
      %v2422 = vshrl.u32 %v2421, 7
      %v2423 = vsub.s32 1, %v2422
      %v2424 = vrot.slane %v2349, %v2423
      %v2425 = vlaneseq
      %v2426 = vshrl.u32 %v2425, 7
      %v2427 = vsub.s32 2, %v2426
      %v2428 = vrot.slane %v2349, %v2427
      %v2429 = vlaneseq
      %v2430 = vshrl.u32 %v2429, 7
      %v2431 = vsub.s32 3, %v2430
      %v2432 = vrot.slane %v2349, %v2431
      %v2453 = vmul.f32 %v2327, %v2356
      %v2454 = vmul.f32 %v2328, %v2360
      %v2455 = vmul.f32 %v2329, %v2364
      %v2456 = vmul.f32 %v2330, %v2368
      %v2457 = vmul.f32 %v2331, %v2372
      %v2458 = vmul.f32 %v2332, %v2376
      %v2459 = vmul.f32 %v2333, %v2380
      %v2460 = vmul.f32 %v2334, %v2384
      %v2461 = vmul.f32 %v2335, %v2388
      %v2462 = vmul.f32 %v2336, %v2392
      %v2463 = vmul.f32 %v2337, %v2396
      %v2464 = vmul.f32 %v2338, %v2400
      %v2465 = vmul.f32 %v2339, %v2404
      %v2466 = vmul.f32 %v2340, %v2408
      %v2467 = vmul.f32 %v2341, %v2412
      %v2468 = vmul.f32 %v2342, %v2416
      %v2469 = vmul.f32 %v2343, %v2420
      %v2470 = vmul.f32 %v2344, %v2424
      %v2471 = vmul.f32 %v2345, %v2428
      %v2472 = vmul.f32 %v2346, %v2432
      %v2493 = vcombine.low %v2453, %v2454
      %v2494 = vcombine.low %v2455, %v2456
      %v2495 = vcombine.low %v2457, %v2458
      %v2496 = vcombine.low %v2459, %v2460
      %v2497 = vcombine.low %v2461, %v2462
      %v2498 = vcombine.low %v2463, %v2464
      %v2499 = vcombine.low %v2465, %v2466
      %v2500 = vcombine.low %v2467, %v2468
      %v2501 = vcombine.low %v2469, %v2470
      %v2502 = vcombine.low %v2471, %v2472
      %2513 = vst [vmem:[#allocation4] sm:$0xff] %v2493
      %2514 = vst [vmem:[#allocation4 + $0x8] sm:$0xff] %v2494
      %2515 = vst [vmem:[#allocation4 + $0x10] sm:$0xff] %v2495
      %2516 = vst [vmem:[#allocation4 + $0x18] sm:$0xff] %v2496
      %2517 = vst [vmem:[#allocation4 + $0x20] sm:$0xff] %v2497
      %2518 = vst [vmem:[#allocation4 + $0x28] sm:$0xff] %v2498
      %2519 = vst [vmem:[#allocation4 + $0x30] sm:$0xff] %v2499
      %2520 = vst [vmem:[#allocation4 + $0x38] sm:$0xff] %v2500
      %2521 = vst [vmem:[#allocation4 + $0x40] sm:$0xff] %v2501
      %2522 = vst [vmem:[#allocation4 + $0x48] sm:$0xff] %v2502
      // Predicated region
      $region117: #{drb_forward.1} parent=39 // pred_check
        %p2523 = pneg %p235
      $region118: #{drb_forward.1} parent=39 // pred_check_branch
        %2525 = sbr.rel (%p2523) target = $region120
      $region119: #{drb_forward.1} parent=39 // pred_region
        %2526 = vst [vmem:[#allocation4] sm:$0xff] 0.0
        %2527 = vst [vmem:[#allocation4 + $0x48] sm:$0xff] 0.0
      $region120: #{drb_forward.1} parent=39 // pred_fallthru
        _
      %v2528 = vld [vmem:[#allocation4] sm:$0xff]
      %v2529 = vld [vmem:[#allocation4 + $0x8] sm:$0xff]
      %v2530 = vld [vmem:[#allocation4 + $0x10] sm:$0xff]
      %v2531 = vld [vmem:[#allocation4 + $0x18] sm:$0xff]
      %v2532 = vld [vmem:[#allocation4 + $0x20] sm:$0xff]
      %v2533 = vld [vmem:[#allocation4 + $0x28] sm:$0xff]
      %v2534 = vld [vmem:[#allocation4 + $0x30] sm:$0xff]
      %v2535 = vld [vmem:[#allocation4 + $0x38] sm:$0xff]
      %v2544 = vcombine.high %v2528, %v2528
      %v2545 = vcombine.high %v2529, %v2529
      %v2546 = vcombine.high %v2530, %v2530
      %v2547 = vcombine.high %v2531, %v2531
      %v2548 = vcombine.high %v2532, %v2532
      %v2549 = vcombine.high %v2533, %v2533
      %v2550 = vcombine.high %v2534, %v2534
      %v2551 = vcombine.high %v2535, %v2535
      %2560 = vrot.lane.b32.xlu0 %v2528, 2
      %v2561 = vpop.permute.xlu0 %2560
      %2562 = vrot.lane.b32.xlu0 %v2544, 2
      %v2563 = vpop.permute.xlu0 %2562
      %2564 = vrot.lane.b32.xlu0 %v2529, 2
      %v2565 = vpop.permute.xlu0 %2564
      %2566 = vrot.lane.b32.xlu0 %v2545, 2
      %v2567 = vpop.permute.xlu0 %2566
      %2568 = vrot.lane.b32.xlu0 %v2530, 2
      %v2569 = vpop.permute.xlu0 %2568
      %2570 = vrot.lane.b32.xlu0 %v2546, 2
      %v2571 = vpop.permute.xlu0 %2570
      %2572 = vrot.lane.b32.xlu0 %v2531, 2
      %v2573 = vpop.permute.xlu0 %2572
      %2574 = vrot.lane.b32.xlu0 %v2547, 2
      %v2575 = vpop.permute.xlu0 %2574
      %2576 = vrot.lane.b32.xlu0 %v2532, 2
      %v2577 = vpop.permute.xlu0 %2576
      %2578 = vrot.lane.b32.xlu0 %v2548, 2
      %v2579 = vpop.permute.xlu0 %2578
      %2580 = vrot.lane.b32.xlu0 %v2533, 2
      %v2581 = vpop.permute.xlu0 %2580
      %2582 = vrot.lane.b32.xlu0 %v2549, 2
      %v2583 = vpop.permute.xlu0 %2582
      %2584 = vrot.lane.b32.xlu0 %v2534, 2
      %v2585 = vpop.permute.xlu0 %2584
      %2586 = vrot.lane.b32.xlu0 %v2550, 2
      %v2587 = vpop.permute.xlu0 %2586
      %2588 = vrot.lane.b32.xlu0 %v2535, 2
      %v2589 = vpop.permute.xlu0 %2588
      %2590 = vrot.lane.b32.xlu0 %v2551, 2
      %v2591 = vpop.permute.xlu0 %2590
      %v2592 = vsel %vm503, %v2589, %v2591
      %v2593 = vsel %vm503, %v2587, %v2589
      %v2594 = vsel %vm503, %v2585, %v2587
      %v2595 = vsel %vm503, %v2583, %v2585
      %v2596 = vsel %vm503, %v2581, %v2583
      %v2597 = vsel %vm503, %v2579, %v2581
      %v2598 = vsel %vm503, %v2577, %v2579
      %v2599 = vsel %vm503, %v2575, %v2577
      %v2600 = vsel %vm503, %v2573, %v2575
      %v2601 = vsel %vm503, %v2571, %v2573
      %v2602 = vsel %vm503, %v2569, %v2571
      %v2603 = vsel %vm503, %v2567, %v2569
      %v2604 = vsel %vm503, %v2565, %v2567
      %v2605 = vsel %vm503, %v2563, %v2565
      %v2606 = vsel %vm503, %v2561, %v2563
      %v2607 = vsel %vm503, %v2591, %v2561
      %2608 = vst [vmem:[#allocation5] sm:$0xf] %v2607
      %2609 = vst [vmem:[#allocation5 + $0x8] sm:$0xf] %v2606
      %2610 = vst [vmem:[#allocation5 + $0x10] sm:$0xf] %v2605
      %2611 = vst [vmem:[#allocation5 + $0x18] sm:$0xf] %v2604
      %2612 = vst [vmem:[#allocation5 + $0x20] sm:$0xf] %v2603
      %2613 = vst [vmem:[#allocation5 + $0x28] sm:$0xf] %v2602
      %2614 = vst [vmem:[#allocation5 + $0x30] sm:$0xf] %v2601
      %2615 = vst [vmem:[#allocation5 + $0x38] sm:$0xf] %v2600
      %2616 = vst [vmem:[#allocation5 + $0x40] sm:$0xf] %v2599
      %2617 = vst [vmem:[#allocation5 + $0x48] sm:$0xf] %v2598
      %2618 = vst [vmem:[#allocation5 + $0x50] sm:$0xf] %v2597
      %2619 = vst [vmem:[#allocation5 + $0x58] sm:$0xf] %v2596
      %2620 = vst [vmem:[#allocation5 + $0x60] sm:$0xf] %v2595
      %2621 = vst [vmem:[#allocation5 + $0x68] sm:$0xf] %v2594
      %2622 = vst [vmem:[#allocation5 + $0x70] sm:$0xf] %v2593
      %2623 = vst [vmem:[#allocation5 + $0x78] sm:$0xf] %v2592
      %v2624 = vld [vmem:[#allocation4] sm:$0xff]
      %v2625 = vld [vmem:[#allocation4 + $0x8] sm:$0xff]
      %v2626 = vld [vmem:[#allocation4 + $0x10] sm:$0xff]
      %v2627 = vld [vmem:[#allocation4 + $0x18] sm:$0xff]
      %v2628 = vld [vmem:[#allocation4 + $0x20] sm:$0xff]
      %v2629 = vld [vmem:[#allocation4 + $0x28] sm:$0xff]
      %v2630 = vld [vmem:[#allocation4 + $0x30] sm:$0xff]
      %v2631 = vld [vmem:[#allocation4 + $0x38] sm:$0xff]
      %v2640 = vcombine.low %v2624, %v2624
      %v2641 = vcombine.low %v2625, %v2625
      %v2642 = vcombine.low %v2626, %v2626
      %v2643 = vcombine.low %v2627, %v2627
      %v2644 = vcombine.low %v2628, %v2628
      %v2645 = vcombine.low %v2629, %v2629
      %v2646 = vcombine.low %v2630, %v2630
      %v2647 = vcombine.low %v2631, %v2631
      %2656 = vst [vmem:[#allocation5] sm:$0xf0] %v2640
      %2657 = vst [vmem:[#allocation5 + $0x8] sm:$0xf0] %v2624
      %2658 = vst [vmem:[#allocation5 + $0x10] sm:$0xf0] %v2641
      %2659 = vst [vmem:[#allocation5 + $0x18] sm:$0xf0] %v2625
      %2660 = vst [vmem:[#allocation5 + $0x20] sm:$0xf0] %v2642
      %2661 = vst [vmem:[#allocation5 + $0x28] sm:$0xf0] %v2626
      %2662 = vst [vmem:[#allocation5 + $0x30] sm:$0xf0] %v2643
      %2663 = vst [vmem:[#allocation5 + $0x38] sm:$0xf0] %v2627
      %2664 = vst [vmem:[#allocation5 + $0x40] sm:$0xf0] %v2644
      %2665 = vst [vmem:[#allocation5 + $0x48] sm:$0xf0] %v2628
      %2666 = vst [vmem:[#allocation5 + $0x50] sm:$0xf0] %v2645
      %2667 = vst [vmem:[#allocation5 + $0x58] sm:$0xf0] %v2629
      %2668 = vst [vmem:[#allocation5 + $0x60] sm:$0xf0] %v2646
      %2669 = vst [vmem:[#allocation5 + $0x68] sm:$0xf0] %v2630
      %2670 = vst [vmem:[#allocation5 + $0x70] sm:$0xf0] %v2647
      %2671 = vst [vmem:[#allocation5 + $0x78] sm:$0xf0] %v2631
      %v2672 = vld [vmem:[#allocation4] sm:$0xff]
      %v2673 = vld [vmem:[#allocation4 + $0x8] sm:$0xff]
      %v2674 = vld [vmem:[#allocation4 + $0x10] sm:$0xff]
      %v2675 = vld [vmem:[#allocation4 + $0x18] sm:$0xff]
      %v2676 = vld [vmem:[#allocation4 + $0x20] sm:$0xff]
      %v2677 = vld [vmem:[#allocation4 + $0x28] sm:$0xff]
      %v2678 = vld [vmem:[#allocation4 + $0x30] sm:$0xff]
      %v2679 = vld [vmem:[#allocation4 + $0x38] sm:$0xff]
      %v2688 = vcombine.high %v2672, %v2672
      %v2689 = vcombine.high %v2673, %v2673
      %v2690 = vcombine.high %v2674, %v2674
      %v2691 = vcombine.high %v2675, %v2675
      %v2692 = vcombine.high %v2676, %v2676
      %v2693 = vcombine.high %v2677, %v2677
      %v2694 = vcombine.high %v2678, %v2678
      %v2695 = vcombine.high %v2679, %v2679
      %2704 = vrot.lane.b32.xlu0 %v2672, 126
      %v2705 = vpop.permute.xlu0 %2704
      %2706 = vrot.lane.b32.xlu0 %v2688, 126
      %v2707 = vpop.permute.xlu0 %2706
      %2708 = vrot.lane.b32.xlu0 %v2673, 126
      %v2709 = vpop.permute.xlu0 %2708
      %2710 = vrot.lane.b32.xlu0 %v2689, 126
      %v2711 = vpop.permute.xlu0 %2710
      %2712 = vrot.lane.b32.xlu0 %v2674, 126
      %v2713 = vpop.permute.xlu0 %2712
      %2714 = vrot.lane.b32.xlu0 %v2690, 126
      %v2715 = vpop.permute.xlu0 %2714
      %2716 = vrot.lane.b32.xlu0 %v2675, 126
      %v2717 = vpop.permute.xlu0 %2716
      %2718 = vrot.lane.b32.xlu0 %v2691, 126
      %v2719 = vpop.permute.xlu0 %2718
      %2720 = vrot.lane.b32.xlu0 %v2676, 126
      %v2721 = vpop.permute.xlu0 %2720
      %2722 = vrot.lane.b32.xlu0 %v2692, 126
      %v2723 = vpop.permute.xlu0 %2722
      %2724 = vrot.lane.b32.xlu0 %v2677, 126
      %v2725 = vpop.permute.xlu0 %2724
      %2726 = vrot.lane.b32.xlu0 %v2693, 126
      %v2727 = vpop.permute.xlu0 %2726
      %2728 = vrot.lane.b32.xlu0 %v2678, 126
      %v2729 = vpop.permute.xlu0 %2728
      %2730 = vrot.lane.b32.xlu0 %v2694, 126
      %v2731 = vpop.permute.xlu0 %2730
      %2732 = vrot.lane.b32.xlu0 %v2679, 126
      %v2733 = vpop.permute.xlu0 %2732
      %2734 = vrot.lane.b32.xlu0 %v2695, 126
      %v2735 = vpop.permute.xlu0 %2734
      %v2736 = vsel %vm684, %v2733, %v2735
      %v2737 = vsel %vm684, %v2731, %v2733
      %v2738 = vsel %vm684, %v2729, %v2731
      %v2739 = vsel %vm684, %v2727, %v2729
      %v2740 = vsel %vm684, %v2725, %v2727
      %v2741 = vsel %vm684, %v2723, %v2725
      %v2742 = vsel %vm684, %v2721, %v2723
      %v2743 = vsel %vm684, %v2719, %v2721
      %v2744 = vsel %vm684, %v2717, %v2719
      %v2745 = vsel %vm684, %v2715, %v2717
      %v2746 = vsel %vm684, %v2713, %v2715
      %v2747 = vsel %vm684, %v2711, %v2713
      %v2748 = vsel %vm684, %v2709, %v2711
      %v2749 = vsel %vm684, %v2707, %v2709
      %v2750 = vsel %vm684, %v2705, %v2707
      %v2751 = vsel %vm684, %v2735, %v2705
      %2752 = vst [vmem:[#allocation5 + $0xa0] sm:$0xf] %v2750
      %2753 = vst [vmem:[#allocation5 + $0xa8] sm:$0xf] %v2749
      %2754 = vst [vmem:[#allocation5 + $0xb0] sm:$0xf] %v2748
      %2755 = vst [vmem:[#allocation5 + $0xb8] sm:$0xf] %v2747
      %2756 = vst [vmem:[#allocation5 + $0xc0] sm:$0xf] %v2746
      %2757 = vst [vmem:[#allocation5 + $0xc8] sm:$0xf] %v2745
      %2758 = vst [vmem:[#allocation5 + $0xd0] sm:$0xf] %v2744
      %2759 = vst [vmem:[#allocation5 + $0xd8] sm:$0xf] %v2743
      %2760 = vst [vmem:[#allocation5 + $0xe0] sm:$0xf] %v2742
      %2761 = vst [vmem:[#allocation5 + $0xe8] sm:$0xf] %v2741
      %2762 = vst [vmem:[#allocation5 + $0xf0] sm:$0xf] %v2740
      %2763 = vst [vmem:[#allocation5 + $0xf8] sm:$0xf] %v2739
      %2764 = vst [vmem:[#allocation5 + $0x100] sm:$0xf] %v2738
      %2765 = vst [vmem:[#allocation5 + $0x108] sm:$0xf] %v2737
      %2766 = vst [vmem:[#allocation5 + $0x110] sm:$0xf] %v2736
      %2767 = vst [vmem:[#allocation5 + $0x118] sm:$0xf] %v2751
      %v2768 = vld [vmem:[#allocation4 + $0x8] sm:$0xff]
      %v2769 = vld [vmem:[#allocation4 + $0x10] sm:$0xff]
      %v2770 = vld [vmem:[#allocation4 + $0x18] sm:$0xff]
      %v2771 = vld [vmem:[#allocation4 + $0x20] sm:$0xff]
      %v2772 = vld [vmem:[#allocation4 + $0x28] sm:$0xff]
      %v2773 = vld [vmem:[#allocation4 + $0x30] sm:$0xff]
      %v2774 = vld [vmem:[#allocation4 + $0x38] sm:$0xff]
      %v2775 = vld [vmem:[#allocation4 + $0x40] sm:$0xff]
      %v2784 = vcombine.high %v2768, %v2768
      %v2785 = vcombine.high %v2769, %v2769
      %v2786 = vcombine.high %v2770, %v2770
      %v2787 = vcombine.high %v2771, %v2771
      %v2788 = vcombine.high %v2772, %v2772
      %v2789 = vcombine.high %v2773, %v2773
      %v2790 = vcombine.high %v2774, %v2774
      %v2791 = vcombine.high %v2775, %v2775
      %2800 = vrot.lane.b32.xlu0 %v2768, 2
      %v2801 = vpop.permute.xlu0 %2800
      %2802 = vrot.lane.b32.xlu0 %v2784, 2
      %v2803 = vpop.permute.xlu0 %2802
      %2804 = vrot.lane.b32.xlu0 %v2769, 2
      %v2805 = vpop.permute.xlu0 %2804
      %2806 = vrot.lane.b32.xlu0 %v2785, 2
      %v2807 = vpop.permute.xlu0 %2806
      %2808 = vrot.lane.b32.xlu0 %v2770, 2
      %v2809 = vpop.permute.xlu0 %2808
      %2810 = vrot.lane.b32.xlu0 %v2786, 2
      %v2811 = vpop.permute.xlu0 %2810
      %2812 = vrot.lane.b32.xlu0 %v2771, 2
      %v2813 = vpop.permute.xlu0 %2812
      %2814 = vrot.lane.b32.xlu0 %v2787, 2
      %v2815 = vpop.permute.xlu0 %2814
      %2816 = vrot.lane.b32.xlu0 %v2772, 2
      %v2817 = vpop.permute.xlu0 %2816
      %2818 = vrot.lane.b32.xlu0 %v2788, 2
      %v2819 = vpop.permute.xlu0 %2818
      %2820 = vrot.lane.b32.xlu0 %v2773, 2
      %v2821 = vpop.permute.xlu0 %2820
      %2822 = vrot.lane.b32.xlu0 %v2789, 2
      %v2823 = vpop.permute.xlu0 %2822
      %2824 = vrot.lane.b32.xlu0 %v2774, 2
      %v2825 = vpop.permute.xlu0 %2824
      %2826 = vrot.lane.b32.xlu0 %v2790, 2
      %v2827 = vpop.permute.xlu0 %2826
      %2828 = vrot.lane.b32.xlu0 %v2775, 2
      %v2829 = vpop.permute.xlu0 %2828
      %2830 = vrot.lane.b32.xlu0 %v2791, 2
      %v2831 = vpop.permute.xlu0 %2830
      %v2832 = vsel %vm503, %v2829, %v2831
      %v2833 = vsel %vm503, %v2827, %v2829
      %v2834 = vsel %vm503, %v2825, %v2827
      %v2835 = vsel %vm503, %v2823, %v2825
      %v2836 = vsel %vm503, %v2821, %v2823
      %v2837 = vsel %vm503, %v2819, %v2821
      %v2838 = vsel %vm503, %v2817, %v2819
      %v2839 = vsel %vm503, %v2815, %v2817
      %v2840 = vsel %vm503, %v2813, %v2815
      %v2841 = vsel %vm503, %v2811, %v2813
      %v2842 = vsel %vm503, %v2809, %v2811
      %v2843 = vsel %vm503, %v2807, %v2809
      %v2844 = vsel %vm503, %v2805, %v2807
      %v2845 = vsel %vm503, %v2803, %v2805
      %v2846 = vsel %vm503, %v2801, %v2803
      %v2847 = vsel %vm503, %v2831, %v2801
      %v2864 = vrot.slane %v2847, 4
      %v2865 = vrot.slane %v2846, 4
      %v2866 = vrot.slane %v2845, 4
      %v2867 = vrot.slane %v2844, 4
      %v2868 = vrot.slane %v2843, 4
      %v2869 = vrot.slane %v2842, 4
      %v2870 = vrot.slane %v2841, 4
      %v2871 = vrot.slane %v2840, 4
      %v2872 = vrot.slane %v2839, 4
      %v2873 = vrot.slane %v2838, 4
      %v2874 = vrot.slane %v2837, 4
      %v2875 = vrot.slane %v2836, 4
      %v2876 = vrot.slane %v2835, 4
      %v2877 = vrot.slane %v2834, 4
      %v2878 = vrot.slane %v2833, 4
      %v2879 = vrot.slane %v2832, 4
      %2896 = vst [vmem:[#allocation5 + $0xa0] sm:$0xf0] %v2864
      %2897 = vst [vmem:[#allocation5 + $0xa8] sm:$0xf0] %v2865
      %2898 = vst [vmem:[#allocation5 + $0xb0] sm:$0xf0] %v2866
      %2899 = vst [vmem:[#allocation5 + $0xb8] sm:$0xf0] %v2867
      %2900 = vst [vmem:[#allocation5 + $0xc0] sm:$0xf0] %v2868
      %2901 = vst [vmem:[#allocation5 + $0xc8] sm:$0xf0] %v2869
      %2902 = vst [vmem:[#allocation5 + $0xd0] sm:$0xf0] %v2870
      %2903 = vst [vmem:[#allocation5 + $0xd8] sm:$0xf0] %v2871
      %2904 = vst [vmem:[#allocation5 + $0xe0] sm:$0xf0] %v2872
      %2905 = vst [vmem:[#allocation5 + $0xe8] sm:$0xf0] %v2873
      %2906 = vst [vmem:[#allocation5 + $0xf0] sm:$0xf0] %v2874
      %2907 = vst [vmem:[#allocation5 + $0xf8] sm:$0xf0] %v2875
      %2908 = vst [vmem:[#allocation5 + $0x100] sm:$0xf0] %v2876
      %2909 = vst [vmem:[#allocation5 + $0x108] sm:$0xf0] %v2877
      %2910 = vst [vmem:[#allocation5 + $0x110] sm:$0xf0] %v2878
      %2911 = vst [vmem:[#allocation5 + $0x118] sm:$0xf0] %v2879
      %v2912 = vld [vmem:[#allocation4 + $0x8] sm:$0xff]
      %v2913 = vld [vmem:[#allocation4 + $0x10] sm:$0xff]
      %v2914 = vld [vmem:[#allocation4 + $0x18] sm:$0xff]
      %v2915 = vld [vmem:[#allocation4 + $0x20] sm:$0xff]
      %v2916 = vld [vmem:[#allocation4 + $0x28] sm:$0xff]
      %v2917 = vld [vmem:[#allocation4 + $0x30] sm:$0xff]
      %v2918 = vld [vmem:[#allocation4 + $0x38] sm:$0xff]
      %v2919 = vld [vmem:[#allocation4 + $0x40] sm:$0xff]
      %v2928 = vcombine.high %v2912, %v2912
      %v2929 = vcombine.high %v2913, %v2913
      %v2930 = vcombine.high %v2914, %v2914
      %v2931 = vcombine.high %v2915, %v2915
      %v2932 = vcombine.high %v2916, %v2916
      %v2933 = vcombine.high %v2917, %v2917
      %v2934 = vcombine.high %v2918, %v2918
      %v2935 = vcombine.high %v2919, %v2919
      %2944 = vst [vmem:[#allocation5 + $0x140] sm:$0xf] %v2912
      %2945 = vst [vmem:[#allocation5 + $0x148] sm:$0xf] %v2928
      %2946 = vst [vmem:[#allocation5 + $0x150] sm:$0xf] %v2913
      %2947 = vst [vmem:[#allocation5 + $0x158] sm:$0xf] %v2929
      %2948 = vst [vmem:[#allocation5 + $0x160] sm:$0xf] %v2914
      %2949 = vst [vmem:[#allocation5 + $0x168] sm:$0xf] %v2930
      %2950 = vst [vmem:[#allocation5 + $0x170] sm:$0xf] %v2915
      %2951 = vst [vmem:[#allocation5 + $0x178] sm:$0xf] %v2931
      %2952 = vst [vmem:[#allocation5 + $0x180] sm:$0xf] %v2916
      %2953 = vst [vmem:[#allocation5 + $0x188] sm:$0xf] %v2932
      %2954 = vst [vmem:[#allocation5 + $0x190] sm:$0xf] %v2917
      %2955 = vst [vmem:[#allocation5 + $0x198] sm:$0xf] %v2933
      %2956 = vst [vmem:[#allocation5 + $0x1a0] sm:$0xf] %v2918
      %2957 = vst [vmem:[#allocation5 + $0x1a8] sm:$0xf] %v2934
      %2958 = vst [vmem:[#allocation5 + $0x1b0] sm:$0xf] %v2919
      %2959 = vst [vmem:[#allocation5 + $0x1b8] sm:$0xf] %v2935
      %v2960 = vld [vmem:[#allocation4 + $0x8] sm:$0xff]
      %v2961 = vld [vmem:[#allocation4 + $0x10] sm:$0xff]
      %v2962 = vld [vmem:[#allocation4 + $0x18] sm:$0xff]
      %v2963 = vld [vmem:[#allocation4 + $0x20] sm:$0xff]
      %v2964 = vld [vmem:[#allocation4 + $0x28] sm:$0xff]
      %v2965 = vld [vmem:[#allocation4 + $0x30] sm:$0xff]
      %v2966 = vld [vmem:[#allocation4 + $0x38] sm:$0xff]
      %v2967 = vld [vmem:[#allocation4 + $0x40] sm:$0xff]
      %v2976 = vcombine.high %v2960, %v2960
      %v2977 = vcombine.high %v2961, %v2961
      %v2978 = vcombine.high %v2962, %v2962
      %v2979 = vcombine.high %v2963, %v2963
      %v2980 = vcombine.high %v2964, %v2964
      %v2981 = vcombine.high %v2965, %v2965
      %v2982 = vcombine.high %v2966, %v2966
      %v2983 = vcombine.high %v2967, %v2967
      %2992 = vrot.lane.b32.xlu0 %v2960, 126
      %v2993 = vpop.permute.xlu0 %2992
      %2994 = vrot.lane.b32.xlu0 %v2976, 126
      %v2995 = vpop.permute.xlu0 %2994
      %2996 = vrot.lane.b32.xlu0 %v2961, 126
      %v2997 = vpop.permute.xlu0 %2996
      %2998 = vrot.lane.b32.xlu0 %v2977, 126
      %v2999 = vpop.permute.xlu0 %2998
      %3000 = vrot.lane.b32.xlu0 %v2962, 126
      %v3001 = vpop.permute.xlu0 %3000
      %3002 = vrot.lane.b32.xlu0 %v2978, 126
      %v3003 = vpop.permute.xlu0 %3002
      %3004 = vrot.lane.b32.xlu0 %v2963, 126
      %v3005 = vpop.permute.xlu0 %3004
      %3006 = vrot.lane.b32.xlu0 %v2979, 126
      %v3007 = vpop.permute.xlu0 %3006
      %3008 = vrot.lane.b32.xlu0 %v2964, 126
      %v3009 = vpop.permute.xlu0 %3008
      %3010 = vrot.lane.b32.xlu0 %v2980, 126
      %v3011 = vpop.permute.xlu0 %3010
      %3012 = vrot.lane.b32.xlu0 %v2965, 126
      %v3013 = vpop.permute.xlu0 %3012
      %3014 = vrot.lane.b32.xlu0 %v2981, 126
      %v3015 = vpop.permute.xlu0 %3014
      %3016 = vrot.lane.b32.xlu0 %v2966, 126
      %v3017 = vpop.permute.xlu0 %3016
      %3018 = vrot.lane.b32.xlu0 %v2982, 126
      %v3019 = vpop.permute.xlu0 %3018
      %3020 = vrot.lane.b32.xlu0 %v2967, 126
      %v3021 = vpop.permute.xlu0 %3020
      %3022 = vrot.lane.b32.xlu0 %v2983, 126
      %v3023 = vpop.permute.xlu0 %3022
      %v3024 = vsel %vm684, %v3021, %v3023
      %v3025 = vsel %vm684, %v3019, %v3021
      %v3026 = vsel %vm684, %v3017, %v3019
      %v3027 = vsel %vm684, %v3015, %v3017
      %v3028 = vsel %vm684, %v3013, %v3015
      %v3029 = vsel %vm684, %v3011, %v3013
      %v3030 = vsel %vm684, %v3009, %v3011
      %v3031 = vsel %vm684, %v3007, %v3009
      %v3032 = vsel %vm684, %v3005, %v3007
      %v3033 = vsel %vm684, %v3003, %v3005
      %v3034 = vsel %vm684, %v3001, %v3003
      %v3035 = vsel %vm684, %v2999, %v3001
      %v3036 = vsel %vm684, %v2997, %v2999
      %v3037 = vsel %vm684, %v2995, %v2997
      %v3038 = vsel %vm684, %v2993, %v2995
      %v3039 = vsel %vm684, %v3023, %v2993
      %v3056 = vrot.slane %v3038, 4
      %v3057 = vrot.slane %v3037, 4
      %v3058 = vrot.slane %v3036, 4
      %v3059 = vrot.slane %v3035, 4
      %v3060 = vrot.slane %v3034, 4
      %v3061 = vrot.slane %v3033, 4
      %v3062 = vrot.slane %v3032, 4
      %v3063 = vrot.slane %v3031, 4
      %v3064 = vrot.slane %v3030, 4
      %v3065 = vrot.slane %v3029, 4
      %v3066 = vrot.slane %v3028, 4
      %v3067 = vrot.slane %v3027, 4
      %v3068 = vrot.slane %v3026, 4
      %v3069 = vrot.slane %v3025, 4
      %v3070 = vrot.slane %v3024, 4
      %v3071 = vrot.slane %v3039, 4
      %3088 = vst [vmem:[#allocation5 + $0x140] sm:$0xf0] %v3056
      %3089 = vst [vmem:[#allocation5 + $0x148] sm:$0xf0] %v3057
      %3090 = vst [vmem:[#allocation5 + $0x150] sm:$0xf0] %v3058
      %3091 = vst [vmem:[#allocation5 + $0x158] sm:$0xf0] %v3059
      %3092 = vst [vmem:[#allocation5 + $0x160] sm:$0xf0] %v3060
      %3093 = vst [vmem:[#allocation5 + $0x168] sm:$0xf0] %v3061
      %3094 = vst [vmem:[#allocation5 + $0x170] sm:$0xf0] %v3062
      %3095 = vst [vmem:[#allocation5 + $0x178] sm:$0xf0] %v3063
      %3096 = vst [vmem:[#allocation5 + $0x180] sm:$0xf0] %v3064
      %3097 = vst [vmem:[#allocation5 + $0x188] sm:$0xf0] %v3065
      %3098 = vst [vmem:[#allocation5 + $0x190] sm:$0xf0] %v3066
      %3099 = vst [vmem:[#allocation5 + $0x198] sm:$0xf0] %v3067
      %3100 = vst [vmem:[#allocation5 + $0x1a0] sm:$0xf0] %v3068
      %3101 = vst [vmem:[#allocation5 + $0x1a8] sm:$0xf0] %v3069
      %3102 = vst [vmem:[#allocation5 + $0x1b0] sm:$0xf0] %v3070
      %3103 = vst [vmem:[#allocation5 + $0x1b8] sm:$0xf0] %v3071
      %v3104 = vld [vmem:[#allocation4 + $0x10] sm:$0xff]
      %v3105 = vld [vmem:[#allocation4 + $0x18] sm:$0xff]
      %v3106 = vld [vmem:[#allocation4 + $0x20] sm:$0xff]
      %v3107 = vld [vmem:[#allocation4 + $0x28] sm:$0xff]
      %v3108 = vld [vmem:[#allocation4 + $0x30] sm:$0xff]
      %v3109 = vld [vmem:[#allocation4 + $0x38] sm:$0xff]
      %v3110 = vld [vmem:[#allocation4 + $0x40] sm:$0xff]
      %v3111 = vld [vmem:[#allocation4 + $0x48] sm:$0xff]
      %v3120 = vcombine.high %v3104, %v3104
      %v3121 = vcombine.high %v3105, %v3105
      %v3122 = vcombine.high %v3106, %v3106
      %v3123 = vcombine.high %v3107, %v3107
      %v3124 = vcombine.high %v3108, %v3108
      %v3125 = vcombine.high %v3109, %v3109
      %v3126 = vcombine.high %v3110, %v3110
      %v3127 = vcombine.high %v3111, %v3111
      %3136 = vrot.lane.b32.xlu0 %v3104, 2
      %v3137 = vpop.permute.xlu0 %3136
      %3138 = vrot.lane.b32.xlu0 %v3120, 2
      %v3139 = vpop.permute.xlu0 %3138
      %3140 = vrot.lane.b32.xlu0 %v3105, 2
      %v3141 = vpop.permute.xlu0 %3140
      %3142 = vrot.lane.b32.xlu0 %v3121, 2
      %v3143 = vpop.permute.xlu0 %3142
      %3144 = vrot.lane.b32.xlu0 %v3106, 2
      %v3145 = vpop.permute.xlu0 %3144
      %3146 = vrot.lane.b32.xlu0 %v3122, 2
      %v3147 = vpop.permute.xlu0 %3146
      %3148 = vrot.lane.b32.xlu0 %v3107, 2
      %v3149 = vpop.permute.xlu0 %3148
      %3150 = vrot.lane.b32.xlu0 %v3123, 2
      %v3151 = vpop.permute.xlu0 %3150
      %3152 = vrot.lane.b32.xlu0 %v3108, 2
      %v3153 = vpop.permute.xlu0 %3152
      %3154 = vrot.lane.b32.xlu0 %v3124, 2
      %v3155 = vpop.permute.xlu0 %3154
      %3156 = vrot.lane.b32.xlu0 %v3109, 2
      %v3157 = vpop.permute.xlu0 %3156
      %3158 = vrot.lane.b32.xlu0 %v3125, 2
      %v3159 = vpop.permute.xlu0 %3158
      %3160 = vrot.lane.b32.xlu0 %v3110, 2
      %v3161 = vpop.permute.xlu0 %3160
      %3162 = vrot.lane.b32.xlu0 %v3126, 2
      %v3163 = vpop.permute.xlu0 %3162
      %3164 = vrot.lane.b32.xlu0 %v3111, 2
      %v3165 = vpop.permute.xlu0 %3164
      %3166 = vrot.lane.b32.xlu0 %v3127, 2
      %v3167 = vpop.permute.xlu0 %3166
      %v3168 = vsel %vm503, %v3165, %v3167
      %v3169 = vsel %vm503, %v3163, %v3165
      %v3170 = vsel %vm503, %v3161, %v3163
      %v3171 = vsel %vm503, %v3159, %v3161
      %v3172 = vsel %vm503, %v3157, %v3159
      %v3173 = vsel %vm503, %v3155, %v3157
      %v3174 = vsel %vm503, %v3153, %v3155
      %v3175 = vsel %vm503, %v3151, %v3153
      %v3176 = vsel %vm503, %v3149, %v3151
      %v3177 = vsel %vm503, %v3147, %v3149
      %v3178 = vsel %vm503, %v3145, %v3147
      %v3179 = vsel %vm503, %v3143, %v3145
      %v3180 = vsel %vm503, %v3141, %v3143
      %v3181 = vsel %vm503, %v3139, %v3141
      %v3182 = vsel %vm503, %v3137, %v3139
      %v3183 = vsel %vm503, %v3167, %v3137
      %3184 = vst [vmem:[#allocation5 + $0x1e0] sm:$0xf] %v3183
      %3185 = vst [vmem:[#allocation5 + $0x1e8] sm:$0xf] %v3182
      %3186 = vst [vmem:[#allocation5 + $0x1f0] sm:$0xf] %v3181
      %3187 = vst [vmem:[#allocation5 + $0x1f8] sm:$0xf] %v3180
      %3188 = vst [vmem:[#allocation5 + $0x200] sm:$0xf] %v3179
      %3189 = vst [vmem:[#allocation5 + $0x208] sm:$0xf] %v3178
      %3190 = vst [vmem:[#allocation5 + $0x210] sm:$0xf] %v3177
      %3191 = vst [vmem:[#allocation5 + $0x218] sm:$0xf] %v3176
      %3192 = vst [vmem:[#allocation5 + $0x220] sm:$0xf] %v3175
      %3193 = vst [vmem:[#allocation5 + $0x228] sm:$0xf] %v3174
      %3194 = vst [vmem:[#allocation5 + $0x230] sm:$0xf] %v3173
      %3195 = vst [vmem:[#allocation5 + $0x238] sm:$0xf] %v3172
      %3196 = vst [vmem:[#allocation5 + $0x240] sm:$0xf] %v3171
      %3197 = vst [vmem:[#allocation5 + $0x248] sm:$0xf] %v3170
      %3198 = vst [vmem:[#allocation5 + $0x250] sm:$0xf] %v3169
      %3199 = vst [vmem:[#allocation5 + $0x258] sm:$0xf] %v3168
      %v3200 = vld [vmem:[#allocation4 + $0x10] sm:$0xff]
      %v3201 = vld [vmem:[#allocation4 + $0x18] sm:$0xff]
      %v3202 = vld [vmem:[#allocation4 + $0x20] sm:$0xff]
      %v3203 = vld [vmem:[#allocation4 + $0x28] sm:$0xff]
      %v3204 = vld [vmem:[#allocation4 + $0x30] sm:$0xff]
      %v3205 = vld [vmem:[#allocation4 + $0x38] sm:$0xff]
      %v3206 = vld [vmem:[#allocation4 + $0x40] sm:$0xff]
      %v3207 = vld [vmem:[#allocation4 + $0x48] sm:$0xff]
      %v3216 = vcombine.low %v3200, %v3200
      %v3217 = vcombine.low %v3201, %v3201
      %v3218 = vcombine.low %v3202, %v3202
      %v3219 = vcombine.low %v3203, %v3203
      %v3220 = vcombine.low %v3204, %v3204
      %v3221 = vcombine.low %v3205, %v3205
      %v3222 = vcombine.low %v3206, %v3206
      %v3223 = vcombine.low %v3207, %v3207
      %3232 = vst [vmem:[#allocation5 + $0x1e0] sm:$0xf0] %v3216
      %3233 = vst [vmem:[#allocation5 + $0x1e8] sm:$0xf0] %v3200
      %3234 = vst [vmem:[#allocation5 + $0x1f0] sm:$0xf0] %v3217
      %3235 = vst [vmem:[#allocation5 + $0x1f8] sm:$0xf0] %v3201
      %3236 = vst [vmem:[#allocation5 + $0x200] sm:$0xf0] %v3218
      %3237 = vst [vmem:[#allocation5 + $0x208] sm:$0xf0] %v3202
      %3238 = vst [vmem:[#allocation5 + $0x210] sm:$0xf0] %v3219
      %3239 = vst [vmem:[#allocation5 + $0x218] sm:$0xf0] %v3203
      %3240 = vst [vmem:[#allocation5 + $0x220] sm:$0xf0] %v3220
      %3241 = vst [vmem:[#allocation5 + $0x228] sm:$0xf0] %v3204
      %3242 = vst [vmem:[#allocation5 + $0x230] sm:$0xf0] %v3221
      %3243 = vst [vmem:[#allocation5 + $0x238] sm:$0xf0] %v3205
      %3244 = vst [vmem:[#allocation5 + $0x240] sm:$0xf0] %v3222
      %3245 = vst [vmem:[#allocation5 + $0x248] sm:$0xf0] %v3206
      %3246 = vst [vmem:[#allocation5 + $0x250] sm:$0xf0] %v3223
      %3247 = vst [vmem:[#allocation5 + $0x258] sm:$0xf0] %v3207
      %v3248 = vld [vmem:[#allocation4 + $0x10] sm:$0xff]
      %v3249 = vld [vmem:[#allocation4 + $0x18] sm:$0xff]
      %v3250 = vld [vmem:[#allocation4 + $0x20] sm:$0xff]
      %v3251 = vld [vmem:[#allocation4 + $0x28] sm:$0xff]
      %v3252 = vld [vmem:[#allocation4 + $0x30] sm:$0xff]
      %v3253 = vld [vmem:[#allocation4 + $0x38] sm:$0xff]
      %v3254 = vld [vmem:[#allocation4 + $0x40] sm:$0xff]
      %v3255 = vld [vmem:[#allocation4 + $0x48] sm:$0xff]
      %v3264 = vcombine.high %v3248, %v3248
      %v3265 = vcombine.high %v3249, %v3249
      %v3266 = vcombine.high %v3250, %v3250
      %v3267 = vcombine.high %v3251, %v3251
      %v3268 = vcombine.high %v3252, %v3252
      %v3269 = vcombine.high %v3253, %v3253
      %v3270 = vcombine.high %v3254, %v3254
      %v3271 = vcombine.high %v3255, %v3255
      %3280 = vrot.lane.b32.xlu0 %v3248, 126
      %v3281 = vpop.permute.xlu0 %3280
      %3282 = vrot.lane.b32.xlu0 %v3264, 126
      %v3283 = vpop.permute.xlu0 %3282
      %3284 = vrot.lane.b32.xlu0 %v3249, 126
      %v3285 = vpop.permute.xlu0 %3284
      %3286 = vrot.lane.b32.xlu0 %v3265, 126
      %v3287 = vpop.permute.xlu0 %3286
      %3288 = vrot.lane.b32.xlu0 %v3250, 126
      %v3289 = vpop.permute.xlu0 %3288
      %3290 = vrot.lane.b32.xlu0 %v3266, 126
      %v3291 = vpop.permute.xlu0 %3290
      %3292 = vrot.lane.b32.xlu0 %v3251, 126
      %v3293 = vpop.permute.xlu0 %3292
      %3294 = vrot.lane.b32.xlu0 %v3267, 126
      %v3295 = vpop.permute.xlu0 %3294
      %3296 = vrot.lane.b32.xlu0 %v3252, 126
      %v3297 = vpop.permute.xlu0 %3296
      %3298 = vrot.lane.b32.xlu0 %v3268, 126
      %v3299 = vpop.permute.xlu0 %3298
      %3300 = vrot.lane.b32.xlu0 %v3253, 126
      %v3301 = vpop.permute.xlu0 %3300
      %3302 = vrot.lane.b32.xlu0 %v3269, 126
      %v3303 = vpop.permute.xlu0 %3302
      %3304 = vrot.lane.b32.xlu0 %v3254, 126
      %v3305 = vpop.permute.xlu0 %3304
      %3306 = vrot.lane.b32.xlu0 %v3270, 126
      %v3307 = vpop.permute.xlu0 %3306
      %3308 = vrot.lane.b32.xlu0 %v3255, 126
      %v3309 = vpop.permute.xlu0 %3308
      %3310 = vrot.lane.b32.xlu0 %v3271, 126
      %v3311 = vpop.permute.xlu0 %3310
      %v3312 = vsel %vm684, %v3309, %v3311
      %v3313 = vsel %vm684, %v3307, %v3309
      %v3314 = vsel %vm684, %v3305, %v3307
      %v3315 = vsel %vm684, %v3303, %v3305
      %v3316 = vsel %vm684, %v3301, %v3303
      %v3317 = vsel %vm684, %v3299, %v3301
      %v3318 = vsel %vm684, %v3297, %v3299
      %v3319 = vsel %vm684, %v3295, %v3297
      %v3320 = vsel %vm684, %v3293, %v3295
      %v3321 = vsel %vm684, %v3291, %v3293
      %v3322 = vsel %vm684, %v3289, %v3291
      %v3323 = vsel %vm684, %v3287, %v3289
      %v3324 = vsel %vm684, %v3285, %v3287
      %v3325 = vsel %vm684, %v3283, %v3285
      %v3326 = vsel %vm684, %v3281, %v3283
      %v3327 = vsel %vm684, %v3311, %v3281
      %3328 = vst [vmem:[#allocation5 + $0x280] sm:$0xf] %v3326
      %3329 = vst [vmem:[#allocation5 + $0x288] sm:$0xf] %v3325
      %3330 = vst [vmem:[#allocation5 + $0x290] sm:$0xf] %v3324
      %3331 = vst [vmem:[#allocation5 + $0x298] sm:$0xf] %v3323
      %3332 = vst [vmem:[#allocation5 + $0x2a0] sm:$0xf] %v3322
      %3333 = vst [vmem:[#allocation5 + $0x2a8] sm:$0xf] %v3321
      %3334 = vst [vmem:[#allocation5 + $0x2b0] sm:$0xf] %v3320
      %3335 = vst [vmem:[#allocation5 + $0x2b8] sm:$0xf] %v3319
      %3336 = vst [vmem:[#allocation5 + $0x2c0] sm:$0xf] %v3318
      %3337 = vst [vmem:[#allocation5 + $0x2c8] sm:$0xf] %v3317
      %3338 = vst [vmem:[#allocation5 + $0x2d0] sm:$0xf] %v3316
      %3339 = vst [vmem:[#allocation5 + $0x2d8] sm:$0xf] %v3315
      %3340 = vst [vmem:[#allocation5 + $0x2e0] sm:$0xf] %v3314
      %3341 = vst [vmem:[#allocation5 + $0x2e8] sm:$0xf] %v3313
      %3342 = vst [vmem:[#allocation5 + $0x2f0] sm:$0xf] %v3312
      %3343 = vst [vmem:[#allocation5 + $0x2f8] sm:$0xf] %v3327
      %v3344 = vld [vmem:[%s3] sm:$0xf]
      %v3345 = vld [vmem:[#allocation5] sm:$0xff]
      %v3346 = vld [vmem:[#allocation5 + $0x8] sm:$0xff]
      %v3347 = vld [vmem:[#allocation5 + $0x10] sm:$0xff]
      %v3348 = vld [vmem:[#allocation5 + $0x18] sm:$0xff]
      %v3349 = vld [vmem:[#allocation5 + $0x20] sm:$0xff]
      %v3350 = vld [vmem:[#allocation5 + $0x28] sm:$0xff]
      %v3351 = vld [vmem:[#allocation5 + $0x30] sm:$0xff]
      %v3352 = vld [vmem:[#allocation5 + $0x38] sm:$0xff]
      %v3353 = vld [vmem:[#allocation5 + $0x40] sm:$0xff]
      %v3354 = vld [vmem:[#allocation5 + $0x48] sm:$0xff]
      %v3355 = vld [vmem:[#allocation5 + $0x50] sm:$0xff]
      %v3356 = vld [vmem:[#allocation5 + $0x58] sm:$0xff]
      %v3357 = vld [vmem:[#allocation5 + $0x60] sm:$0xff]
      %v3358 = vld [vmem:[#allocation5 + $0x68] sm:$0xff]
      %v3359 = vld [vmem:[#allocation5 + $0x70] sm:$0xff]
      %v3360 = vld [vmem:[#allocation5 + $0x78] sm:$0xff]
      %v3361 = vld [vmem:[#allocation5 + $0xa0] sm:$0xff]
      %v3362 = vld [vmem:[#allocation5 + $0xa8] sm:$0xff]
      %v3363 = vld [vmem:[#allocation5 + $0xb0] sm:$0xff]
      %v3364 = vld [vmem:[#allocation5 + $0xb8] sm:$0xff]
      %v3365 = vld [vmem:[#allocation5 + $0xc0] sm:$0xff]
      %v3366 = vld [vmem:[#allocation5 + $0xc8] sm:$0xff]
      %v3367 = vld [vmem:[#allocation5 + $0xd0] sm:$0xff]
      %v3368 = vld [vmem:[#allocation5 + $0xd8] sm:$0xff]
      %v3369 = vld [vmem:[#allocation5 + $0xe0] sm:$0xff]
      %v3370 = vld [vmem:[#allocation5 + $0xe8] sm:$0xff]
      %v3371 = vld [vmem:[#allocation5 + $0xf0] sm:$0xff]
      %v3372 = vld [vmem:[#allocation5 + $0xf8] sm:$0xff]
      %v3373 = vld [vmem:[#allocation5 + $0x100] sm:$0xff]
      %v3374 = vld [vmem:[#allocation5 + $0x108] sm:$0xff]
      %v3375 = vld [vmem:[#allocation5 + $0x110] sm:$0xff]
      %v3376 = vld [vmem:[#allocation5 + $0x118] sm:$0xff]
      %v3377 = vld [vmem:[#allocation5 + $0x140] sm:$0xff]
      %v3378 = vld [vmem:[#allocation5 + $0x148] sm:$0xff]
      %v3379 = vld [vmem:[#allocation5 + $0x150] sm:$0xff]
      %v3380 = vld [vmem:[#allocation5 + $0x158] sm:$0xff]
      %v3381 = vld [vmem:[#allocation5 + $0x160] sm:$0xff]
      %v3382 = vld [vmem:[#allocation5 + $0x168] sm:$0xff]
      %v3383 = vld [vmem:[#allocation5 + $0x170] sm:$0xff]
      %v3384 = vld [vmem:[#allocation5 + $0x178] sm:$0xff]
      %v3385 = vld [vmem:[#allocation5 + $0x180] sm:$0xff]
      %v3386 = vld [vmem:[#allocation5 + $0x188] sm:$0xff]
      %v3387 = vld [vmem:[#allocation5 + $0x190] sm:$0xff]
      %v3388 = vld [vmem:[#allocation5 + $0x198] sm:$0xff]
      %v3389 = vld [vmem:[#allocation5 + $0x1a0] sm:$0xff]
      %v3390 = vld [vmem:[#allocation5 + $0x1a8] sm:$0xff]
      %v3391 = vld [vmem:[#allocation5 + $0x1b0] sm:$0xff]
      %v3392 = vld [vmem:[#allocation5 + $0x1b8] sm:$0xff]
      %v3393 = vld [vmem:[#allocation5 + $0x1e0] sm:$0xff]
      %v3394 = vld [vmem:[#allocation5 + $0x1e8] sm:$0xff]
      %v3395 = vld [vmem:[#allocation5 + $0x1f0] sm:$0xff]
      %v3396 = vld [vmem:[#allocation5 + $0x1f8] sm:$0xff]
      %v3397 = vld [vmem:[#allocation5 + $0x200] sm:$0xff]
      %v3398 = vld [vmem:[#allocation5 + $0x208] sm:$0xff]
      %v3399 = vld [vmem:[#allocation5 + $0x210] sm:$0xff]
      %v3400 = vld [vmem:[#allocation5 + $0x218] sm:$0xff]
      %v3401 = vld [vmem:[#allocation5 + $0x220] sm:$0xff]
      %v3402 = vld [vmem:[#allocation5 + $0x228] sm:$0xff]
      %v3403 = vld [vmem:[#allocation5 + $0x230] sm:$0xff]
      %v3404 = vld [vmem:[#allocation5 + $0x238] sm:$0xff]
      %v3405 = vld [vmem:[#allocation5 + $0x240] sm:$0xff]
      %v3406 = vld [vmem:[#allocation5 + $0x248] sm:$0xff]
      %v3407 = vld [vmem:[#allocation5 + $0x250] sm:$0xff]
      %v3408 = vld [vmem:[#allocation5 + $0x258] sm:$0xff]
      %v3409 = vld [vmem:[#allocation5 + $0x280] sm:$0xf]
      %v3410 = vld [vmem:[#allocation5 + $0x288] sm:$0xf]
      %v3411 = vld [vmem:[#allocation5 + $0x290] sm:$0xf]
      %v3412 = vld [vmem:[#allocation5 + $0x298] sm:$0xf]
      %v3413 = vld [vmem:[#allocation5 + $0x2a0] sm:$0xf]
      %v3414 = vld [vmem:[#allocation5 + $0x2a8] sm:$0xf]
      %v3415 = vld [vmem:[#allocation5 + $0x2b0] sm:$0xf]
      %v3416 = vld [vmem:[#allocation5 + $0x2b8] sm:$0xf]
      %v3417 = vld [vmem:[#allocation5 + $0x2c0] sm:$0xf]
      %v3418 = vld [vmem:[#allocation5 + $0x2c8] sm:$0xf]
      %v3419 = vld [vmem:[#allocation5 + $0x2d0] sm:$0xf]
      %v3420 = vld [vmem:[#allocation5 + $0x2d8] sm:$0xf]
      %v3421 = vld [vmem:[#allocation5 + $0x2e0] sm:$0xf]
      %v3422 = vld [vmem:[#allocation5 + $0x2e8] sm:$0xf]
      %v3423 = vld [vmem:[#allocation5 + $0x2f0] sm:$0xf]
      %v3424 = vld [vmem:[#allocation5 + $0x2f8] sm:$0xf]
      %v3425 = vld [vmem:[%s310 + $0x10] sm:$0xff]
      %v3426 = vld [vmem:[%s310 + $0x18] sm:$0xff]
      %v3427 = vld [vmem:[%s310 + $0x20] sm:$0xff]
      %v3428 = vld [vmem:[%s310 + $0x28] sm:$0xff]
      %v3429 = vld [vmem:[%s310 + $0x30] sm:$0xff]
      %v3430 = vld [vmem:[%s310 + $0x38] sm:$0xff]
      %v3431 = vld [vmem:[%s310 + $0x40] sm:$0xff]
      %v3432 = vld [vmem:[%s310 + $0x48] sm:$0xff]
      %v3433 = vld [vmem:[%s4] sm:$0xf]
      %3435 = vset.pattern.permute.xlu0 0
      %3436 = vperm.xlu0 %3435, %v3433
      %v3437 = vpop.permute.xlu0 %3436
      %v3440 = vsel %vm1552, %v3344, 0
      %v3443 = vsel %vm1556, %v3409, 0
      %v3446 = vsel %vm1556, %v3410, 0
      %v3449 = vsel %vm1556, %v3411, 0
      %v3452 = vsel %vm1556, %v3412, 0
      %v3455 = vsel %vm1556, %v3413, 0
      %v3458 = vsel %vm1556, %v3414, 0
      %v3461 = vsel %vm1556, %v3415, 0
      %v3464 = vsel %vm1556, %v3416, 0
      %v3467 = vsel %vm1556, %v3417, 0
      %v3470 = vsel %vm1556, %v3418, 0
      %v3473 = vsel %vm1556, %v3419, 0
      %v3476 = vsel %vm1556, %v3420, 0
      %v3479 = vsel %vm1556, %v3421, 0
      %v3482 = vsel %vm1556, %v3422, 0
      %v3485 = vsel %vm1556, %v3423, 0
      %v3488 = vsel %vm1556, %v3424, 0
      %3490 = vmatprep.subr.mxu0 %v3346
      %3491 = vmatpush1.msra.mxu0 %v3345
      %3492 = vmatprep.subr.mxu0 %v3362
      %3493 = vmatpush1.msra.mxu0 %v3361
      %3494 = vmatprep.subr.mxu0 %v3378
      %3495 = vmatpush1.msra.mxu0 %v3377
      %3496 = vmatprep.subr.mxu0 %v3394
      %3497 = vmatpush1.msra.mxu0 %v3393
      %3498 = vmatprep.subr.mxu0 %v3446
      %3499 = vmatpush1.msra.mxu0 %v3443
      %3500 = vmatprep.subr.mxu0 0.0
      %3501 = vmatpush1.msra.mxu0 0.0
      %3502 = vmatprep.subr.mxu0 0.0
      %3503 = vmatpush1.msra.mxu0 0.0
      %3504 = vmatprep.subr.mxu0 0.0
      %3505 = vmatpush1.msra.mxu0 0.0
      %3506 = vmatprep.subr.mxu0 0.0
      %3507 = vmatpush1.msra.mxu0 0.0
      %3508 = vmatprep.subr.mxu0 0.0
      %3509 = vmatpush1.msra.mxu0 0.0
      %3510 = vmatprep.subr.mxu0 0.0
      %3511 = vmatpush1.msra.mxu0 0.0
      %3512 = vmatprep.subr.mxu0 0.0
      %3513 = vmatpush1.msra.mxu0 0.0
      %3514 = vmatprep.subr.mxu0 0.0
      %3515 = vmatpush1.msra.mxu0 0.0
      %3516 = vmatprep.subr.mxu0 0.0
      %3517 = vmatpush1.msra.mxu0 0.0
      %3518 = vmatprep.subr.mxu0 0.0
      %3519 = vmatpush1.msra.mxu0 0.0
      %3520 = vmatprep.subr.mxu0 0.0
      %3521 = vmatpush1.msra.mxu0 0.0
      %3522 = vmatprep.subr.mxu0 0.0
      %3523 = vmatpush1.msra.mxu0 0.0
      %3524 = vmatprep.subr.mxu0 0.0
      %3525 = vmatpush1.msra.mxu0 0.0
      %3526 = vmatprep.subr.mxu0 0.0
      %3527 = vmatpush1.msra.mxu0 0.0
      %3528 = vmatprep.subr.mxu0 0.0
      %3529 = vmatpush1.msra.mxu0 0.0
      %3530 = vmatprep.subr.mxu0 0.0
      %3531 = vmatpush1.msra.mxu0 0.0
      %3532 = vmatprep.subr.mxu0 0.0
      %3533 = vmatpush1.msra.mxu0 0.0
      %3534 = vmatprep.subr.mxu0 0.0
      %3535 = vmatpush1.msra.mxu0 0.0
      %3536 = vmatprep.subr.mxu0 0.0
      %3537 = vmatpush1.msra.mxu0 0.0
      %3538 = vmatprep.subr.mxu0 0.0
      %3539 = vmatpush1.msra.mxu0 0.0
      %3540 = vmatprep.subr.mxu0 0.0
      %3541 = vmatpush1.msra.mxu0 0.0
      %3542 = vmatprep.subr.mxu0 0.0
      %3543 = vmatpush1.msra.mxu0 0.0
      %3544 = vmatprep.subr.mxu0 0.0
      %3545 = vmatpush1.msra.mxu0 0.0
      %3546 = vmatprep.subr.mxu0 0.0
      %3547 = vmatpush1.msra.mxu0 0.0
      %3548 = vmatprep.subr.mxu0 0.0
      %3549 = vmatpush1.msra.mxu0 0.0
      %3550 = vmatprep.subr.mxu0 0.0
      %3551 = vmatpush1.msra.mxu0 0.0
      %3552 = vmatprep.subr.mxu0 0.0
      %3553 = vmatpush1.msra.mxu0 0.0
      %3554 = vmatprep.mubr.f32.mxu0 0.0
      %3555 = vmatmul.mubr.f32.gmra.mrb[0].mxu0 %v3440
      %v3556 = vpop.f32.mrb[0].mxu0
      %v3557 = vadd.f32 %v3437, %v3556
      %v3558 = vpop.f32.mrb[0].mxu0
      %v3559 = vadd.f32 %v3437, %v3558
      %3560 = vdwg.mxu0
      %3561 = vmatprep.subr.mxu0 %v3348
      %3562 = vmatpush1.msra.mxu0 %v3347
      %3563 = vmatprep.subr.mxu0 %v3364
      %3564 = vmatpush1.msra.mxu0 %v3363
      %3565 = vmatprep.subr.mxu0 %v3380
      %3566 = vmatpush1.msra.mxu0 %v3379
      %3567 = vmatprep.subr.mxu0 %v3396
      %3568 = vmatpush1.msra.mxu0 %v3395
      %3569 = vmatprep.subr.mxu0 %v3452
      %3570 = vmatpush1.msra.mxu0 %v3449
      %3571 = vmatprep.subr.mxu0 0.0
      %3572 = vmatpush1.msra.mxu0 0.0
      %3573 = vmatprep.subr.mxu0 0.0
      %3574 = vmatpush1.msra.mxu0 0.0
      %3575 = vmatprep.subr.mxu0 0.0
      %3576 = vmatpush1.msra.mxu0 0.0
      %3577 = vmatprep.subr.mxu0 0.0
      %3578 = vmatpush1.msra.mxu0 0.0
      %3579 = vmatprep.subr.mxu0 0.0
      %3580 = vmatpush1.msra.mxu0 0.0
      %3581 = vmatprep.subr.mxu0 0.0
      %3582 = vmatpush1.msra.mxu0 0.0
      %3583 = vmatprep.subr.mxu0 0.0
      %3584 = vmatpush1.msra.mxu0 0.0
      %3585 = vmatprep.subr.mxu0 0.0
      %3586 = vmatpush1.msra.mxu0 0.0
      %3587 = vmatprep.subr.mxu0 0.0
      %3588 = vmatpush1.msra.mxu0 0.0
      %3589 = vmatprep.subr.mxu0 0.0
      %3590 = vmatpush1.msra.mxu0 0.0
      %3591 = vmatprep.subr.mxu0 0.0
      %3592 = vmatpush1.msra.mxu0 0.0
      %3593 = vmatprep.subr.mxu0 0.0
      %3594 = vmatpush1.msra.mxu0 0.0
      %3595 = vmatprep.subr.mxu0 0.0
      %3596 = vmatpush1.msra.mxu0 0.0
      %3597 = vmatprep.subr.mxu0 0.0
      %3598 = vmatpush1.msra.mxu0 0.0
      %3599 = vmatprep.subr.mxu0 0.0
      %3600 = vmatpush1.msra.mxu0 0.0
      %3601 = vmatprep.subr.mxu0 0.0
      %3602 = vmatpush1.msra.mxu0 0.0
      %3603 = vmatprep.subr.mxu0 0.0
      %3604 = vmatpush1.msra.mxu0 0.0
      %3605 = vmatprep.subr.mxu0 0.0
      %3606 = vmatpush1.msra.mxu0 0.0
      %3607 = vmatprep.subr.mxu0 0.0
      %3608 = vmatpush1.msra.mxu0 0.0
      %3609 = vmatprep.subr.mxu0 0.0
      %3610 = vmatpush1.msra.mxu0 0.0
      %3611 = vmatprep.subr.mxu0 0.0
      %3612 = vmatpush1.msra.mxu0 0.0
      %3613 = vmatprep.subr.mxu0 0.0
      %3614 = vmatpush1.msra.mxu0 0.0
      %3615 = vmatprep.subr.mxu0 0.0
      %3616 = vmatpush1.msra.mxu0 0.0
      %3617 = vmatprep.subr.mxu0 0.0
      %3618 = vmatpush1.msra.mxu0 0.0
      %3619 = vmatprep.subr.mxu0 0.0
      %3620 = vmatpush1.msra.mxu0 0.0
      %3621 = vmatprep.subr.mxu0 0.0
      %3622 = vmatpush1.msra.mxu0 0.0
      %3623 = vmatprep.subr.mxu0 0.0
      %3624 = vmatpush1.msra.mxu0 0.0
      %3625 = vmatprep.mubr.f32.mxu0 0.0
      %3626 = vmatmul.mubr.f32.gmra.mrb[0].mxu0 %v3440
      %v3627 = vpop.f32.mrb[0].mxu0
      %v3628 = vadd.f32 %v3437, %v3627
      %v3629 = vpop.f32.mrb[0].mxu0
      %v3630 = vadd.f32 %v3437, %v3629
      %3631 = vdwg.mxu0
      %3632 = vmatprep.subr.mxu0 %v3350
      %3633 = vmatpush1.msra.mxu0 %v3349
      %3634 = vmatprep.subr.mxu0 %v3366
      %3635 = vmatpush1.msra.mxu0 %v3365
      %3636 = vmatprep.subr.mxu0 %v3382
      %3637 = vmatpush1.msra.mxu0 %v3381
      %3638 = vmatprep.subr.mxu0 %v3398
      %3639 = vmatpush1.msra.mxu0 %v3397
      %3640 = vmatprep.subr.mxu0 %v3458
      %3641 = vmatpush1.msra.mxu0 %v3455
      %3642 = vmatprep.subr.mxu0 0.0
      %3643 = vmatpush1.msra.mxu0 0.0
      %3644 = vmatprep.subr.mxu0 0.0
      %3645 = vmatpush1.msra.mxu0 0.0
      %3646 = vmatprep.subr.mxu0 0.0
      %3647 = vmatpush1.msra.mxu0 0.0
      %3648 = vmatprep.subr.mxu0 0.0
      %3649 = vmatpush1.msra.mxu0 0.0
      %3650 = vmatprep.subr.mxu0 0.0
      %3651 = vmatpush1.msra.mxu0 0.0
      %3652 = vmatprep.subr.mxu0 0.0
      %3653 = vmatpush1.msra.mxu0 0.0
      %3654 = vmatprep.subr.mxu0 0.0
      %3655 = vmatpush1.msra.mxu0 0.0
      %3656 = vmatprep.subr.mxu0 0.0
      %3657 = vmatpush1.msra.mxu0 0.0
      %3658 = vmatprep.subr.mxu0 0.0
      %3659 = vmatpush1.msra.mxu0 0.0
      %3660 = vmatprep.subr.mxu0 0.0
      %3661 = vmatpush1.msra.mxu0 0.0
      %3662 = vmatprep.subr.mxu0 0.0
      %3663 = vmatpush1.msra.mxu0 0.0
      %3664 = vmatprep.subr.mxu0 0.0
      %3665 = vmatpush1.msra.mxu0 0.0
      %3666 = vmatprep.subr.mxu0 0.0
      %3667 = vmatpush1.msra.mxu0 0.0
      %3668 = vmatprep.subr.mxu0 0.0
      %3669 = vmatpush1.msra.mxu0 0.0
      %3670 = vmatprep.subr.mxu0 0.0
      %3671 = vmatpush1.msra.mxu0 0.0
      %3672 = vmatprep.subr.mxu0 0.0
      %3673 = vmatpush1.msra.mxu0 0.0
      %3674 = vmatprep.subr.mxu0 0.0
      %3675 = vmatpush1.msra.mxu0 0.0
      %3676 = vmatprep.subr.mxu0 0.0
      %3677 = vmatpush1.msra.mxu0 0.0
      %3678 = vmatprep.subr.mxu0 0.0
      %3679 = vmatpush1.msra.mxu0 0.0
      %3680 = vmatprep.subr.mxu0 0.0
      %3681 = vmatpush1.msra.mxu0 0.0
      %3682 = vmatprep.subr.mxu0 0.0
      %3683 = vmatpush1.msra.mxu0 0.0
      %3684 = vmatprep.subr.mxu0 0.0
      %3685 = vmatpush1.msra.mxu0 0.0
      %3686 = vmatprep.subr.mxu0 0.0
      %3687 = vmatpush1.msra.mxu0 0.0
      %3688 = vmatprep.subr.mxu0 0.0
      %3689 = vmatpush1.msra.mxu0 0.0
      %3690 = vmatprep.subr.mxu0 0.0
      %3691 = vmatpush1.msra.mxu0 0.0
      %3692 = vmatprep.subr.mxu0 0.0
      %3693 = vmatpush1.msra.mxu0 0.0
      %3694 = vmatprep.subr.mxu0 0.0
      %3695 = vmatpush1.msra.mxu0 0.0
      %3696 = vmatprep.mubr.f32.mxu0 0.0
      %3697 = vmatmul.mubr.f32.gmra.mrb[0].mxu0 %v3440
      %v3698 = vpop.f32.mrb[0].mxu0
      %v3699 = vadd.f32 %v3437, %v3698
      %v3700 = vpop.f32.mrb[0].mxu0
      %v3701 = vadd.f32 %v3437, %v3700
      %3702 = vdwg.mxu0
      %3703 = vmatprep.subr.mxu0 %v3352
      %3704 = vmatpush1.msra.mxu0 %v3351
      %3705 = vmatprep.subr.mxu0 %v3368
      %3706 = vmatpush1.msra.mxu0 %v3367
      %3707 = vmatprep.subr.mxu0 %v3384
      %3708 = vmatpush1.msra.mxu0 %v3383
      %3709 = vmatprep.subr.mxu0 %v3400
      %3710 = vmatpush1.msra.mxu0 %v3399
      %3711 = vmatprep.subr.mxu0 %v3464
      %3712 = vmatpush1.msra.mxu0 %v3461
      %3713 = vmatprep.subr.mxu0 0.0
      %3714 = vmatpush1.msra.mxu0 0.0
      %3715 = vmatprep.subr.mxu0 0.0
      %3716 = vmatpush1.msra.mxu0 0.0
      %3717 = vmatprep.subr.mxu0 0.0
      %3718 = vmatpush1.msra.mxu0 0.0
      %3719 = vmatprep.subr.mxu0 0.0
      %3720 = vmatpush1.msra.mxu0 0.0
      %3721 = vmatprep.subr.mxu0 0.0
      %3722 = vmatpush1.msra.mxu0 0.0
      %3723 = vmatprep.subr.mxu0 0.0
      %3724 = vmatpush1.msra.mxu0 0.0
      %3725 = vmatprep.subr.mxu0 0.0
      %3726 = vmatpush1.msra.mxu0 0.0
      %3727 = vmatprep.subr.mxu0 0.0
      %3728 = vmatpush1.msra.mxu0 0.0
      %3729 = vmatprep.subr.mxu0 0.0
      %3730 = vmatpush1.msra.mxu0 0.0
      %3731 = vmatprep.subr.mxu0 0.0
      %3732 = vmatpush1.msra.mxu0 0.0
      %3733 = vmatprep.subr.mxu0 0.0
      %3734 = vmatpush1.msra.mxu0 0.0
      %3735 = vmatprep.subr.mxu0 0.0
      %3736 = vmatpush1.msra.mxu0 0.0
      %3737 = vmatprep.subr.mxu0 0.0
      %3738 = vmatpush1.msra.mxu0 0.0
      %3739 = vmatprep.subr.mxu0 0.0
      %3740 = vmatpush1.msra.mxu0 0.0
      %3741 = vmatprep.subr.mxu0 0.0
      %3742 = vmatpush1.msra.mxu0 0.0
      %3743 = vmatprep.subr.mxu0 0.0
      %3744 = vmatpush1.msra.mxu0 0.0
      %3745 = vmatprep.subr.mxu0 0.0
      %3746 = vmatpush1.msra.mxu0 0.0
      %3747 = vmatprep.subr.mxu0 0.0
      %3748 = vmatpush1.msra.mxu0 0.0
      %3749 = vmatprep.subr.mxu0 0.0
      %3750 = vmatpush1.msra.mxu0 0.0
      %3751 = vmatprep.subr.mxu0 0.0
      %3752 = vmatpush1.msra.mxu0 0.0
      %3753 = vmatprep.subr.mxu0 0.0
      %3754 = vmatpush1.msra.mxu0 0.0
      %3755 = vmatprep.subr.mxu0 0.0
      %3756 = vmatpush1.msra.mxu0 0.0
      %3757 = vmatprep.subr.mxu0 0.0
      %3758 = vmatpush1.msra.mxu0 0.0
      %3759 = vmatprep.subr.mxu0 0.0
      %3760 = vmatpush1.msra.mxu0 0.0
      %3761 = vmatprep.subr.mxu0 0.0
      %3762 = vmatpush1.msra.mxu0 0.0
      %3763 = vmatprep.subr.mxu0 0.0
      %3764 = vmatpush1.msra.mxu0 0.0
      %3765 = vmatprep.subr.mxu0 0.0
      %3766 = vmatpush1.msra.mxu0 0.0
      %3767 = vmatprep.mubr.f32.mxu0 0.0
      %3768 = vmatmul.mubr.f32.gmra.mrb[0].mxu0 %v3440
      %v3769 = vpop.f32.mrb[0].mxu0
      %v3770 = vadd.f32 %v3437, %v3769
      %v3771 = vpop.f32.mrb[0].mxu0
      %v3772 = vadd.f32 %v3437, %v3771
      %3773 = vdwg.mxu0
      %3774 = vmatprep.subr.mxu0 %v3354
      %3775 = vmatpush1.msra.mxu0 %v3353
      %3776 = vmatprep.subr.mxu0 %v3370
      %3777 = vmatpush1.msra.mxu0 %v3369
      %3778 = vmatprep.subr.mxu0 %v3386
      %3779 = vmatpush1.msra.mxu0 %v3385
      %3780 = vmatprep.subr.mxu0 %v3402
      %3781 = vmatpush1.msra.mxu0 %v3401
      %3782 = vmatprep.subr.mxu0 %v3470
      %3783 = vmatpush1.msra.mxu0 %v3467
      %3784 = vmatprep.subr.mxu0 0.0
      %3785 = vmatpush1.msra.mxu0 0.0
      %3786 = vmatprep.subr.mxu0 0.0
      %3787 = vmatpush1.msra.mxu0 0.0
      %3788 = vmatprep.subr.mxu0 0.0
      %3789 = vmatpush1.msra.mxu0 0.0
      %3790 = vmatprep.subr.mxu0 0.0
      %3791 = vmatpush1.msra.mxu0 0.0
      %3792 = vmatprep.subr.mxu0 0.0
      %3793 = vmatpush1.msra.mxu0 0.0
      %3794 = vmatprep.subr.mxu0 0.0
      %3795 = vmatpush1.msra.mxu0 0.0
      %3796 = vmatprep.subr.mxu0 0.0
      %3797 = vmatpush1.msra.mxu0 0.0
      %3798 = vmatprep.subr.mxu0 0.0
      %3799 = vmatpush1.msra.mxu0 0.0
      %3800 = vmatprep.subr.mxu0 0.0
      %3801 = vmatpush1.msra.mxu0 0.0
      %3802 = vmatprep.subr.mxu0 0.0
      %3803 = vmatpush1.msra.mxu0 0.0
      %3804 = vmatprep.subr.mxu0 0.0
      %3805 = vmatpush1.msra.mxu0 0.0
      %3806 = vmatprep.subr.mxu0 0.0
      %3807 = vmatpush1.msra.mxu0 0.0
      %3808 = vmatprep.subr.mxu0 0.0
      %3809 = vmatpush1.msra.mxu0 0.0
      %3810 = vmatprep.subr.mxu0 0.0
      %3811 = vmatpush1.msra.mxu0 0.0
      %3812 = vmatprep.subr.mxu0 0.0
      %3813 = vmatpush1.msra.mxu0 0.0
      %3814 = vmatprep.subr.mxu0 0.0
      %3815 = vmatpush1.msra.mxu0 0.0
      %3816 = vmatprep.subr.mxu0 0.0
      %3817 = vmatpush1.msra.mxu0 0.0
      %3818 = vmatprep.subr.mxu0 0.0
      %3819 = vmatpush1.msra.mxu0 0.0
      %3820 = vmatprep.subr.mxu0 0.0
      %3821 = vmatpush1.msra.mxu0 0.0
      %3822 = vmatprep.subr.mxu0 0.0
      %3823 = vmatpush1.msra.mxu0 0.0
      %3824 = vmatprep.subr.mxu0 0.0
      %3825 = vmatpush1.msra.mxu0 0.0
      %3826 = vmatprep.subr.mxu0 0.0
      %3827 = vmatpush1.msra.mxu0 0.0
      %3828 = vmatprep.subr.mxu0 0.0
      %3829 = vmatpush1.msra.mxu0 0.0
      %3830 = vmatprep.subr.mxu0 0.0
      %3831 = vmatpush1.msra.mxu0 0.0
      %3832 = vmatprep.subr.mxu0 0.0
      %3833 = vmatpush1.msra.mxu0 0.0
      %3834 = vmatprep.subr.mxu0 0.0
      %3835 = vmatpush1.msra.mxu0 0.0
      %3836 = vmatprep.subr.mxu0 0.0
      %3837 = vmatpush1.msra.mxu0 0.0
      %3838 = vmatprep.mubr.f32.mxu0 0.0
      %3839 = vmatmul.mubr.f32.gmra.mrb[0].mxu0 %v3440
      %v3840 = vpop.f32.mrb[0].mxu0
      %v3841 = vadd.f32 %v3437, %v3840
      %v3842 = vpop.f32.mrb[0].mxu0
      %v3843 = vadd.f32 %v3437, %v3842
      %3844 = vdwg.mxu0
      %3845 = vmatprep.subr.mxu0 %v3356
      %3846 = vmatpush1.msra.mxu0 %v3355
      %3847 = vmatprep.subr.mxu0 %v3372
      %3848 = vmatpush1.msra.mxu0 %v3371
      %3849 = vmatprep.subr.mxu0 %v3388
      %3850 = vmatpush1.msra.mxu0 %v3387
      %3851 = vmatprep.subr.mxu0 %v3404
      %3852 = vmatpush1.msra.mxu0 %v3403
      %3853 = vmatprep.subr.mxu0 %v3476
      %3854 = vmatpush1.msra.mxu0 %v3473
      %3855 = vmatprep.subr.mxu0 0.0
      %3856 = vmatpush1.msra.mxu0 0.0
      %3857 = vmatprep.subr.mxu0 0.0
      %3858 = vmatpush1.msra.mxu0 0.0
      %3859 = vmatprep.subr.mxu0 0.0
      %3860 = vmatpush1.msra.mxu0 0.0
      %3861 = vmatprep.subr.mxu0 0.0
      %3862 = vmatpush1.msra.mxu0 0.0
      %3863 = vmatprep.subr.mxu0 0.0
      %3864 = vmatpush1.msra.mxu0 0.0
      %3865 = vmatprep.subr.mxu0 0.0
      %3866 = vmatpush1.msra.mxu0 0.0
      %3867 = vmatprep.subr.mxu0 0.0
      %3868 = vmatpush1.msra.mxu0 0.0
      %3869 = vmatprep.subr.mxu0 0.0
      %3870 = vmatpush1.msra.mxu0 0.0
      %3871 = vmatprep.subr.mxu0 0.0
      %3872 = vmatpush1.msra.mxu0 0.0
      %3873 = vmatprep.subr.mxu0 0.0
      %3874 = vmatpush1.msra.mxu0 0.0
      %3875 = vmatprep.subr.mxu0 0.0
      %3876 = vmatpush1.msra.mxu0 0.0
      %3877 = vmatprep.subr.mxu0 0.0
      %3878 = vmatpush1.msra.mxu0 0.0
      %3879 = vmatprep.subr.mxu0 0.0
      %3880 = vmatpush1.msra.mxu0 0.0
      %3881 = vmatprep.subr.mxu0 0.0
      %3882 = vmatpush1.msra.mxu0 0.0
      %3883 = vmatprep.subr.mxu0 0.0
      %3884 = vmatpush1.msra.mxu0 0.0
      %3885 = vmatprep.subr.mxu0 0.0
      %3886 = vmatpush1.msra.mxu0 0.0
      %3887 = vmatprep.subr.mxu0 0.0
      %3888 = vmatpush1.msra.mxu0 0.0
      %3889 = vmatprep.subr.mxu0 0.0
      %3890 = vmatpush1.msra.mxu0 0.0
      %3891 = vmatprep.subr.mxu0 0.0
      %3892 = vmatpush1.msra.mxu0 0.0
      %3893 = vmatprep.subr.mxu0 0.0
      %3894 = vmatpush1.msra.mxu0 0.0
      %3895 = vmatprep.subr.mxu0 0.0
      %3896 = vmatpush1.msra.mxu0 0.0
      %3897 = vmatprep.subr.mxu0 0.0
      %3898 = vmatpush1.msra.mxu0 0.0
      %3899 = vmatprep.subr.mxu0 0.0
      %3900 = vmatpush1.msra.mxu0 0.0
      %3901 = vmatprep.subr.mxu0 0.0
      %3902 = vmatpush1.msra.mxu0 0.0
      %3903 = vmatprep.subr.mxu0 0.0
      %3904 = vmatpush1.msra.mxu0 0.0
      %3905 = vmatprep.subr.mxu0 0.0
      %3906 = vmatpush1.msra.mxu0 0.0
      %3907 = vmatprep.subr.mxu0 0.0
      %3908 = vmatpush1.msra.mxu0 0.0
      %3909 = vmatprep.mubr.f32.mxu0 0.0
      %3910 = vmatmul.mubr.f32.gmra.mrb[0].mxu0 %v3440
      %v3911 = vpop.f32.mrb[0].mxu0
      %v3912 = vadd.f32 %v3437, %v3911
      %v3913 = vpop.f32.mrb[0].mxu0
      %v3914 = vadd.f32 %v3437, %v3913
      %3915 = vdwg.mxu0
      %3916 = vmatprep.subr.mxu0 %v3358
      %3917 = vmatpush1.msra.mxu0 %v3357
      %3918 = vmatprep.subr.mxu0 %v3374
      %3919 = vmatpush1.msra.mxu0 %v3373
      %3920 = vmatprep.subr.mxu0 %v3390
      %3921 = vmatpush1.msra.mxu0 %v3389
      %3922 = vmatprep.subr.mxu0 %v3406
      %3923 = vmatpush1.msra.mxu0 %v3405
      %3924 = vmatprep.subr.mxu0 %v3482
      %3925 = vmatpush1.msra.mxu0 %v3479
      %3926 = vmatprep.subr.mxu0 0.0
      %3927 = vmatpush1.msra.mxu0 0.0
      %3928 = vmatprep.subr.mxu0 0.0
      %3929 = vmatpush1.msra.mxu0 0.0
      %3930 = vmatprep.subr.mxu0 0.0
      %3931 = vmatpush1.msra.mxu0 0.0
      %3932 = vmatprep.subr.mxu0 0.0
      %3933 = vmatpush1.msra.mxu0 0.0
      %3934 = vmatprep.subr.mxu0 0.0
      %3935 = vmatpush1.msra.mxu0 0.0
      %3936 = vmatprep.subr.mxu0 0.0
      %3937 = vmatpush1.msra.mxu0 0.0
      %3938 = vmatprep.subr.mxu0 0.0
      %3939 = vmatpush1.msra.mxu0 0.0
      %3940 = vmatprep.subr.mxu0 0.0
      %3941 = vmatpush1.msra.mxu0 0.0
      %3942 = vmatprep.subr.mxu0 0.0
      %3943 = vmatpush1.msra.mxu0 0.0
      %3944 = vmatprep.subr.mxu0 0.0
      %3945 = vmatpush1.msra.mxu0 0.0
      %3946 = vmatprep.subr.mxu0 0.0
      %3947 = vmatpush1.msra.mxu0 0.0
      %3948 = vmatprep.subr.mxu0 0.0
      %3949 = vmatpush1.msra.mxu0 0.0
      %3950 = vmatprep.subr.mxu0 0.0
      %3951 = vmatpush1.msra.mxu0 0.0
      %3952 = vmatprep.subr.mxu0 0.0
      %3953 = vmatpush1.msra.mxu0 0.0
      %3954 = vmatprep.subr.mxu0 0.0
      %3955 = vmatpush1.msra.mxu0 0.0
      %3956 = vmatprep.subr.mxu0 0.0
      %3957 = vmatpush1.msra.mxu0 0.0
      %3958 = vmatprep.subr.mxu0 0.0
      %3959 = vmatpush1.msra.mxu0 0.0
      %3960 = vmatprep.subr.mxu0 0.0
      %3961 = vmatpush1.msra.mxu0 0.0
      %3962 = vmatprep.subr.mxu0 0.0
      %3963 = vmatpush1.msra.mxu0 0.0
      %3964 = vmatprep.subr.mxu0 0.0
      %3965 = vmatpush1.msra.mxu0 0.0
      %3966 = vmatprep.subr.mxu0 0.0
      %3967 = vmatpush1.msra.mxu0 0.0
      %3968 = vmatprep.subr.mxu0 0.0
      %3969 = vmatpush1.msra.mxu0 0.0
      %3970 = vmatprep.subr.mxu0 0.0
      %3971 = vmatpush1.msra.mxu0 0.0
      %3972 = vmatprep.subr.mxu0 0.0
      %3973 = vmatpush1.msra.mxu0 0.0
      %3974 = vmatprep.subr.mxu0 0.0
      %3975 = vmatpush1.msra.mxu0 0.0
      %3976 = vmatprep.subr.mxu0 0.0
      %3977 = vmatpush1.msra.mxu0 0.0
      %3978 = vmatprep.subr.mxu0 0.0
      %3979 = vmatpush1.msra.mxu0 0.0
      %3980 = vmatprep.mubr.f32.mxu0 0.0
      %3981 = vmatmul.mubr.f32.gmra.mrb[0].mxu0 %v3440
      %v3982 = vpop.f32.mrb[0].mxu0
      %v3983 = vadd.f32 %v3437, %v3982
      %v3984 = vpop.f32.mrb[0].mxu0
      %v3985 = vadd.f32 %v3437, %v3984
      %3986 = vdwg.mxu0
      %3987 = vmatprep.subr.mxu0 %v3360
      %3988 = vmatpush1.msra.mxu0 %v3359
      %3989 = vmatprep.subr.mxu0 %v3376
      %3990 = vmatpush1.msra.mxu0 %v3375
      %3991 = vmatprep.subr.mxu0 %v3392
      %3992 = vmatpush1.msra.mxu0 %v3391
      %3993 = vmatprep.subr.mxu0 %v3408
      %3994 = vmatpush1.msra.mxu0 %v3407
      %3995 = vmatprep.subr.mxu0 %v3488
      %3996 = vmatpush1.msra.mxu0 %v3485
      %3997 = vmatprep.subr.mxu0 0.0
      %3998 = vmatpush1.msra.mxu0 0.0
      %3999 = vmatprep.subr.mxu0 0.0
      %4000 = vmatpush1.msra.mxu0 0.0
      %4001 = vmatprep.subr.mxu0 0.0
      %4002 = vmatpush1.msra.mxu0 0.0
      %4003 = vmatprep.subr.mxu0 0.0
      %4004 = vmatpush1.msra.mxu0 0.0
      %4005 = vmatprep.subr.mxu0 0.0
      %4006 = vmatpush1.msra.mxu0 0.0
      %4007 = vmatprep.subr.mxu0 0.0
      %4008 = vmatpush1.msra.mxu0 0.0
      %4009 = vmatprep.subr.mxu0 0.0
      %4010 = vmatpush1.msra.mxu0 0.0
      %4011 = vmatprep.subr.mxu0 0.0
      %4012 = vmatpush1.msra.mxu0 0.0
      %4013 = vmatprep.subr.mxu0 0.0
      %4014 = vmatpush1.msra.mxu0 0.0
      %4015 = vmatprep.subr.mxu0 0.0
      %4016 = vmatpush1.msra.mxu0 0.0
      %4017 = vmatprep.subr.mxu0 0.0
      %4018 = vmatpush1.msra.mxu0 0.0
      %4019 = vmatprep.subr.mxu0 0.0
      %4020 = vmatpush1.msra.mxu0 0.0
      %4021 = vmatprep.subr.mxu0 0.0
      %4022 = vmatpush1.msra.mxu0 0.0
      %4023 = vmatprep.subr.mxu0 0.0
      %4024 = vmatpush1.msra.mxu0 0.0
      %4025 = vmatprep.subr.mxu0 0.0
      %4026 = vmatpush1.msra.mxu0 0.0
      %4027 = vmatprep.subr.mxu0 0.0
      %4028 = vmatpush1.msra.mxu0 0.0
      %4029 = vmatprep.subr.mxu0 0.0
      %4030 = vmatpush1.msra.mxu0 0.0
      %4031 = vmatprep.subr.mxu0 0.0
      %4032 = vmatpush1.msra.mxu0 0.0
      %4033 = vmatprep.subr.mxu0 0.0
      %4034 = vmatpush1.msra.mxu0 0.0
      %4035 = vmatprep.subr.mxu0 0.0
      %4036 = vmatpush1.msra.mxu0 0.0
      %4037 = vmatprep.subr.mxu0 0.0
      %4038 = vmatpush1.msra.mxu0 0.0
      %4039 = vmatprep.subr.mxu0 0.0
      %4040 = vmatpush1.msra.mxu0 0.0
      %4041 = vmatprep.subr.mxu0 0.0
      %4042 = vmatpush1.msra.mxu0 0.0
      %4043 = vmatprep.subr.mxu0 0.0
      %4044 = vmatpush1.msra.mxu0 0.0
      %4045 = vmatprep.subr.mxu0 0.0
      %4046 = vmatpush1.msra.mxu0 0.0
      %4047 = vmatprep.subr.mxu0 0.0
      %4048 = vmatpush1.msra.mxu0 0.0
      %4049 = vmatprep.subr.mxu0 0.0
      %4050 = vmatpush1.msra.mxu0 0.0
      %4051 = vmatprep.mubr.f32.mxu0 0.0
      %4052 = vmatmul.mubr.f32.gmra.mrb[0].mxu0 %v3440
      %v4053 = vpop.f32.mrb[0].mxu0
      %v4054 = vadd.f32 %v3437, %v4053
      %v4055 = vpop.f32.mrb[0].mxu0
      %v4056 = vadd.f32 %v3437, %v4055
      %4057 = vdwg.mxu0
      %v4066 = vcombine.high %v3425, %v3425
      %v4067 = vcombine.high %v3426, %v3426
      %v4068 = vcombine.high %v3427, %v3427
      %v4069 = vcombine.high %v3428, %v3428
      %v4070 = vcombine.high %v3429, %v3429
      %v4071 = vcombine.high %v3430, %v3430
      %v4072 = vcombine.high %v3431, %v3431
      %v4073 = vcombine.high %v3432, %v3432
      %v4082 = vadd.f32 %v3557, %v3425
      %v4083 = vadd.f32 %v3559, %v4066
      %v4084 = vadd.f32 %v3628, %v3426
      %v4085 = vadd.f32 %v3630, %v4067
      %v4086 = vadd.f32 %v3699, %v3427
      %v4087 = vadd.f32 %v3701, %v4068
      %v4088 = vadd.f32 %v3770, %v3428
      %v4089 = vadd.f32 %v3772, %v4069
      %v4090 = vadd.f32 %v3841, %v3429
      %v4091 = vadd.f32 %v3843, %v4070
      %v4092 = vadd.f32 %v3912, %v3430
      %v4093 = vadd.f32 %v3914, %v4071
      %v4094 = vadd.f32 %v3983, %v3431
      %v4095 = vadd.f32 %v3985, %v4072
      %v4096 = vadd.f32 %v4054, %v3432
      %v4097 = vadd.f32 %v4056, %v4073
      %v4114 = vcombine.low %v4082, %v4083
      %v4115 = vcombine.low %v4084, %v4085
      %v4116 = vcombine.low %v4086, %v4087
      %v4117 = vcombine.low %v4088, %v4089
      %v4118 = vcombine.low %v4090, %v4091
      %v4119 = vcombine.low %v4092, %v4093
      %v4120 = vcombine.low %v4094, %v4095
      %v4121 = vcombine.low %v4096, %v4097
      %4130 = vst [vmem:[%s227] sm:$0xff] %v4114
      %4131 = vst [vmem:[%s227 + $0x8] sm:$0xff] %v4115
      %4132 = vst [vmem:[%s227 + $0x10] sm:$0xff] %v4116
      %4133 = vst [vmem:[%s227 + $0x18] sm:$0xff] %v4117
      %4134 = vst [vmem:[%s227 + $0x20] sm:$0xff] %v4118
      %4135 = vst [vmem:[%s227 + $0x28] sm:$0xff] %v4119
      %4136 = vst [vmem:[%s227 + $0x30] sm:$0xff] %v4120
      %4137 = vst [vmem:[%s227 + $0x38] sm:$0xff] %v4121
      %s4138 = smul.u32 16, %s22
      %p4139 = scmp.lt.s32.totalorder %s21, 1
      %s4140 = scalar_select %p4139, %s21, 1
      %p4141 = scmp.lt.s32.totalorder %s4138, 15
      %s4142 = scalar_select %p4141, %s4138, 15
      %s4143 = smul.addr %s4140, 16
      %s4144 = sadd.s32 %s4142, %s4143
      %s4145 = smul.addr %s4144, 4
      %s4146 = scalar_lea.vmem %s6, %s4145
      // Predicated region
      $region121: #{drb_forward.1} parent=39 // pred_check
        %p4147 = pneg %p154
      $region122: #{drb_forward.1} parent=39 // pred_check_branch
        %4149 = sbr.rel (%p4147) target = $region124
      $region123: #{drb_forward.1} parent=39 // pred_region
        %s4150 = smul.u32 16, %s22
      $region124: #{drb_forward.1} parent=39 // pred_fallthru
        _
    $region40: #{drb_forward.1} parent=5 // pred_fallthru
      _
    %p4151 = scmp.le.s32.totalorder 2, %s12
    // Predicated region
    $region125: #{drb_forward.1} parent=5 // pred_check
      %p4152 = pneg %p4151
    $region126: #{drb_forward.1} parent=5 // pred_check_branch
      %4154 = sbr.rel (%p4152) target = $region128
    $region127: #{drb_forward.1} parent=5 // pred_region
      %s4155 = ssub.s32 %s12, 2
      // Predicated region
      $region129: #{drb_forward.1} parent=127 // pred_check
        %p4156 = pneg %p160
      $region130: #{drb_forward.1} parent=127 // pred_check_branch
        %4158 = sbr.rel (%p4156) target = $region132
      $region131: #{drb_forward.1} parent=127 // pred_region
        %s4159 = smul.u32 16, %s24
        %p4160 = scmp.lt.s32.totalorder %s23, 1
        %s4161 = scalar_select %p4160, %s23, 1
        %p4162 = scmp.lt.s32.totalorder %s4159, 15
        %s4163 = scalar_select %p4162, %s4159, 15
        %s4164 = smul.addr %s4161, 16
        %s4165 = sadd.s32 %s4163, %s4164
        %s4166 = smul.addr %s4165, 4
        %s4167 = scalar_lea.vmem %s6, %s4166
      $region132: #{drb_forward.1} parent=127 // pred_fallthru
        _
    $region128: #{drb_forward.1} parent=5 // pred_fallthru
      _
  $region6: #{drb_forward.1} parent=0 // loop_footer
    %s16 = sadd.s32 1, %s12
  $region7: #{drb_forward.1} parent=0 // loop_footer_branch
    %11 = sbr.rel target = $region3
  $region8: #{drb_forward.1} parent=0 // loop_exit
    _
  %4168 = vsyncmov [#allocation6]
  %s4169 = vpop.sfrf %4168
  %p4170 = scmp.eq.s32.totalorder %s4169, 0
  %p4171 = pneg %p4170
  %4173 = shalt.err (%p4171)
  %s4174 = scalar_lea.sflag [#allocation6], 1
  %4175 = vsyncmov %s4174
  %s4176 = vpop.sfrf %4175
  %p4177 = scmp.eq.s32.totalorder %s4176, 0
  %p4178 = pneg %p4177
  %4180 = shalt.err (%p4178)

</llo_original>
